<compile_context>
chip_gen: v5e
topology: v5e:2x2
jax: 0.10.0
libtpu: 0.0.40
codegen_flags: <defaults>
</compile_context>

<pallas_src>
import jax
import jax.numpy as jnp
from jax.experimental import pallas as pl
from jax.experimental.pallas import tpu as pltpu

EPS = 1e-6
DIM = 1024  # RMSNorm() default dim in the PyTorch module


def _residual_kernel(x_ref, g_ref, w_ref, o_ref):
    """Fused RMSNorm -> Linear sublayer -> residual add for one row tile.

    x_ref: (tm, D)  input rows (f32)
    g_ref: (1, D)   RMSNorm weight (gamma), f32
    w_ref: (D, D)   sublayer linear weight, bf16 (resident across grid steps)
    o_ref: (tm, D)  output rows
    """
    x = x_ref[...]                                   # (tm, D), input dtype
    xf = x.astype(jnp.float32)

    # RMSNorm in float32, cast back to input dtype (matches .type_as(x)), scale by gamma.
    ms = jnp.mean(xf * xf, axis=-1, keepdims=True)   # (tm, 1)
    inv = jax.lax.rsqrt(ms + EPS)
    normed = (xf * inv).astype(x.dtype)              # _norm(x.float()).type_as(x)
    normed = g_ref[...] * normed                     # weight * ...

    # Sublayer: bias-free linear on the MXU. bf16 operands, f32 accumulation.
    y = jnp.dot(normed.astype(jnp.bfloat16), w_ref[...],
                preferred_element_type=jnp.float32)

    # Dropout (inference) is identity; residual add stays in f32.
    o_ref[...] = x + y.astype(x.dtype)


def residual_connection(x, norm_weight, sub_weight, *, tm=256):
    """x: (B, S, D) float32; norm_weight: (D,); sub_weight: (D, D)."""
    B, S, D = x.shape
    M = B * S
    x2 = x.reshape(M, D)

    # Fixed, capped row tile: multiple of 8 (sublane), <=256 (MXU M-dim on v6e),
    # clamped down for tiny inputs. Pad the row count up to a tile multiple.
    tm = int(min(tm, max(8, ((M + 7) // 8) * 8)))
    M_pad = ((M + tm - 1) // tm) * tm
    if M_pad != M:
        x2 = jnp.pad(x2, ((0, M_pad - M), (0, 0)))

    gamma = norm_weight.reshape(1, D).astype(x.dtype)
    w_bf16 = sub_weight.astype(jnp.bfloat16)         # cast once, resident in VMEM

    cost = pl.CostEstimate(
        flops=2 * M_pad * D * D,
        transcendentals=M_pad,                       # one rsqrt per row
        bytes_accessed=2 * M_pad * D * 4 + D * D * 2,
    )

    out = pl.pallas_call(
        _residual_kernel,
        out_shape=jax.ShapeDtypeStruct((M_pad, D), x.dtype),
        grid=(M_pad // tm,),
        in_specs=[
            pl.BlockSpec((tm, D), lambda i: (i, 0)),   # x rows (pipelined)
            pl.BlockSpec((1, D), lambda i: (0, 0)),    # RMSNorm gamma (broadcast)
            pl.BlockSpec((D, D), lambda i: (0, 0)),    # sublayer weight (resident)
        ],
        out_specs=pl.BlockSpec((tm, D), lambda i: (i, 0)),
        compiler_params=pltpu.CompilerParams(
            dimension_semantics=("parallel",),         # megacore sharding on v7x
        ),
        cost_estimate=cost,
    )(x2, gamma, w_bf16)

    if M_pad != M:
        out = out[:M]
    return out.reshape(B, S, D)


def _reference(x, norm_weight, sub_weight):
    """Reference with the same bf16-operand / f32-accumulate matmul numerics."""
    xf = x.astype(jnp.float32)
    ms = jnp.mean(xf * xf, axis=-1, keepdims=True)
    normed = (xf * jax.lax.rsqrt(ms + EPS)).astype(x.dtype)
    normed = norm_weight * normed
    y = jnp.dot(normed.astype(jnp.bfloat16), sub_weight.astype(jnp.bfloat16),
                preferred_element_type=jnp.float32)
    return x + y.astype(x.dtype)


if __name__ == "__main__":
    key = jax.random.PRNGKey(0)
    kx, kw = jax.random.split(key)

    B, S, D = 2, 8, DIM
    x = jax.random.normal(kx, (B, S, D), dtype=jnp.float32)

    # Deterministic parameter init (synthetic, not a checkpoint load).
    norm_weight = jnp.ones((D,), dtype=jnp.float32)            # RMSNorm weight
    sub_weight = jax.random.normal(kw, (D, D), dtype=jnp.float32) * (1.0 / D ** 0.5)

    out = residual_connection(x, norm_weight, sub_weight)
    out = jax.block_until_ready(out)

    ref = _reference(x, norm_weight, sub_weight)
    assert out.shape == (B, S, D)
    assert jnp.allclose(out, ref, atol=2e-3, rtol=2e-3), "mismatch vs reference"

    print("KERNEL_OK")
</pallas_src>

<mosaic_0001>
module attributes {stable_mosaic.version = 11 : i64} {
  func.func @_residual_kernel(%arg0: i32, %arg1: memref<16x1024xf32, #tpu.memory_space<vmem>>, %arg2: memref<1x1024xf32, #tpu.memory_space<vmem>>, %arg3: memref<1024x1024xbf16, #tpu.memory_space<vmem>>, %arg4: memref<16x1024xf32, #tpu.memory_space<vmem>>) attributes {dimension_semantics = [#tpu.dimension_semantics<parallel>], iteration_bounds = array<i64: 1>, scalar_prefetch = 0 : i64, scratch_operands = 0 : i64, tpu.core_type = #tpu.core_type<tc>, window_params = [{transform_indices = @transform_0, window_bounds = array<i64: 16, 1024>}, {pipeline_mode = #tpu.pipeline_mode<synchronous>, transform_indices = @transform_1, window_bounds = array<i64: 1, 1024>}, {pipeline_mode = #tpu.pipeline_mode<synchronous>, transform_indices = @transform_2, window_bounds = array<i64: 1024, 1024>}, {transform_indices = @transform_3, window_bounds = array<i64: 16, 1024>}]} {
    %c0 = arith.constant 0 : index
    %c0_0 = arith.constant 0 : index
    %0 = vector.load %arg1[%c0, %c0_0] : memref<16x1024xf32, #tpu.memory_space<vmem>>, vector<16x1024xf32>
    %1 = arith.mulf %0, %0 : vector<16x1024xf32>
    %cst = arith.constant dense<0.000000e+00> : vector<16xf32>
    %2 = vector.multi_reduction <add>, %1, %cst [1] : vector<16x1024xf32> to vector<16xf32>
    %3 = vector.shape_cast %2 : vector<16xf32> to vector<16x1xf32>
    %cst_1 = arith.constant 1.024000e+03 : f32
    %4 = vector.broadcast %cst_1 : f32 to vector<16x1xf32>
    %5 = arith.divf %3, %4 : vector<16x1xf32>
    %cst_2 = arith.constant 9.99999997E-7 : f32
    %6 = vector.broadcast %cst_2 : f32 to vector<16x1xf32>
    %7 = arith.addf %5, %6 : vector<16x1xf32>
    %8 = math.rsqrt %7 : vector<16x1xf32>
    %9 = vector.broadcast %8 : vector<16x1xf32> to vector<16x1024xf32>
    %10 = arith.mulf %0, %9 : vector<16x1024xf32>
    %c0_3 = arith.constant 0 : index
    %c0_4 = arith.constant 0 : index
    %11 = vector.load %arg2[%c0_3, %c0_4] : memref<1x1024xf32, #tpu.memory_space<vmem>>, vector<1x1024xf32>
    %12 = vector.broadcast %11 : vector<1x1024xf32> to vector<16x1024xf32>
    %13 = arith.mulf %12, %10 : vector<16x1024xf32>
    %14 = arith.truncf %13 : vector<16x1024xf32> to vector<16x1024xbf16>
    %c0_5 = arith.constant 0 : index
    %c0_6 = arith.constant 0 : index
    %15 = vector.load %arg3[%c0_5, %c0_6] : memref<1024x1024xbf16, #tpu.memory_space<vmem>>, vector<1024x1024xbf16>
    %cst_7 = arith.constant dense<0.000000e+00> : vector<16x1024xf32>
    %16 = tpu.matmul %14, %15, %cst_7 {dimension_numbers = #tpu.dot_dimension_numbers<[1], [0], [0], [1], [0, 0, 1, 1], [], []>} : vector<16x1024xbf16>, vector<1024x1024xbf16>, vector<16x1024xf32> -> vector<16x1024xf32>
    %17 = arith.addf %0, %16 : vector<16x1024xf32>
    %c0_8 = arith.constant 0 : index
    %c0_9 = arith.constant 0 : index
    %18 = vector.load %arg4[%c0_8, %c0_9] : memref<16x1024xf32, #tpu.memory_space<vmem>>, vector<16x1024xf32>
    tpu.vector_store %arg4[%c0_8, %c0_9], %17 {strides = array<i32>} : memref<16x1024xf32, #tpu.memory_space<vmem>>, vector<16x1024xf32>,
    return
  }
  func.func @transform_0(%arg0: i32) -> (i32, i32) {
    %c0_i32 = arith.constant 0 : i32
    %c0_i32_0 = arith.constant 0 : i32
    return %arg0, %c0_i32 : i32, i32
  }
  func.func @transform_1(%arg0: i32) -> (i32, i32) {
    %c0_i32 = arith.constant 0 : i32
    %c0_i32_0 = arith.constant 0 : i32
    %c0_i32_1 = arith.constant 0 : i32
    return %c0_i32, %c0_i32_0 : i32, i32
  }
  func.func @transform_2(%arg0: i32) -> (i32, i32) {
    %c0_i32 = arith.constant 0 : i32
    %c0_i32_0 = arith.constant 0 : i32
    %c0_i32_1 = arith.constant 0 : i32
    return %c0_i32, %c0_i32_0 : i32, i32
  }
  func.func @transform_3(%arg0: i32) -> (i32, i32) {
    %c0_i32 = arith.constant 0 : i32
    %c0_i32_0 = arith.constant 0 : i32
    return %arg0, %c0_i32 : i32, i32
  }
}

</mosaic_0001>

<llo_original>
// kernel: tpu_custom_call.1
$region0: #{tpu_custom_call.1}
  #allocation0 [shape = 'u32[]', space=smem, size = 0x4, offset = 0x4, fixed_abs, tag = 'smem constant byte address 0x4 - core index']
  #allocation1 [shape = 'u32[72,128]{1,0:T(1,128)}', space=vmem, size = 0x9000, scoped, tag = 'internal scratch']
  %s0 = inlined_call_operand.hbm [shape: f32[16,1024], index: 0, kind: input, shape index: {}]
  %s1 = inlined_call_operand.hbm [shape: f32[1,1024], index: 1, kind: input, shape index: {}]
  %s2 = inlined_call_operand.hbm [shape: bf16[1024,1024], index: 2, kind: input, shape index: {}]
  %s3 = inlined_call_operand.hbm [shape: f32[16,1024], index: 3, kind: output, shape index: {}]
  %s4 = sld [smem:[#allocation0]]
  $region34: #{tpu_custom_call.1} parent=0
    _
  %s6 = ssub.s32 1, %s4
  %s7 = scalar_select 0, %s6, %s4
  $region1: #{tpu_custom_call.1} parent=0
    #allocation2 [shape = 'u8[65536]{0}', space=vmem, size = 0x10000, scoped, tag = 'input window, operand 0, single buffered']
    #allocation3 [shape = 's32[1]{0}', space=sflag, size = 0x4, scoped, tag = 'scoped memory for tpu_custom_call.1']
    #allocation4 [shape = 's32[1]{0}', space=sflag, size = 0x4, scoped, tag = 'scoped memory for tpu_custom_call.1']
    #allocation5 [shape = 'u8[4096]{0}', space=vmem, size = 0x1000, scoped, tag = 'input window, operand 1, single buffered']
    #allocation6 [shape = 's32[1]{0}', space=sflag, size = 0x4, scoped, tag = 'scoped memory for tpu_custom_call.1']
    #allocation7 [shape = 'u8[2097152]{0}', space=vmem, size = 0x200000, scoped, tag = 'input window, operand 2, single buffered']
    #allocation8 [shape = 'u8[65536]{0}', space=vmem, size = 0x10000, scoped, tag = 'output window, operand 0, single buffered']
    %8 = vsyncpa [#allocation3], 0
    %9 = vsyncpa [#allocation6], 0
    %10 = vsyncpa [#allocation4], 0
    // Predicated region
    $region2: #{tpu_custom_call.1} parent=1 // pred_check
      _
    $region3: #{tpu_custom_call.1} parent=1 // pred_check_branch
      %12 = sbr.rel (0) target = $region5
    $region4: #{tpu_custom_call.1} parent=1 // pred_region
      %14 = vsyncadd [#allocation3], 0
      %s15 = sshll.u32 %s0, 4
      %s16 = int_to_ptr.hbm [resolvable:$true] %s15
      %s17 = sshll.u32 [#allocation2], 4
      %s18 = int_to_ptr.vmem [resolvable:$true] %s17
      %23 = dma.hbm_to_vmem [thread:$0]  %s16, 2048, %s18, [#allocation3], 1024, 1024, 64
    $region5: #{tpu_custom_call.1} parent=1 // pred_fallthru
      _
    // Predicated region
    $region6: #{tpu_custom_call.1} parent=1 // pred_check
      _
    $region7: #{tpu_custom_call.1} parent=1 // pred_check_branch
      %25 = sbr.rel (0) target = $region9
    $region8: #{tpu_custom_call.1} parent=1 // pred_region
      %27 = vsyncadd [#allocation6], 0
      %s29 = sshll.u32 %s1, 4
      %s30 = int_to_ptr.hbm [resolvable:$true] %s29
      %s31 = sshll.u32 [#allocation5], 4
      %s32 = int_to_ptr.vmem [resolvable:$true] %s31
      %34 = dma.hbm_to_vmem [thread:$0]  %s30, 128, %s32, [#allocation6]
    $region9: #{tpu_custom_call.1} parent=1 // pred_fallthru
      _
    // Predicated region
    $region10: #{tpu_custom_call.1} parent=1 // pred_check
      _
    $region11: #{tpu_custom_call.1} parent=1 // pred_check_branch
      %36 = sbr.rel (0) target = $region13
    $region12: #{tpu_custom_call.1} parent=1 // pred_region
      %38 = vsyncadd [#allocation6], 0
      %s39 = sshll.u32 %s2, 4
      %s40 = int_to_ptr.hbm [resolvable:$true] %s39
      %s41 = sshll.u32 [#allocation7], 4
      %s42 = int_to_ptr.vmem [resolvable:$true] %s41
      %47 = dma.hbm_to_vmem [thread:$0]  %s40, 65536, %s42, [#allocation6], 512, 512, 32
    $region13: #{tpu_custom_call.1} parent=1 // pred_fallthru
      _
    // Predicated region
    $region14: #{tpu_custom_call.1} parent=1 // pred_check
      _
    $region15: #{tpu_custom_call.1} parent=1 // pred_check_branch
      %49 = sbr.rel (0) target = $region17
    $region16: #{tpu_custom_call.1} parent=1 // pred_region
      %51 = dma.done [#allocation3], 2048
    $region17: #{tpu_custom_call.1} parent=1 // pred_fallthru
      _
    // Predicated region
    $region18: #{tpu_custom_call.1} parent=1 // pred_check
      _
    $region19: #{tpu_custom_call.1} parent=1 // pred_check_branch
      %53 = sbr.rel (0) target = $region21
    $region20: #{tpu_custom_call.1} parent=1 // pred_region
      %55 = dma.done [#allocation6], 128
    $region21: #{tpu_custom_call.1} parent=1 // pred_fallthru
      _
    // Predicated region
    $region22: #{tpu_custom_call.1} parent=1 // pred_check
      _
    $region23: #{tpu_custom_call.1} parent=1 // pred_check_branch
      %57 = sbr.rel (0) target = $region25
    $region24: #{tpu_custom_call.1} parent=1 // pred_region
      %59 = dma.done [#allocation6], 65536
    $region25: #{tpu_custom_call.1} parent=1 // pred_fallthru
      _
    %v60 = vld [vmem:[#allocation2] sm:$0xff]
    %v61 = vld [vmem:[#allocation2 + $0x8] sm:$0xff]
    %v62 = vld [vmem:[#allocation2 + $0x10] sm:$0xff]
    %v63 = vld [vmem:[#allocation2 + $0x18] sm:$0xff]
    %v64 = vld [vmem:[#allocation2 + $0x20] sm:$0xff]
    %v65 = vld [vmem:[#allocation2 + $0x28] sm:$0xff]
    %v66 = vld [vmem:[#allocation2 + $0x30] sm:$0xff]
    %v67 = vld [vmem:[#allocation2 + $0x38] sm:$0xff]
    %v68 = vld [vmem:[#allocation2 + $0x40] sm:$0xff]
    %v69 = vld [vmem:[#allocation2 + $0x48] sm:$0xff]
    %v70 = vld [vmem:[#allocation2 + $0x50] sm:$0xff]
    %v71 = vld [vmem:[#allocation2 + $0x58] sm:$0xff]
    %v72 = vld [vmem:[#allocation2 + $0x60] sm:$0xff]
    %v73 = vld [vmem:[#allocation2 + $0x68] sm:$0xff]
    %v74 = vld [vmem:[#allocation2 + $0x70] sm:$0xff]
    %v75 = vld [vmem:[#allocation2 + $0x78] sm:$0xff]
    %v76 = vmul.f32 %v60, %v60
    %v77 = vmul.f32 %v61, %v61
    %v78 = vmul.f32 %v62, %v62
    %v79 = vmul.f32 %v63, %v63
    %v80 = vmul.f32 %v64, %v64
    %v81 = vmul.f32 %v65, %v65
    %v82 = vmul.f32 %v66, %v66
    %v83 = vmul.f32 %v67, %v67
    %v84 = vmul.f32 %v68, %v68
    %v85 = vmul.f32 %v69, %v69
    %v86 = vmul.f32 %v70, %v70
    %v87 = vmul.f32 %v71, %v71
    %v88 = vmul.f32 %v72, %v72
    %v89 = vmul.f32 %v73, %v73
    %v90 = vmul.f32 %v74, %v74
    %v91 = vmul.f32 %v75, %v75
    %v92 = vadd.f32 %v76, %v77
    %v93 = vadd.f32 %v92, %v78
    %v94 = vadd.f32 %v93, %v79
    %v95 = vadd.f32 %v94, %v80
    %v96 = vadd.f32 %v95, %v81
    %v97 = vadd.f32 %v96, %v82
    %v98 = vadd.f32 %v97, %v83
    %99 = vadd.xlane.f32.xlu0 %v98
    %v100 = vpop.xlane.xlu0 %99
    %v101 = vadd.f32 %v84, %v85
    %v102 = vadd.f32 %v101, %v86
    %v103 = vadd.f32 %v102, %v87
    %v104 = vadd.f32 %v103, %v88
    %v105 = vadd.f32 %v104, %v89
    %v106 = vadd.f32 %v105, %v90
    %v107 = vadd.f32 %v106, %v91
    %108 = vadd.xlane.f32.xlu0 %v107
    %v109 = vpop.xlane.xlu0 %108
    %v110 = vrcp.pop 1024.0
    %v111 = vmul.f32 1024.0, %v110
    %v112 = vsub.f32 1.0, %v111
    %v113 = vmul.f32 %v110, %v112
    %v114 = vadd.f32 %v110, %v113
    %vm115 = vweird.f32 %v110
    %v116 = vsel %vm115, %v110, %v114
    %v117 = vmul.f32 %v100, %v116
    %v118 = vmul.f32 %v109, %v116
    %v119 = vadd.f32 %v117, 1e-06
    %v120 = vadd.f32 %v118, 1e-06
    %v121 = vrsqrt.pop %v119
    %v122 = vmul.f32 %v121, %v119
    %v123 = vmul.f32 %v122, %v121
    %v124 = vmul.f32 0.5, %v123
    %v125 = vsub.f32 1.5, %v124
    %v126 = vmul.f32 %v121, %v125
    %vm127 = vweird.f32 %v119
    %vm128 = vweird.f32 %v121
    %vm129 = vmor %vm127, %vm128
    %v130 = vsel %vm129, %v121, %v126
    %v131 = vrsqrt.pop %v120
    %v132 = vmul.f32 %v131, %v120
    %v133 = vmul.f32 %v132, %v131
    %v134 = vmul.f32 0.5, %v133
    %v135 = vsub.f32 1.5, %v134
    %v136 = vmul.f32 %v131, %v135
    %vm137 = vweird.f32 %v120
    %vm138 = vweird.f32 %v131
    %vm139 = vmor %vm137, %vm138
    %v140 = vsel %vm139, %v131, %v136
    %v141 = vmul.f32 %v60, %v130
    %v142 = vmul.f32 %v61, %v130
    %v143 = vmul.f32 %v62, %v130
    %v144 = vmul.f32 %v63, %v130
    %v145 = vmul.f32 %v64, %v130
    %v146 = vmul.f32 %v65, %v130
    %v147 = vmul.f32 %v66, %v130
    %v148 = vmul.f32 %v67, %v130
    %v149 = vmul.f32 %v68, %v140
    %v150 = vmul.f32 %v69, %v140
    %v151 = vmul.f32 %v70, %v140
    %v152 = vmul.f32 %v71, %v140
    %v153 = vmul.f32 %v72, %v140
    %v154 = vmul.f32 %v73, %v140
    %v155 = vmul.f32 %v74, %v140
    %v156 = vmul.f32 %v75, %v140
    %v157 = vld [vmem:[#allocation5] sm:$0xff]
    %v159 = vperm.slane %v157, 0
    %v160 = vperm.slane %v157, 1
    %v161 = vperm.slane %v157, 2
    %v162 = vperm.slane %v157, 3
    %v163 = vperm.slane %v157, 4
    %v164 = vperm.slane %v157, 5
    %v165 = vperm.slane %v157, 6
    %v166 = vperm.slane %v157, 7
    %v175 = vmul.f32 %v159, %v141
    %v176 = vmul.f32 %v160, %v142
    %v177 = vmul.f32 %v161, %v143
    %v178 = vmul.f32 %v162, %v144
    %v179 = vmul.f32 %v163, %v145
    %v180 = vmul.f32 %v164, %v146
    %v181 = vmul.f32 %v165, %v147
    %v182 = vmul.f32 %v166, %v148
    %v183 = vmul.f32 %v159, %v149
    %v184 = vmul.f32 %v160, %v150
    %v185 = vmul.f32 %v161, %v151
    %v186 = vmul.f32 %v162, %v152
    %v187 = vmul.f32 %v163, %v153
    %v188 = vmul.f32 %v164, %v154
    %v189 = vmul.f32 %v165, %v155
    %v190 = vmul.f32 %v166, %v156
    %v191 = vpack.c.bf16 %v183, %v175
    %v192 = vpack.c.bf16 %v184, %v176
    %v193 = vpack.c.bf16 %v185, %v177
    %v194 = vpack.c.bf16 %v186, %v178
    %v195 = vpack.c.bf16 %v187, %v179
    %v196 = vpack.c.bf16 %v188, %v180
    %v197 = vpack.c.bf16 %v189, %v181
    %v198 = vpack.c.bf16 %v190, %v182
    %v199 = vld [vmem:[#allocation7] sm:$0xff]
    %v200 = vld [vmem:[#allocation7 + $0x8] sm:$0xff]
    %v201 = vld [vmem:[#allocation7 + $0x10] sm:$0xff]
    %v202 = vld [vmem:[#allocation7 + $0x18] sm:$0xff]
    %v203 = vld [vmem:[#allocation7 + $0x20] sm:$0xff]
    %v204 = vld [vmem:[#allocation7 + $0x28] sm:$0xff]
    %v205 = vld [vmem:[#allocation7 + $0x30] sm:$0xff]
    %v206 = vld [vmem:[#allocation7 + $0x38] sm:$0xff]
    %v207 = vld [vmem:[#allocation7 + $0x40] sm:$0xff]
    %v208 = vld [vmem:[#allocation7 + $0x48] sm:$0xff]
    %v209 = vld [vmem:[#allocation7 + $0x50] sm:$0xff]
    %v210 = vld [vmem:[#allocation7 + $0x58] sm:$0xff]
    %v211 = vld [vmem:[#allocation7 + $0x60] sm:$0xff]
    %v212 = vld [vmem:[#allocation7 + $0x68] sm:$0xff]
    %v213 = vld [vmem:[#allocation7 + $0x70] sm:$0xff]
    %v214 = vld [vmem:[#allocation7 + $0x78] sm:$0xff]
    %v215 = vld [vmem:[#allocation7 + $0x80] sm:$0xff]
    %v216 = vld [vmem:[#allocation7 + $0x88] sm:$0xff]
    %v217 = vld [vmem:[#allocation7 + $0x90] sm:$0xff]
    %v218 = vld [vmem:[#allocation7 + $0x98] sm:$0xff]
    %v219 = vld [vmem:[#allocation7 + $0xa0] sm:$0xff]
    %v220 = vld [vmem:[#allocation7 + $0xa8] sm:$0xff]
    %v221 = vld [vmem:[#allocation7 + $0xb0] sm:$0xff]
    %v222 = vld [vmem:[#allocation7 + $0xb8] sm:$0xff]
    %v223 = vld [vmem:[#allocation7 + $0xc0] sm:$0xff]
    %v224 = vld [vmem:[#allocation7 + $0xc8] sm:$0xff]
    %v225 = vld [vmem:[#allocation7 + $0xd0] sm:$0xff]
    %v226 = vld [vmem:[#allocation7 + $0xd8] sm:$0xff]
    %v227 = vld [vmem:[#allocation7 + $0xe0] sm:$0xff]
    %v228 = vld [vmem:[#allocation7 + $0xe8] sm:$0xff]
    %v229 = vld [vmem:[#allocation7 + $0xf0] sm:$0xff]
    %v230 = vld [vmem:[#allocation7 + $0xf8] sm:$0xff]
    %v231 = vld [vmem:[#allocation7 + $0x100] sm:$0xff]
    %v232 = vld [vmem:[#allocation7 + $0x108] sm:$0xff]
    %v233 = vld [vmem:[#allocation7 + $0x110] sm:$0xff]
    %v234 = vld [vmem:[#allocation7 + $0x118] sm:$0xff]
    %v235 = vld [vmem:[#allocation7 + $0x120] sm:$0xff]
    %v236 = vld [vmem:[#allocation7 + $0x128] sm:$0xff]
    %v237 = vld [vmem:[#allocation7 + $0x130] sm:$0xff]
    %v238 = vld [vmem:[#allocation7 + $0x138] sm:$0xff]
    %v239 = vld [vmem:[#allocation7 + $0x140] sm:$0xff]
    %v240 = vld [vmem:[#allocation7 + $0x148] sm:$0xff]
    %v241 = vld [vmem:[#allocation7 + $0x150] sm:$0xff]
    %v242 = vld [vmem:[#allocation7 + $0x158] sm:$0xff]
    %v243 = vld [vmem:[#allocation7 + $0x160] sm:$0xff]
    %v244 = vld [vmem:[#allocation7 + $0x168] sm:$0xff]
    %v245 = vld [vmem:[#allocation7 + $0x170] sm:$0xff]
    %v246 = vld [vmem:[#allocation7 + $0x178] sm:$0xff]
    %v247 = vld [vmem:[#allocation7 + $0x180] sm:$0xff]
    %v248 = vld [vmem:[#allocation7 + $0x188] sm:$0xff]
    %v249 = vld [vmem:[#allocation7 + $0x190] sm:$0xff]
    %v250 = vld [vmem:[#allocation7 + $0x198] sm:$0xff]
    %v251 = vld [vmem:[#allocation7 + $0x1a0] sm:$0xff]
    %v252 = vld [vmem:[#allocation7 + $0x1a8] sm:$0xff]
    %v253 = vld [vmem:[#allocation7 + $0x1b0] sm:$0xff]
    %v254 = vld [vmem:[#allocation7 + $0x1b8] sm:$0xff]
    %v255 = vld [vmem:[#allocation7 + $0x1c0] sm:$0xff]
    %v256 = vld [vmem:[#allocation7 + $0x1c8] sm:$0xff]
    %v257 = vld [vmem:[#allocation7 + $0x1d0] sm:$0xff]
    %v258 = vld [vmem:[#allocation7 + $0x1d8] sm:$0xff]
    %v259 = vld [vmem:[#allocation7 + $0x1e0] sm:$0xff]
    %v260 = vld [vmem:[#allocation7 + $0x1e8] sm:$0xff]
    %v261 = vld [vmem:[#allocation7 + $0x1f0] sm:$0xff]
    %v262 = vld [vmem:[#allocation7 + $0x1f8] sm:$0xff]
    %v263 = vld [vmem:[#allocation7 + $0x200] sm:$0xff]
    %v264 = vld [vmem:[#allocation7 + $0x208] sm:$0xff]
    %v265 = vld [vmem:[#allocation7 + $0x210] sm:$0xff]
    %v266 = vld [vmem:[#allocation7 + $0x218] sm:$0xff]
    %v267 = vld [vmem:[#allocation7 + $0x220] sm:$0xff]
    %v268 = vld [vmem:[#allocation7 + $0x228] sm:$0xff]
    %v269 = vld [vmem:[#allocation7 + $0x230] sm:$0xff]
    %v270 = vld [vmem:[#allocation7 + $0x238] sm:$0xff]
    %v271 = vld [vmem:[#allocation7 + $0x240] sm:$0xff]
    %v272 = vld [vmem:[#allocation7 + $0x248] sm:$0xff]
    %v273 = vld [vmem:[#allocation7 + $0x250] sm:$0xff]
    %v274 = vld [vmem:[#allocation7 + $0x258] sm:$0xff]
    %v275 = vld [vmem:[#allocation7 + $0x260] sm:$0xff]
    %v276 = vld [vmem:[#allocation7 + $0x268] sm:$0xff]
    %v277 = vld [vmem:[#allocation7 + $0x270] sm:$0xff]
    %v278 = vld [vmem:[#allocation7 + $0x278] sm:$0xff]
    %v279 = vld [vmem:[#allocation7 + $0x280] sm:$0xff]
    %v280 = vld [vmem:[#allocation7 + $0x288] sm:$0xff]
    %v281 = vld [vmem:[#allocation7 + $0x290] sm:$0xff]
    %v282 = vld [vmem:[#allocation7 + $0x298] sm:$0xff]
    %v283 = vld [vmem:[#allocation7 + $0x2a0] sm:$0xff]
    %v284 = vld [vmem:[#allocation7 + $0x2a8] sm:$0xff]
    %v285 = vld [vmem:[#allocation7 + $0x2b0] sm:$0xff]
    %v286 = vld [vmem:[#allocation7 + $0x2b8] sm:$0xff]
    %v287 = vld [vmem:[#allocation7 + $0x2c0] sm:$0xff]
    %v288 = vld [vmem:[#allocation7 + $0x2c8] sm:$0xff]
    %v289 = vld [vmem:[#allocation7 + $0x2d0] sm:$0xff]
    %v290 = vld [vmem:[#allocation7 + $0x2d8] sm:$0xff]
    %v291 = vld [vmem:[#allocation7 + $0x2e0] sm:$0xff]
    %v292 = vld [vmem:[#allocation7 + $0x2e8] sm:$0xff]
    %v293 = vld [vmem:[#allocation7 + $0x2f0] sm:$0xff]
    %v294 = vld [vmem:[#allocation7 + $0x2f8] sm:$0xff]
    %v295 = vld [vmem:[#allocation7 + $0x300] sm:$0xff]
    %v296 = vld [vmem:[#allocation7 + $0x308] sm:$0xff]
    %v297 = vld [vmem:[#allocation7 + $0x310] sm:$0xff]
    %v298 = vld [vmem:[#allocation7 + $0x318] sm:$0xff]
    %v299 = vld [vmem:[#allocation7 + $0x320] sm:$0xff]
    %v300 = vld [vmem:[#allocation7 + $0x328] sm:$0xff]
    %v301 = vld [vmem:[#allocation7 + $0x330] sm:$0xff]
    %v302 = vld [vmem:[#allocation7 + $0x338] sm:$0xff]
    %v303 = vld [vmem:[#allocation7 + $0x340] sm:$0xff]
    %v304 = vld [vmem:[#allocation7 + $0x348] sm:$0xff]
    %v305 = vld [vmem:[#allocation7 + $0x350] sm:$0xff]
    %v306 = vld [vmem:[#allocation7 + $0x358] sm:$0xff]
    %v307 = vld [vmem:[#allocation7 + $0x360] sm:$0xff]
    %v308 = vld [vmem:[#allocation7 + $0x368] sm:$0xff]
    %v309 = vld [vmem:[#allocation7 + $0x370] sm:$0xff]
    %v310 = vld [vmem:[#allocation7 + $0x378] sm:$0xff]
    %v311 = vld [vmem:[#allocation7 + $0x380] sm:$0xff]
    %v312 = vld [vmem:[#allocation7 + $0x388] sm:$0xff]
    %v313 = vld [vmem:[#allocation7 + $0x390] sm:$0xff]
    %v314 = vld [vmem:[#allocation7 + $0x398] sm:$0xff]
    %v315 = vld [vmem:[#allocation7 + $0x3a0] sm:$0xff]
    %v316 = vld [vmem:[#allocation7 + $0x3a8] sm:$0xff]
    %v317 = vld [vmem:[#allocation7 + $0x3b0] sm:$0xff]
    %v318 = vld [vmem:[#allocation7 + $0x3b8] sm:$0xff]
    %v319 = vld [vmem:[#allocation7 + $0x3c0] sm:$0xff]
    %v320 = vld [vmem:[#allocation7 + $0x3c8] sm:$0xff]
    %v321 = vld [vmem:[#allocation7 + $0x3d0] sm:$0xff]
    %v322 = vld [vmem:[#allocation7 + $0x3d8] sm:$0xff]
    %v323 = vld [vmem:[#allocation7 + $0x3e0] sm:$0xff]
    %v324 = vld [vmem:[#allocation7 + $0x3e8] sm:$0xff]
    %v325 = vld [vmem:[#allocation7 + $0x3f0] sm:$0xff]
    %v326 = vld [vmem:[#allocation7 + $0x3f8] sm:$0xff]
    %v327 = vld [vmem:[#allocation7 + $0x400] sm:$0xff]
    %v328 = vld [vmem:[#allocation7 + $0x408] sm:$0xff]
    %v329 = vld [vmem:[#allocation7 + $0x410] sm:$0xff]
    %v330 = vld [vmem:[#allocation7 + $0x418] sm:$0xff]
    %v331 = vld [vmem:[#allocation7 + $0x420] sm:$0xff]
    %v332 = vld [vmem:[#allocation7 + $0x428] sm:$0xff]
    %v333 = vld [vmem:[#allocation7 + $0x430] sm:$0xff]
    %v334 = vld [vmem:[#allocation7 + $0x438] sm:$0xff]
    %v335 = vld [vmem:[#allocation7 + $0x440] sm:$0xff]
    %v336 = vld [vmem:[#allocation7 + $0x448] sm:$0xff]
    %v337 = vld [vmem:[#allocation7 + $0x450] sm:$0xff]
    %v338 = vld [vmem:[#allocation7 + $0x458] sm:$0xff]
    %v339 = vld [vmem:[#allocation7 + $0x460] sm:$0xff]
    %v340 = vld [vmem:[#allocation7 + $0x468] sm:$0xff]
    %v341 = vld [vmem:[#allocation7 + $0x470] sm:$0xff]
    %v342 = vld [vmem:[#allocation7 + $0x478] sm:$0xff]
    %v343 = vld [vmem:[#allocation7 + $0x480] sm:$0xff]
    %v344 = vld [vmem:[#allocation7 + $0x488] sm:$0xff]
    %v345 = vld [vmem:[#allocation7 + $0x490] sm:$0xff]
    %v346 = vld [vmem:[#allocation7 + $0x498] sm:$0xff]
    %v347 = vld [vmem:[#allocation7 + $0x4a0] sm:$0xff]
    %v348 = vld [vmem:[#allocation7 + $0x4a8] sm:$0xff]
    %v349 = vld [vmem:[#allocation7 + $0x4b0] sm:$0xff]
    %v350 = vld [vmem:[#allocation7 + $0x4b8] sm:$0xff]
    %v351 = vld [vmem:[#allocation7 + $0x4c0] sm:$0xff]
    %v352 = vld [vmem:[#allocation7 + $0x4c8] sm:$0xff]
    %v353 = vld [vmem:[#allocation7 + $0x4d0] sm:$0xff]
    %v354 = vld [vmem:[#allocation7 + $0x4d8] sm:$0xff]
    %v355 = vld [vmem:[#allocation7 + $0x4e0] sm:$0xff]
    %v356 = vld [vmem:[#allocation7 + $0x4e8] sm:$0xff]
    %v357 = vld [vmem:[#allocation7 + $0x4f0] sm:$0xff]
    %v358 = vld [vmem:[#allocation7 + $0x4f8] sm:$0xff]
    %v359 = vld [vmem:[#allocation7 + $0x500] sm:$0xff]
    %v360 = vld [vmem:[#allocation7 + $0x508] sm:$0xff]
    %v361 = vld [vmem:[#allocation7 + $0x510] sm:$0xff]
    %v362 = vld [vmem:[#allocation7 + $0x518] sm:$0xff]
    %v363 = vld [vmem:[#allocation7 + $0x520] sm:$0xff]
    %v364 = vld [vmem:[#allocation7 + $0x528] sm:$0xff]
    %v365 = vld [vmem:[#allocation7 + $0x530] sm:$0xff]
    %v366 = vld [vmem:[#allocation7 + $0x538] sm:$0xff]
    %v367 = vld [vmem:[#allocation7 + $0x540] sm:$0xff]
    %v368 = vld [vmem:[#allocation7 + $0x548] sm:$0xff]
    %v369 = vld [vmem:[#allocation7 + $0x550] sm:$0xff]
    %v370 = vld [vmem:[#allocation7 + $0x558] sm:$0xff]
    %v371 = vld [vmem:[#allocation7 + $0x560] sm:$0xff]
    %v372 = vld [vmem:[#allocation7 + $0x568] sm:$0xff]
    %v373 = vld [vmem:[#allocation7 + $0x570] sm:$0xff]
    %v374 = vld [vmem:[#allocation7 + $0x578] sm:$0xff]
    %v375 = vld [vmem:[#allocation7 + $0x580] sm:$0xff]
    %v376 = vld [vmem:[#allocation7 + $0x588] sm:$0xff]
    %v377 = vld [vmem:[#allocation7 + $0x590] sm:$0xff]
    %v378 = vld [vmem:[#allocation7 + $0x598] sm:$0xff]
    %v379 = vld [vmem:[#allocation7 + $0x5a0] sm:$0xff]
    %v380 = vld [vmem:[#allocation7 + $0x5a8] sm:$0xff]
    %v381 = vld [vmem:[#allocation7 + $0x5b0] sm:$0xff]
    %v382 = vld [vmem:[#allocation7 + $0x5b8] sm:$0xff]
    %v383 = vld [vmem:[#allocation7 + $0x5c0] sm:$0xff]
    %v384 = vld [vmem:[#allocation7 + $0x5c8] sm:$0xff]
    %v385 = vld [vmem:[#allocation7 + $0x5d0] sm:$0xff]
    %v386 = vld [vmem:[#allocation7 + $0x5d8] sm:$0xff]
    %v387 = vld [vmem:[#allocation7 + $0x5e0] sm:$0xff]
    %v388 = vld [vmem:[#allocation7 + $0x5e8] sm:$0xff]
    %v389 = vld [vmem:[#allocation7 + $0x5f0] sm:$0xff]
    %v390 = vld [vmem:[#allocation7 + $0x5f8] sm:$0xff]
    %v391 = vld [vmem:[#allocation7 + $0x600] sm:$0xff]
    %v392 = vld [vmem:[#allocation7 + $0x608] sm:$0xff]
    %v393 = vld [vmem:[#allocation7 + $0x610] sm:$0xff]
    %v394 = vld [vmem:[#allocation7 + $0x618] sm:$0xff]
    %v395 = vld [vmem:[#allocation7 + $0x620] sm:$0xff]
    %v396 = vld [vmem:[#allocation7 + $0x628] sm:$0xff]
    %v397 = vld [vmem:[#allocation7 + $0x630] sm:$0xff]
    %v398 = vld [vmem:[#allocation7 + $0x638] sm:$0xff]
    %v399 = vld [vmem:[#allocation7 + $0x640] sm:$0xff]
    %v400 = vld [vmem:[#allocation7 + $0x648] sm:$0xff]
    %v401 = vld [vmem:[#allocation7 + $0x650] sm:$0xff]
    %v402 = vld [vmem:[#allocation7 + $0x658] sm:$0xff]
    %v403 = vld [vmem:[#allocation7 + $0x660] sm:$0xff]
    %v404 = vld [vmem:[#allocation7 + $0x668] sm:$0xff]
    %v405 = vld [vmem:[#allocation7 + $0x670] sm:$0xff]
    %v406 = vld [vmem:[#allocation7 + $0x678] sm:$0xff]
    %v407 = vld [vmem:[#allocation7 + $0x680] sm:$0xff]
    %v408 = vld [vmem:[#allocation7 + $0x688] sm:$0xff]
    %v409 = vld [vmem:[#allocation7 + $0x690] sm:$0xff]
    %v410 = vld [vmem:[#allocation7 + $0x698] sm:$0xff]
    %v411 = vld [vmem:[#allocation7 + $0x6a0] sm:$0xff]
    %v412 = vld [vmem:[#allocation7 + $0x6a8] sm:$0xff]
    %v413 = vld [vmem:[#allocation7 + $0x6b0] sm:$0xff]
    %v414 = vld [vmem:[#allocation7 + $0x6b8] sm:$0xff]
    %v415 = vld [vmem:[#allocation7 + $0x6c0] sm:$0xff]
    %v416 = vld [vmem:[#allocation7 + $0x6c8] sm:$0xff]
    %v417 = vld [vmem:[#allocation7 + $0x6d0] sm:$0xff]
    %v418 = vld [vmem:[#allocation7 + $0x6d8] sm:$0xff]
    %v419 = vld [vmem:[#allocation7 + $0x6e0] sm:$0xff]
    %v420 = vld [vmem:[#allocation7 + $0x6e8] sm:$0xff]
    %v421 = vld [vmem:[#allocation7 + $0x6f0] sm:$0xff]
    %v422 = vld [vmem:[#allocation7 + $0x6f8] sm:$0xff]
    %v423 = vld [vmem:[#allocation7 + $0x700] sm:$0xff]
    %v424 = vld [vmem:[#allocation7 + $0x708] sm:$0xff]
    %v425 = vld [vmem:[#allocation7 + $0x710] sm:$0xff]
    %v426 = vld [vmem:[#allocation7 + $0x718] sm:$0xff]
    %v427 = vld [vmem:[#allocation7 + $0x720] sm:$0xff]
    %v428 = vld [vmem:[#allocation7 + $0x728] sm:$0xff]
    %v429 = vld [vmem:[#allocation7 + $0x730] sm:$0xff]
    %v430 = vld [vmem:[#allocation7 + $0x738] sm:$0xff]
    %v431 = vld [vmem:[#allocation7 + $0x740] sm:$0xff]
    %v432 = vld [vmem:[#allocation7 + $0x748] sm:$0xff]
    %v433 = vld [vmem:[#allocation7 + $0x750] sm:$0xff]
    %v434 = vld [vmem:[#allocation7 + $0x758] sm:$0xff]
    %v435 = vld [vmem:[#allocation7 + $0x760] sm:$0xff]
    %v436 = vld [vmem:[#allocation7 + $0x768] sm:$0xff]
    %v437 = vld [vmem:[#allocation7 + $0x770] sm:$0xff]
    %v438 = vld [vmem:[#allocation7 + $0x778] sm:$0xff]
    %v439 = vld [vmem:[#allocation7 + $0x780] sm:$0xff]
    %v440 = vld [vmem:[#allocation7 + $0x788] sm:$0xff]
    %v441 = vld [vmem:[#allocation7 + $0x790] sm:$0xff]
    %v442 = vld [vmem:[#allocation7 + $0x798] sm:$0xff]
    %v443 = vld [vmem:[#allocation7 + $0x7a0] sm:$0xff]
    %v444 = vld [vmem:[#allocation7 + $0x7a8] sm:$0xff]
    %v445 = vld [vmem:[#allocation7 + $0x7b0] sm:$0xff]
    %v446 = vld [vmem:[#allocation7 + $0x7b8] sm:$0xff]
    %v447 = vld [vmem:[#allocation7 + $0x7c0] sm:$0xff]
    %v448 = vld [vmem:[#allocation7 + $0x7c8] sm:$0xff]
    %v449 = vld [vmem:[#allocation7 + $0x7d0] sm:$0xff]
    %v450 = vld [vmem:[#allocation7 + $0x7d8] sm:$0xff]
    %v451 = vld [vmem:[#allocation7 + $0x7e0] sm:$0xff]
    %v452 = vld [vmem:[#allocation7 + $0x7e8] sm:$0xff]
    %v453 = vld [vmem:[#allocation7 + $0x7f0] sm:$0xff]
    %v454 = vld [vmem:[#allocation7 + $0x7f8] sm:$0xff]
    %v455 = vld [vmem:[#allocation7 + $0x800] sm:$0xff]
    %v456 = vld [vmem:[#allocation7 + $0x808] sm:$0xff]
    %v457 = vld [vmem:[#allocation7 + $0x810] sm:$0xff]
    %v458 = vld [vmem:[#allocation7 + $0x818] sm:$0xff]
    %v459 = vld [vmem:[#allocation7 + $0x820] sm:$0xff]
    %v460 = vld [vmem:[#allocation7 + $0x828] sm:$0xff]
    %v461 = vld [vmem:[#allocation7 + $0x830] sm:$0xff]
    %v462 = vld [vmem:[#allocation7 + $0x838] sm:$0xff]
    %v463 = vld [vmem:[#allocation7 + $0x840] sm:$0xff]
    %v464 = vld [vmem:[#allocation7 + $0x848] sm:$0xff]
    %v465 = vld [vmem:[#allocation7 + $0x850] sm:$0xff]
    %v466 = vld [vmem:[#allocation7 + $0x858] sm:$0xff]
    %v467 = vld [vmem:[#allocation7 + $0x860] sm:$0xff]
    %v468 = vld [vmem:[#allocation7 + $0x868] sm:$0xff]
    %v469 = vld [vmem:[#allocation7 + $0x870] sm:$0xff]
    %v470 = vld [vmem:[#allocation7 + $0x878] sm:$0xff]
    %v471 = vld [vmem:[#allocation7 + $0x880] sm:$0xff]
    %v472 = vld [vmem:[#allocation7 + $0x888] sm:$0xff]
    %v473 = vld [vmem:[#allocation7 + $0x890] sm:$0xff]
    %v474 = vld [vmem:[#allocation7 + $0x898] sm:$0xff]
    %v475 = vld [vmem:[#allocation7 + $0x8a0] sm:$0xff]
    %v476 = vld [vmem:[#allocation7 + $0x8a8] sm:$0xff]
    %v477 = vld [vmem:[#allocation7 + $0x8b0] sm:$0xff]
    %v478 = vld [vmem:[#allocation7 + $0x8b8] sm:$0xff]
    %v479 = vld [vmem:[#allocation7 + $0x8c0] sm:$0xff]
    %v480 = vld [vmem:[#allocation7 + $0x8c8] sm:$0xff]
    %v481 = vld [vmem:[#allocation7 + $0x8d0] sm:$0xff]
    %v482 = vld [vmem:[#allocation7 + $0x8d8] sm:$0xff]
    %v483 = vld [vmem:[#allocation7 + $0x8e0] sm:$0xff]
    %v484 = vld [vmem:[#allocation7 + $0x8e8] sm:$0xff]
    %v485 = vld [vmem:[#allocation7 + $0x8f0] sm:$0xff]
    %v486 = vld [vmem:[#allocation7 + $0x8f8] sm:$0xff]
    %v487 = vld [vmem:[#allocation7 + $0x900] sm:$0xff]
    %v488 = vld [vmem:[#allocation7 + $0x908] sm:$0xff]
    %v489 = vld [vmem:[#allocation7 + $0x910] sm:$0xff]
    %v490 = vld [vmem:[#allocation7 + $0x918] sm:$0xff]
    %v491 = vld [vmem:[#allocation7 + $0x920] sm:$0xff]
    %v492 = vld [vmem:[#allocation7 + $0x928] sm:$0xff]
    %v493 = vld [vmem:[#allocation7 + $0x930] sm:$0xff]
    %v494 = vld [vmem:[#allocation7 + $0x938] sm:$0xff]
    %v495 = vld [vmem:[#allocation7 + $0x940] sm:$0xff]
    %v496 = vld [vmem:[#allocation7 + $0x948] sm:$0xff]
    %v497 = vld [vmem:[#allocation7 + $0x950] sm:$0xff]
    %v498 = vld [vmem:[#allocation7 + $0x958] sm:$0xff]
    %v499 = vld [vmem:[#allocation7 + $0x960] sm:$0xff]
    %v500 = vld [vmem:[#allocation7 + $0x968] sm:$0xff]
    %v501 = vld [vmem:[#allocation7 + $0x970] sm:$0xff]
    %v502 = vld [vmem:[#allocation7 + $0x978] sm:$0xff]
    %v503 = vld [vmem:[#allocation7 + $0x980] sm:$0xff]
    %v504 = vld [vmem:[#allocation7 + $0x988] sm:$0xff]
    %v505 = vld [vmem:[#allocation7 + $0x990] sm:$0xff]
    %v506 = vld [vmem:[#allocation7 + $0x998] sm:$0xff]
    %v507 = vld [vmem:[#allocation7 + $0x9a0] sm:$0xff]
    %v508 = vld [vmem:[#allocation7 + $0x9a8] sm:$0xff]
    %v509 = vld [vmem:[#allocation7 + $0x9b0] sm:$0xff]
    %v510 = vld [vmem:[#allocation7 + $0x9b8] sm:$0xff]
    %v511 = vld [vmem:[#allocation7 + $0x9c0] sm:$0xff]
    %v512 = vld [vmem:[#allocation7 + $0x9c8] sm:$0xff]
    %v513 = vld [vmem:[#allocation7 + $0x9d0] sm:$0xff]
    %v514 = vld [vmem:[#allocation7 + $0x9d8] sm:$0xff]
    %v515 = vld [vmem:[#allocation7 + $0x9e0] sm:$0xff]
    %v516 = vld [vmem:[#allocation7 + $0x9e8] sm:$0xff]
    %v517 = vld [vmem:[#allocation7 + $0x9f0] sm:$0xff]
    %v518 = vld [vmem:[#allocation7 + $0x9f8] sm:$0xff]
    %v519 = vld [vmem:[#allocation7 + $0xa00] sm:$0xff]
    %v520 = vld [vmem:[#allocation7 + $0xa08] sm:$0xff]
    %v521 = vld [vmem:[#allocation7 + $0xa10] sm:$0xff]
    %v522 = vld [vmem:[#allocation7 + $0xa18] sm:$0xff]
    %v523 = vld [vmem:[#allocation7 + $0xa20] sm:$0xff]
    %v524 = vld [vmem:[#allocation7 + $0xa28] sm:$0xff]
    %v525 = vld [vmem:[#allocation7 + $0xa30] sm:$0xff]
    %v526 = vld [vmem:[#allocation7 + $0xa38] sm:$0xff]
    %v527 = vld [vmem:[#allocation7 + $0xa40] sm:$0xff]
    %v528 = vld [vmem:[#allocation7 + $0xa48] sm:$0xff]
    %v529 = vld [vmem:[#allocation7 + $0xa50] sm:$0xff]
    %v530 = vld [vmem:[#allocation7 + $0xa58] sm:$0xff]
    %v531 = vld [vmem:[#allocation7 + $0xa60] sm:$0xff]
    %v532 = vld [vmem:[#allocation7 + $0xa68] sm:$0xff]
    %v533 = vld [vmem:[#allocation7 + $0xa70] sm:$0xff]
    %v534 = vld [vmem:[#allocation7 + $0xa78] sm:$0xff]
    %v535 = vld [vmem:[#allocation7 + $0xa80] sm:$0xff]
    %v536 = vld [vmem:[#allocation7 + $0xa88] sm:$0xff]
    %v537 = vld [vmem:[#allocation7 + $0xa90] sm:$0xff]
    %v538 = vld [vmem:[#allocation7 + $0xa98] sm:$0xff]
    %v539 = vld [vmem:[#allocation7 + $0xaa0] sm:$0xff]
    %v540 = vld [vmem:[#allocation7 + $0xaa8] sm:$0xff]
    %v541 = vld [vmem:[#allocation7 + $0xab0] sm:$0xff]
    %v542 = vld [vmem:[#allocation7 + $0xab8] sm:$0xff]
    %v543 = vld [vmem:[#allocation7 + $0xac0] sm:$0xff]
    %v544 = vld [vmem:[#allocation7 + $0xac8] sm:$0xff]
    %v545 = vld [vmem:[#allocation7 + $0xad0] sm:$0xff]
    %v546 = vld [vmem:[#allocation7 + $0xad8] sm:$0xff]
    %v547 = vld [vmem:[#allocation7 + $0xae0] sm:$0xff]
    %v548 = vld [vmem:[#allocation7 + $0xae8] sm:$0xff]
    %v549 = vld [vmem:[#allocation7 + $0xaf0] sm:$0xff]
    %v550 = vld [vmem:[#allocation7 + $0xaf8] sm:$0xff]
    %v551 = vld [vmem:[#allocation7 + $0xb00] sm:$0xff]
    %v552 = vld [vmem:[#allocation7 + $0xb08] sm:$0xff]
    %v553 = vld [vmem:[#allocation7 + $0xb10] sm:$0xff]
    %v554 = vld [vmem:[#allocation7 + $0xb18] sm:$0xff]
    %v555 = vld [vmem:[#allocation7 + $0xb20] sm:$0xff]
    %v556 = vld [vmem:[#allocation7 + $0xb28] sm:$0xff]
    %v557 = vld [vmem:[#allocation7 + $0xb30] sm:$0xff]
    %v558 = vld [vmem:[#allocation7 + $0xb38] sm:$0xff]
    %v559 = vld [vmem:[#allocation7 + $0xb40] sm:$0xff]
    %v560 = vld [vmem:[#allocation7 + $0xb48] sm:$0xff]
    %v561 = vld [vmem:[#allocation7 + $0xb50] sm:$0xff]
    %v562 = vld [vmem:[#allocation7 + $0xb58] sm:$0xff]
    %v563 = vld [vmem:[#allocation7 + $0xb60] sm:$0xff]
    %v564 = vld [vmem:[#allocation7 + $0xb68] sm:$0xff]
    %v565 = vld [vmem:[#allocation7 + $0xb70] sm:$0xff]
    %v566 = vld [vmem:[#allocation7 + $0xb78] sm:$0xff]
    %v567 = vld [vmem:[#allocation7 + $0xb80] sm:$0xff]
    %v568 = vld [vmem:[#allocation7 + $0xb88] sm:$0xff]
    %v569 = vld [vmem:[#allocation7 + $0xb90] sm:$0xff]
    %v570 = vld [vmem:[#allocation7 + $0xb98] sm:$0xff]
    %v571 = vld [vmem:[#allocation7 + $0xba0] sm:$0xff]
    %v572 = vld [vmem:[#allocation7 + $0xba8] sm:$0xff]
    %v573 = vld [vmem:[#allocation7 + $0xbb0] sm:$0xff]
    %v574 = vld [vmem:[#allocation7 + $0xbb8] sm:$0xff]
    %v575 = vld [vmem:[#allocation7 + $0xbc0] sm:$0xff]
    %v576 = vld [vmem:[#allocation7 + $0xbc8] sm:$0xff]
    %v577 = vld [vmem:[#allocation7 + $0xbd0] sm:$0xff]
    %v578 = vld [vmem:[#allocation7 + $0xbd8] sm:$0xff]
    %v579 = vld [vmem:[#allocation7 + $0xbe0] sm:$0xff]
    %v580 = vld [vmem:[#allocation7 + $0xbe8] sm:$0xff]
    %v581 = vld [vmem:[#allocation7 + $0xbf0] sm:$0xff]
    %v582 = vld [vmem:[#allocation7 + $0xbf8] sm:$0xff]
    %v583 = vld [vmem:[#allocation7 + $0xc00] sm:$0xff]
    %v584 = vld [vmem:[#allocation7 + $0xc08] sm:$0xff]
    %v585 = vld [vmem:[#allocation7 + $0xc10] sm:$0xff]
    %v586 = vld [vmem:[#allocation7 + $0xc18] sm:$0xff]
    %v587 = vld [vmem:[#allocation7 + $0xc20] sm:$0xff]
    %v588 = vld [vmem:[#allocation7 + $0xc28] sm:$0xff]
    %v589 = vld [vmem:[#allocation7 + $0xc30] sm:$0xff]
    %v590 = vld [vmem:[#allocation7 + $0xc38] sm:$0xff]
    %v591 = vld [vmem:[#allocation7 + $0xc40] sm:$0xff]
    %v592 = vld [vmem:[#allocation7 + $0xc48] sm:$0xff]
    %v593 = vld [vmem:[#allocation7 + $0xc50] sm:$0xff]
    %v594 = vld [vmem:[#allocation7 + $0xc58] sm:$0xff]
    %v595 = vld [vmem:[#allocation7 + $0xc60] sm:$0xff]
    %v596 = vld [vmem:[#allocation7 + $0xc68] sm:$0xff]
    %v597 = vld [vmem:[#allocation7 + $0xc70] sm:$0xff]
    %v598 = vld [vmem:[#allocation7 + $0xc78] sm:$0xff]
    %v599 = vld [vmem:[#allocation7 + $0xc80] sm:$0xff]
    %v600 = vld [vmem:[#allocation7 + $0xc88] sm:$0xff]
    %v601 = vld [vmem:[#allocation7 + $0xc90] sm:$0xff]
    %v602 = vld [vmem:[#allocation7 + $0xc98] sm:$0xff]
    %v603 = vld [vmem:[#allocation7 + $0xca0] sm:$0xff]
    %v604 = vld [vmem:[#allocation7 + $0xca8] sm:$0xff]
    %v605 = vld [vmem:[#allocation7 + $0xcb0] sm:$0xff]
    %v606 = vld [vmem:[#allocation7 + $0xcb8] sm:$0xff]
    %v607 = vld [vmem:[#allocation7 + $0xcc0] sm:$0xff]
    %v608 = vld [vmem:[#allocation7 + $0xcc8] sm:$0xff]
    %v609 = vld [vmem:[#allocation7 + $0xcd0] sm:$0xff]
    %v610 = vld [vmem:[#allocation7 + $0xcd8] sm:$0xff]
    %v611 = vld [vmem:[#allocation7 + $0xce0] sm:$0xff]
    %v612 = vld [vmem:[#allocation7 + $0xce8] sm:$0xff]
    %v613 = vld [vmem:[#allocation7 + $0xcf0] sm:$0xff]
    %v614 = vld [vmem:[#allocation7 + $0xcf8] sm:$0xff]
    %v615 = vld [vmem:[#allocation7 + $0xd00] sm:$0xff]
    %v616 = vld [vmem:[#allocation7 + $0xd08] sm:$0xff]
    %v617 = vld [vmem:[#allocation7 + $0xd10] sm:$0xff]
    %v618 = vld [vmem:[#allocation7 + $0xd18] sm:$0xff]
    %v619 = vld [vmem:[#allocation7 + $0xd20] sm:$0xff]
    %v620 = vld [vmem:[#allocation7 + $0xd28] sm:$0xff]
    %v621 = vld [vmem:[#allocation7 + $0xd30] sm:$0xff]
    %v622 = vld [vmem:[#allocation7 + $0xd38] sm:$0xff]
    %v623 = vld [vmem:[#allocation7 + $0xd40] sm:$0xff]
    %v624 = vld [vmem:[#allocation7 + $0xd48] sm:$0xff]
    %v625 = vld [vmem:[#allocation7 + $0xd50] sm:$0xff]
    %v626 = vld [vmem:[#allocation7 + $0xd58] sm:$0xff]
    %v627 = vld [vmem:[#allocation7 + $0xd60] sm:$0xff]
    %v628 = vld [vmem:[#allocation7 + $0xd68] sm:$0xff]
    %v629 = vld [vmem:[#allocation7 + $0xd70] sm:$0xff]
    %v630 = vld [vmem:[#allocation7 + $0xd78] sm:$0xff]
    %v631 = vld [vmem:[#allocation7 + $0xd80] sm:$0xff]
    %v632 = vld [vmem:[#allocation7 + $0xd88] sm:$0xff]
    %v633 = vld [vmem:[#allocation7 + $0xd90] sm:$0xff]
    %v634 = vld [vmem:[#allocation7 + $0xd98] sm:$0xff]
    %v635 = vld [vmem:[#allocation7 + $0xda0] sm:$0xff]
    %v636 = vld [vmem:[#allocation7 + $0xda8] sm:$0xff]
    %v637 = vld [vmem:[#allocation7 + $0xdb0] sm:$0xff]
    %v638 = vld [vmem:[#allocation7 + $0xdb8] sm:$0xff]
    %v639 = vld [vmem:[#allocation7 + $0xdc0] sm:$0xff]
    %v640 = vld [vmem:[#allocation7 + $0xdc8] sm:$0xff]
    %v641 = vld [vmem:[#allocation7 + $0xdd0] sm:$0xff]
    %v642 = vld [vmem:[#allocation7 + $0xdd8] sm:$0xff]
    %v643 = vld [vmem:[#allocation7 + $0xde0] sm:$0xff]
    %v644 = vld [vmem:[#allocation7 + $0xde8] sm:$0xff]
    %v645 = vld [vmem:[#allocation7 + $0xdf0] sm:$0xff]
    %v646 = vld [vmem:[#allocation7 + $0xdf8] sm:$0xff]
    %v647 = vld [vmem:[#allocation7 + $0xe00] sm:$0xff]
    %v648 = vld [vmem:[#allocation7 + $0xe08] sm:$0xff]
    %v649 = vld [vmem:[#allocation7 + $0xe10] sm:$0xff]
    %v650 = vld [vmem:[#allocation7 + $0xe18] sm:$0xff]
    %v651 = vld [vmem:[#allocation7 + $0xe20] sm:$0xff]
    %v652 = vld [vmem:[#allocation7 + $0xe28] sm:$0xff]
    %v653 = vld [vmem:[#allocation7 + $0xe30] sm:$0xff]
    %v654 = vld [vmem:[#allocation7 + $0xe38] sm:$0xff]
    %v655 = vld [vmem:[#allocation7 + $0xe40] sm:$0xff]
    %v656 = vld [vmem:[#allocation7 + $0xe48] sm:$0xff]
    %v657 = vld [vmem:[#allocation7 + $0xe50] sm:$0xff]
    %v658 = vld [vmem:[#allocation7 + $0xe58] sm:$0xff]
    %v659 = vld [vmem:[#allocation7 + $0xe60] sm:$0xff]
    %v660 = vld [vmem:[#allocation7 + $0xe68] sm:$0xff]
    %v661 = vld [vmem:[#allocation7 + $0xe70] sm:$0xff]
    %v662 = vld [vmem:[#allocation7 + $0xe78] sm:$0xff]
    %v663 = vld [vmem:[#allocation7 + $0xe80] sm:$0xff]
    %v664 = vld [vmem:[#allocation7 + $0xe88] sm:$0xff]
    %v665 = vld [vmem:[#allocation7 + $0xe90] sm:$0xff]
    %v666 = vld [vmem:[#allocation7 + $0xe98] sm:$0xff]
    %v667 = vld [vmem:[#allocation7 + $0xea0] sm:$0xff]
    %v668 = vld [vmem:[#allocation7 + $0xea8] sm:$0xff]
    %v669 = vld [vmem:[#allocation7 + $0xeb0] sm:$0xff]
    %v670 = vld [vmem:[#allocation7 + $0xeb8] sm:$0xff]
    %v671 = vld [vmem:[#allocation7 + $0xec0] sm:$0xff]
    %v672 = vld [vmem:[#allocation7 + $0xec8] sm:$0xff]
    %v673 = vld [vmem:[#allocation7 + $0xed0] sm:$0xff]
    %v674 = vld [vmem:[#allocation7 + $0xed8] sm:$0xff]
    %v675 = vld [vmem:[#allocation7 + $0xee0] sm:$0xff]
    %v676 = vld [vmem:[#allocation7 + $0xee8] sm:$0xff]
    %v677 = vld [vmem:[#allocation7 + $0xef0] sm:$0xff]
    %v678 = vld [vmem:[#allocation7 + $0xef8] sm:$0xff]
    %v679 = vld [vmem:[#allocation7 + $0xf00] sm:$0xff]
    %v680 = vld [vmem:[#allocation7 + $0xf08] sm:$0xff]
    %v681 = vld [vmem:[#allocation7 + $0xf10] sm:$0xff]
    %v682 = vld [vmem:[#allocation7 + $0xf18] sm:$0xff]
    %v683 = vld [vmem:[#allocation7 + $0xf20] sm:$0xff]
    %v684 = vld [vmem:[#allocation7 + $0xf28] sm:$0xff]
    %v685 = vld [vmem:[#allocation7 + $0xf30] sm:$0xff]
    %v686 = vld [vmem:[#allocation7 + $0xf38] sm:$0xff]
    %v687 = vld [vmem:[#allocation7 + $0xf40] sm:$0xff]
    %v688 = vld [vmem:[#allocation7 + $0xf48] sm:$0xff]
    %v689 = vld [vmem:[#allocation7 + $0xf50] sm:$0xff]
    %v690 = vld [vmem:[#allocation7 + $0xf58] sm:$0xff]
    %v691 = vld [vmem:[#allocation7 + $0xf60] sm:$0xff]
    %v692 = vld [vmem:[#allocation7 + $0xf68] sm:$0xff]
    %v693 = vld [vmem:[#allocation7 + $0xf70] sm:$0xff]
    %v694 = vld [vmem:[#allocation7 + $0xf78] sm:$0xff]
    %v695 = vld [vmem:[#allocation7 + $0xf80] sm:$0xff]
    %v696 = vld [vmem:[#allocation7 + $0xf88] sm:$0xff]
    %v697 = vld [vmem:[#allocation7 + $0xf90] sm:$0xff]
    %v698 = vld [vmem:[#allocation7 + $0xf98] sm:$0xff]
    %v699 = vld [vmem:[#allocation7 + $0xfa0] sm:$0xff]
    %v700 = vld [vmem:[#allocation7 + $0xfa8] sm:$0xff]
    %v701 = vld [vmem:[#allocation7 + $0xfb0] sm:$0xff]
    %v702 = vld [vmem:[#allocation7 + $0xfb8] sm:$0xff]
    %v703 = vld [vmem:[#allocation7 + $0xfc0] sm:$0xff]
    %v704 = vld [vmem:[#allocation7 + $0xfc8] sm:$0xff]
    %v705 = vld [vmem:[#allocation7 + $0xfd0] sm:$0xff]
    %v706 = vld [vmem:[#allocation7 + $0xfd8] sm:$0xff]
    %v707 = vld [vmem:[#allocation7 + $0xfe0] sm:$0xff]
    %v708 = vld [vmem:[#allocation7 + $0xfe8] sm:$0xff]
    %v709 = vld [vmem:[#allocation7 + $0xff0] sm:$0xff]
    %v710 = vld [vmem:[#allocation7 + $0xff8] sm:$0xff]
    %v1223 = vunpack.c.l.b16 %v199
    %v1224 = vunpack.c.h.b16 %v199
    %v1225 = vunpack.c.l.b16 %v200
    %v1226 = vunpack.c.h.b16 %v200
    %v1227 = vunpack.c.l.b16 %v201
    %v1228 = vunpack.c.h.b16 %v201
    %v1229 = vunpack.c.l.b16 %v202
    %v1230 = vunpack.c.h.b16 %v202
    %v1231 = vunpack.c.l.b16 %v203
    %v1232 = vunpack.c.h.b16 %v203
    %v1233 = vunpack.c.l.b16 %v204
    %v1234 = vunpack.c.h.b16 %v204
    %v1235 = vunpack.c.l.b16 %v205
    %v1236 = vunpack.c.h.b16 %v205
    %v1237 = vunpack.c.l.b16 %v206
    %v1238 = vunpack.c.h.b16 %v206
    %v1239 = vunpack.c.l.b16 %v207
    %v1240 = vunpack.c.h.b16 %v207
    %v1241 = vunpack.c.l.b16 %v208
    %v1242 = vunpack.c.h.b16 %v208
    %v1243 = vunpack.c.l.b16 %v209
    %v1244 = vunpack.c.h.b16 %v209
    %v1245 = vunpack.c.l.b16 %v210
    %v1246 = vunpack.c.h.b16 %v210
    %v1247 = vunpack.c.l.b16 %v211
    %v1248 = vunpack.c.h.b16 %v211
    %v1249 = vunpack.c.l.b16 %v212
    %v1250 = vunpack.c.h.b16 %v212
    %v1251 = vunpack.c.l.b16 %v213
    %v1252 = vunpack.c.h.b16 %v213
    %v1253 = vunpack.c.l.b16 %v214
    %v1254 = vunpack.c.h.b16 %v214
    %v1255 = vunpack.c.l.b16 %v215
    %v1256 = vunpack.c.h.b16 %v215
    %v1257 = vunpack.c.l.b16 %v216
    %v1258 = vunpack.c.h.b16 %v216
    %v1259 = vunpack.c.l.b16 %v217
    %v1260 = vunpack.c.h.b16 %v217
    %v1261 = vunpack.c.l.b16 %v218
    %v1262 = vunpack.c.h.b16 %v218
    %v1263 = vunpack.c.l.b16 %v219
    %v1264 = vunpack.c.h.b16 %v219
    %v1265 = vunpack.c.l.b16 %v220
    %v1266 = vunpack.c.h.b16 %v220
    %v1267 = vunpack.c.l.b16 %v221
    %v1268 = vunpack.c.h.b16 %v221
    %v1269 = vunpack.c.l.b16 %v222
    %v1270 = vunpack.c.h.b16 %v222
    %v1271 = vunpack.c.l.b16 %v223
    %v1272 = vunpack.c.h.b16 %v223
    %v1273 = vunpack.c.l.b16 %v224
    %v1274 = vunpack.c.h.b16 %v224
    %v1275 = vunpack.c.l.b16 %v225
    %v1276 = vunpack.c.h.b16 %v225
    %v1277 = vunpack.c.l.b16 %v226
    %v1278 = vunpack.c.h.b16 %v226
    %v1279 = vunpack.c.l.b16 %v227
    %v1280 = vunpack.c.h.b16 %v227
    %v1281 = vunpack.c.l.b16 %v228
    %v1282 = vunpack.c.h.b16 %v228
    %v1283 = vunpack.c.l.b16 %v229
    %v1284 = vunpack.c.h.b16 %v229
    %v1285 = vunpack.c.l.b16 %v230
    %v1286 = vunpack.c.h.b16 %v230
    %v1287 = vunpack.c.l.b16 %v231
    %v1288 = vunpack.c.h.b16 %v231
    %v1289 = vunpack.c.l.b16 %v232
    %v1290 = vunpack.c.h.b16 %v232
    %v1291 = vunpack.c.l.b16 %v233
    %v1292 = vunpack.c.h.b16 %v233
    %v1293 = vunpack.c.l.b16 %v234
    %v1294 = vunpack.c.h.b16 %v234
    %v1295 = vunpack.c.l.b16 %v235
    %v1296 = vunpack.c.h.b16 %v235
    %v1297 = vunpack.c.l.b16 %v236
    %v1298 = vunpack.c.h.b16 %v236
    %v1299 = vunpack.c.l.b16 %v237
    %v1300 = vunpack.c.h.b16 %v237
    %v1301 = vunpack.c.l.b16 %v238
    %v1302 = vunpack.c.h.b16 %v238
    %v1303 = vunpack.c.l.b16 %v239
    %v1304 = vunpack.c.h.b16 %v239
    %v1305 = vunpack.c.l.b16 %v240
    %v1306 = vunpack.c.h.b16 %v240
    %v1307 = vunpack.c.l.b16 %v241
    %v1308 = vunpack.c.h.b16 %v241
    %v1309 = vunpack.c.l.b16 %v242
    %v1310 = vunpack.c.h.b16 %v242
    %v1311 = vunpack.c.l.b16 %v243
    %v1312 = vunpack.c.h.b16 %v243
    %v1313 = vunpack.c.l.b16 %v244
    %v1314 = vunpack.c.h.b16 %v244
    %v1315 = vunpack.c.l.b16 %v245
    %v1316 = vunpack.c.h.b16 %v245
    %v1317 = vunpack.c.l.b16 %v246
    %v1318 = vunpack.c.h.b16 %v246
    %v1319 = vunpack.c.l.b16 %v247
    %v1320 = vunpack.c.h.b16 %v247
    %v1321 = vunpack.c.l.b16 %v248
    %v1322 = vunpack.c.h.b16 %v248
    %v1323 = vunpack.c.l.b16 %v249
    %v1324 = vunpack.c.h.b16 %v249
    %v1325 = vunpack.c.l.b16 %v250
    %v1326 = vunpack.c.h.b16 %v250
    %v1327 = vunpack.c.l.b16 %v251
    %v1328 = vunpack.c.h.b16 %v251
    %v1329 = vunpack.c.l.b16 %v252
    %v1330 = vunpack.c.h.b16 %v252
    %v1331 = vunpack.c.l.b16 %v253
    %v1332 = vunpack.c.h.b16 %v253
    %v1333 = vunpack.c.l.b16 %v254
    %v1334 = vunpack.c.h.b16 %v254
    %v1335 = vunpack.c.l.b16 %v255
    %v1336 = vunpack.c.h.b16 %v255
    %v1337 = vunpack.c.l.b16 %v256
    %v1338 = vunpack.c.h.b16 %v256
    %v1339 = vunpack.c.l.b16 %v257
    %v1340 = vunpack.c.h.b16 %v257
    %v1341 = vunpack.c.l.b16 %v258
    %v1342 = vunpack.c.h.b16 %v258
    %v1343 = vunpack.c.l.b16 %v259
    %v1344 = vunpack.c.h.b16 %v259
    %v1345 = vunpack.c.l.b16 %v260
    %v1346 = vunpack.c.h.b16 %v260
    %v1347 = vunpack.c.l.b16 %v261
    %v1348 = vunpack.c.h.b16 %v261
    %v1349 = vunpack.c.l.b16 %v262
    %v1350 = vunpack.c.h.b16 %v262
    %v1351 = vunpack.c.l.b16 %v263
    %v1352 = vunpack.c.h.b16 %v263
    %v1353 = vunpack.c.l.b16 %v264
    %v1354 = vunpack.c.h.b16 %v264
    %v1355 = vunpack.c.l.b16 %v265
    %v1356 = vunpack.c.h.b16 %v265
    %v1357 = vunpack.c.l.b16 %v266
    %v1358 = vunpack.c.h.b16 %v266
    %v1359 = vunpack.c.l.b16 %v267
    %v1360 = vunpack.c.h.b16 %v267
    %v1361 = vunpack.c.l.b16 %v268
    %v1362 = vunpack.c.h.b16 %v268
    %v1363 = vunpack.c.l.b16 %v269
    %v1364 = vunpack.c.h.b16 %v269
    %v1365 = vunpack.c.l.b16 %v270
    %v1366 = vunpack.c.h.b16 %v270
    %v1367 = vunpack.c.l.b16 %v271
    %v1368 = vunpack.c.h.b16 %v271
    %v1369 = vunpack.c.l.b16 %v272
    %v1370 = vunpack.c.h.b16 %v272
    %v1371 = vunpack.c.l.b16 %v273
    %v1372 = vunpack.c.h.b16 %v273
    %v1373 = vunpack.c.l.b16 %v274
    %v1374 = vunpack.c.h.b16 %v274
    %v1375 = vunpack.c.l.b16 %v275
    %v1376 = vunpack.c.h.b16 %v275
    %v1377 = vunpack.c.l.b16 %v276
    %v1378 = vunpack.c.h.b16 %v276
    %v1379 = vunpack.c.l.b16 %v277
    %v1380 = vunpack.c.h.b16 %v277
    %v1381 = vunpack.c.l.b16 %v278
    %v1382 = vunpack.c.h.b16 %v278
    %v1383 = vunpack.c.l.b16 %v279
    %v1384 = vunpack.c.h.b16 %v279
    %v1385 = vunpack.c.l.b16 %v280
    %v1386 = vunpack.c.h.b16 %v280
    %v1387 = vunpack.c.l.b16 %v281
    %v1388 = vunpack.c.h.b16 %v281
    %v1389 = vunpack.c.l.b16 %v282
    %v1390 = vunpack.c.h.b16 %v282
    %v1391 = vunpack.c.l.b16 %v283
    %v1392 = vunpack.c.h.b16 %v283
    %v1393 = vunpack.c.l.b16 %v284
    %v1394 = vunpack.c.h.b16 %v284
    %v1395 = vunpack.c.l.b16 %v285
    %v1396 = vunpack.c.h.b16 %v285
    %v1397 = vunpack.c.l.b16 %v286
    %v1398 = vunpack.c.h.b16 %v286
    %v1399 = vunpack.c.l.b16 %v287
    %v1400 = vunpack.c.h.b16 %v287
    %v1401 = vunpack.c.l.b16 %v288
    %v1402 = vunpack.c.h.b16 %v288
    %v1403 = vunpack.c.l.b16 %v289
    %v1404 = vunpack.c.h.b16 %v289
    %v1405 = vunpack.c.l.b16 %v290
    %v1406 = vunpack.c.h.b16 %v290
    %v1407 = vunpack.c.l.b16 %v291
    %v1408 = vunpack.c.h.b16 %v291
    %v1409 = vunpack.c.l.b16 %v292
    %v1410 = vunpack.c.h.b16 %v292
    %v1411 = vunpack.c.l.b16 %v293
    %v1412 = vunpack.c.h.b16 %v293
    %v1413 = vunpack.c.l.b16 %v294
    %v1414 = vunpack.c.h.b16 %v294
    %v1415 = vunpack.c.l.b16 %v295
    %v1416 = vunpack.c.h.b16 %v295
    %v1417 = vunpack.c.l.b16 %v296
    %v1418 = vunpack.c.h.b16 %v296
    %v1419 = vunpack.c.l.b16 %v297
    %v1420 = vunpack.c.h.b16 %v297
    %v1421 = vunpack.c.l.b16 %v298
    %v1422 = vunpack.c.h.b16 %v298
    %v1423 = vunpack.c.l.b16 %v299
    %v1424 = vunpack.c.h.b16 %v299
    %v1425 = vunpack.c.l.b16 %v300
    %v1426 = vunpack.c.h.b16 %v300
    %v1427 = vunpack.c.l.b16 %v301
    %v1428 = vunpack.c.h.b16 %v301
    %v1429 = vunpack.c.l.b16 %v302
    %v1430 = vunpack.c.h.b16 %v302
    %v1431 = vunpack.c.l.b16 %v303
    %v1432 = vunpack.c.h.b16 %v303
    %v1433 = vunpack.c.l.b16 %v304
    %v1434 = vunpack.c.h.b16 %v304
    %v1435 = vunpack.c.l.b16 %v305
    %v1436 = vunpack.c.h.b16 %v305
    %v1437 = vunpack.c.l.b16 %v306
    %v1438 = vunpack.c.h.b16 %v306
    %v1439 = vunpack.c.l.b16 %v307
    %v1440 = vunpack.c.h.b16 %v307
    %v1441 = vunpack.c.l.b16 %v308
    %v1442 = vunpack.c.h.b16 %v308
    %v1443 = vunpack.c.l.b16 %v309
    %v1444 = vunpack.c.h.b16 %v309
    %v1445 = vunpack.c.l.b16 %v310
    %v1446 = vunpack.c.h.b16 %v310
    %v1447 = vunpack.c.l.b16 %v311
    %v1448 = vunpack.c.h.b16 %v311
    %v1449 = vunpack.c.l.b16 %v312
    %v1450 = vunpack.c.h.b16 %v312
    %v1451 = vunpack.c.l.b16 %v313
    %v1452 = vunpack.c.h.b16 %v313
    %v1453 = vunpack.c.l.b16 %v314
    %v1454 = vunpack.c.h.b16 %v314
    %v1455 = vunpack.c.l.b16 %v315
    %v1456 = vunpack.c.h.b16 %v315
    %v1457 = vunpack.c.l.b16 %v316
    %v1458 = vunpack.c.h.b16 %v316
    %v1459 = vunpack.c.l.b16 %v317
    %v1460 = vunpack.c.h.b16 %v317
    %v1461 = vunpack.c.l.b16 %v318
    %v1462 = vunpack.c.h.b16 %v318
    %v1463 = vunpack.c.l.b16 %v319
    %v1464 = vunpack.c.h.b16 %v319
    %v1465 = vunpack.c.l.b16 %v320
    %v1466 = vunpack.c.h.b16 %v320
    %v1467 = vunpack.c.l.b16 %v321
    %v1468 = vunpack.c.h.b16 %v321
    %v1469 = vunpack.c.l.b16 %v322
    %v1470 = vunpack.c.h.b16 %v322
    %v1471 = vunpack.c.l.b16 %v323
    %v1472 = vunpack.c.h.b16 %v323
    %v1473 = vunpack.c.l.b16 %v324
    %v1474 = vunpack.c.h.b16 %v324
    %v1475 = vunpack.c.l.b16 %v325
    %v1476 = vunpack.c.h.b16 %v325
    %v1477 = vunpack.c.l.b16 %v326
    %v1478 = vunpack.c.h.b16 %v326
    %v1479 = vunpack.c.l.b16 %v327
    %v1480 = vunpack.c.h.b16 %v327
    %v1481 = vunpack.c.l.b16 %v328
    %v1482 = vunpack.c.h.b16 %v328
    %v1483 = vunpack.c.l.b16 %v329
    %v1484 = vunpack.c.h.b16 %v329
    %v1485 = vunpack.c.l.b16 %v330
    %v1486 = vunpack.c.h.b16 %v330
    %v1487 = vunpack.c.l.b16 %v331
    %v1488 = vunpack.c.h.b16 %v331
    %v1489 = vunpack.c.l.b16 %v332
    %v1490 = vunpack.c.h.b16 %v332
    %v1491 = vunpack.c.l.b16 %v333
    %v1492 = vunpack.c.h.b16 %v333
    %v1493 = vunpack.c.l.b16 %v334
    %v1494 = vunpack.c.h.b16 %v334
    %v1495 = vunpack.c.l.b16 %v335
    %v1496 = vunpack.c.h.b16 %v335
    %v1497 = vunpack.c.l.b16 %v336
    %v1498 = vunpack.c.h.b16 %v336
    %v1499 = vunpack.c.l.b16 %v337
    %v1500 = vunpack.c.h.b16 %v337
    %v1501 = vunpack.c.l.b16 %v338
    %v1502 = vunpack.c.h.b16 %v338
    %v1503 = vunpack.c.l.b16 %v339
    %v1504 = vunpack.c.h.b16 %v339
    %v1505 = vunpack.c.l.b16 %v340
    %v1506 = vunpack.c.h.b16 %v340
    %v1507 = vunpack.c.l.b16 %v341
    %v1508 = vunpack.c.h.b16 %v341
    %v1509 = vunpack.c.l.b16 %v342
    %v1510 = vunpack.c.h.b16 %v342
    %v1511 = vunpack.c.l.b16 %v343
    %v1512 = vunpack.c.h.b16 %v343
    %v1513 = vunpack.c.l.b16 %v344
    %v1514 = vunpack.c.h.b16 %v344
    %v1515 = vunpack.c.l.b16 %v345
    %v1516 = vunpack.c.h.b16 %v345
    %v1517 = vunpack.c.l.b16 %v346
    %v1518 = vunpack.c.h.b16 %v346
    %v1519 = vunpack.c.l.b16 %v347
    %v1520 = vunpack.c.h.b16 %v347
    %v1521 = vunpack.c.l.b16 %v348
    %v1522 = vunpack.c.h.b16 %v348
    %v1523 = vunpack.c.l.b16 %v349
    %v1524 = vunpack.c.h.b16 %v349
    %v1525 = vunpack.c.l.b16 %v350
    %v1526 = vunpack.c.h.b16 %v350
    %v1527 = vunpack.c.l.b16 %v351
    %v1528 = vunpack.c.h.b16 %v351
    %v1529 = vunpack.c.l.b16 %v352
    %v1530 = vunpack.c.h.b16 %v352
    %v1531 = vunpack.c.l.b16 %v353
    %v1532 = vunpack.c.h.b16 %v353
    %v1533 = vunpack.c.l.b16 %v354
    %v1534 = vunpack.c.h.b16 %v354
    %v1535 = vunpack.c.l.b16 %v355
    %v1536 = vunpack.c.h.b16 %v355
    %v1537 = vunpack.c.l.b16 %v356
    %v1538 = vunpack.c.h.b16 %v356
    %v1539 = vunpack.c.l.b16 %v357
    %v1540 = vunpack.c.h.b16 %v357
    %v1541 = vunpack.c.l.b16 %v358
    %v1542 = vunpack.c.h.b16 %v358
    %v1543 = vunpack.c.l.b16 %v359
    %v1544 = vunpack.c.h.b16 %v359
    %v1545 = vunpack.c.l.b16 %v360
    %v1546 = vunpack.c.h.b16 %v360
    %v1547 = vunpack.c.l.b16 %v361
    %v1548 = vunpack.c.h.b16 %v361
    %v1549 = vunpack.c.l.b16 %v362
    %v1550 = vunpack.c.h.b16 %v362
    %v1551 = vunpack.c.l.b16 %v363
    %v1552 = vunpack.c.h.b16 %v363
    %v1553 = vunpack.c.l.b16 %v364
    %v1554 = vunpack.c.h.b16 %v364
    %v1555 = vunpack.c.l.b16 %v365
    %v1556 = vunpack.c.h.b16 %v365
    %v1557 = vunpack.c.l.b16 %v366
    %v1558 = vunpack.c.h.b16 %v366
    %v1559 = vunpack.c.l.b16 %v367
    %v1560 = vunpack.c.h.b16 %v367
    %v1561 = vunpack.c.l.b16 %v368
    %v1562 = vunpack.c.h.b16 %v368
    %v1563 = vunpack.c.l.b16 %v369
    %v1564 = vunpack.c.h.b16 %v369
    %v1565 = vunpack.c.l.b16 %v370
    %v1566 = vunpack.c.h.b16 %v370
    %v1567 = vunpack.c.l.b16 %v371
    %v1568 = vunpack.c.h.b16 %v371
    %v1569 = vunpack.c.l.b16 %v372
    %v1570 = vunpack.c.h.b16 %v372
    %v1571 = vunpack.c.l.b16 %v373
    %v1572 = vunpack.c.h.b16 %v373
    %v1573 = vunpack.c.l.b16 %v374
    %v1574 = vunpack.c.h.b16 %v374
    %v1575 = vunpack.c.l.b16 %v375
    %v1576 = vunpack.c.h.b16 %v375
    %v1577 = vunpack.c.l.b16 %v376
    %v1578 = vunpack.c.h.b16 %v376
    %v1579 = vunpack.c.l.b16 %v377
    %v1580 = vunpack.c.h.b16 %v377
    %v1581 = vunpack.c.l.b16 %v378
    %v1582 = vunpack.c.h.b16 %v378
    %v1583 = vunpack.c.l.b16 %v379
    %v1584 = vunpack.c.h.b16 %v379
    %v1585 = vunpack.c.l.b16 %v380
    %v1586 = vunpack.c.h.b16 %v380
    %v1587 = vunpack.c.l.b16 %v381
    %v1588 = vunpack.c.h.b16 %v381
    %v1589 = vunpack.c.l.b16 %v382
    %v1590 = vunpack.c.h.b16 %v382
    %v1591 = vunpack.c.l.b16 %v383
    %v1592 = vunpack.c.h.b16 %v383
    %v1593 = vunpack.c.l.b16 %v384
    %v1594 = vunpack.c.h.b16 %v384
    %v1595 = vunpack.c.l.b16 %v385
    %v1596 = vunpack.c.h.b16 %v385
    %v1597 = vunpack.c.l.b16 %v386
    %v1598 = vunpack.c.h.b16 %v386
    %v1599 = vunpack.c.l.b16 %v387
    %v1600 = vunpack.c.h.b16 %v387
    %v1601 = vunpack.c.l.b16 %v388
    %v1602 = vunpack.c.h.b16 %v388
    %v1603 = vunpack.c.l.b16 %v389
    %v1604 = vunpack.c.h.b16 %v389
    %v1605 = vunpack.c.l.b16 %v390
    %v1606 = vunpack.c.h.b16 %v390
    %v1607 = vunpack.c.l.b16 %v391
    %v1608 = vunpack.c.h.b16 %v391
    %v1609 = vunpack.c.l.b16 %v392
    %v1610 = vunpack.c.h.b16 %v392
    %v1611 = vunpack.c.l.b16 %v393
    %v1612 = vunpack.c.h.b16 %v393
    %v1613 = vunpack.c.l.b16 %v394
    %v1614 = vunpack.c.h.b16 %v394
    %v1615 = vunpack.c.l.b16 %v395
    %v1616 = vunpack.c.h.b16 %v395
    %v1617 = vunpack.c.l.b16 %v396
    %v1618 = vunpack.c.h.b16 %v396
    %v1619 = vunpack.c.l.b16 %v397
    %v1620 = vunpack.c.h.b16 %v397
    %v1621 = vunpack.c.l.b16 %v398
    %v1622 = vunpack.c.h.b16 %v398
    %v1623 = vunpack.c.l.b16 %v399
    %v1624 = vunpack.c.h.b16 %v399
    %v1625 = vunpack.c.l.b16 %v400
    %v1626 = vunpack.c.h.b16 %v400
    %v1627 = vunpack.c.l.b16 %v401
    %v1628 = vunpack.c.h.b16 %v401
    %v1629 = vunpack.c.l.b16 %v402
    %v1630 = vunpack.c.h.b16 %v402
    %v1631 = vunpack.c.l.b16 %v403
    %v1632 = vunpack.c.h.b16 %v403
    %v1633 = vunpack.c.l.b16 %v404
    %v1634 = vunpack.c.h.b16 %v404
    %v1635 = vunpack.c.l.b16 %v405
    %v1636 = vunpack.c.h.b16 %v405
    %v1637 = vunpack.c.l.b16 %v406
    %v1638 = vunpack.c.h.b16 %v406
    %v1639 = vunpack.c.l.b16 %v407
    %v1640 = vunpack.c.h.b16 %v407
    %v1641 = vunpack.c.l.b16 %v408
    %v1642 = vunpack.c.h.b16 %v408
    %v1643 = vunpack.c.l.b16 %v409
    %v1644 = vunpack.c.h.b16 %v409
    %v1645 = vunpack.c.l.b16 %v410
    %v1646 = vunpack.c.h.b16 %v410
    %v1647 = vunpack.c.l.b16 %v411
    %v1648 = vunpack.c.h.b16 %v411
    %v1649 = vunpack.c.l.b16 %v412
    %v1650 = vunpack.c.h.b16 %v412
    %v1651 = vunpack.c.l.b16 %v413
    %v1652 = vunpack.c.h.b16 %v413
    %v1653 = vunpack.c.l.b16 %v414
    %v1654 = vunpack.c.h.b16 %v414
    %v1655 = vunpack.c.l.b16 %v415
    %v1656 = vunpack.c.h.b16 %v415
    %v1657 = vunpack.c.l.b16 %v416
    %v1658 = vunpack.c.h.b16 %v416
    %v1659 = vunpack.c.l.b16 %v417
    %v1660 = vunpack.c.h.b16 %v417
    %v1661 = vunpack.c.l.b16 %v418
    %v1662 = vunpack.c.h.b16 %v418
    %v1663 = vunpack.c.l.b16 %v419
    %v1664 = vunpack.c.h.b16 %v419
    %v1665 = vunpack.c.l.b16 %v420
    %v1666 = vunpack.c.h.b16 %v420
    %v1667 = vunpack.c.l.b16 %v421
    %v1668 = vunpack.c.h.b16 %v421
    %v1669 = vunpack.c.l.b16 %v422
    %v1670 = vunpack.c.h.b16 %v422
    %v1671 = vunpack.c.l.b16 %v423
    %v1672 = vunpack.c.h.b16 %v423
    %v1673 = vunpack.c.l.b16 %v424
    %v1674 = vunpack.c.h.b16 %v424
    %v1675 = vunpack.c.l.b16 %v425
    %v1676 = vunpack.c.h.b16 %v425
    %v1677 = vunpack.c.l.b16 %v426
    %v1678 = vunpack.c.h.b16 %v426
    %v1679 = vunpack.c.l.b16 %v427
    %v1680 = vunpack.c.h.b16 %v427
    %v1681 = vunpack.c.l.b16 %v428
    %v1682 = vunpack.c.h.b16 %v428
    %v1683 = vunpack.c.l.b16 %v429
    %v1684 = vunpack.c.h.b16 %v429
    %v1685 = vunpack.c.l.b16 %v430
    %v1686 = vunpack.c.h.b16 %v430
    %v1687 = vunpack.c.l.b16 %v431
    %v1688 = vunpack.c.h.b16 %v431
    %v1689 = vunpack.c.l.b16 %v432
    %v1690 = vunpack.c.h.b16 %v432
    %v1691 = vunpack.c.l.b16 %v433
    %v1692 = vunpack.c.h.b16 %v433
    %v1693 = vunpack.c.l.b16 %v434
    %v1694 = vunpack.c.h.b16 %v434
    %v1695 = vunpack.c.l.b16 %v435
    %v1696 = vunpack.c.h.b16 %v435
    %v1697 = vunpack.c.l.b16 %v436
    %v1698 = vunpack.c.h.b16 %v436
    %v1699 = vunpack.c.l.b16 %v437
    %v1700 = vunpack.c.h.b16 %v437
    %v1701 = vunpack.c.l.b16 %v438
    %v1702 = vunpack.c.h.b16 %v438
    %v1703 = vunpack.c.l.b16 %v439
    %v1704 = vunpack.c.h.b16 %v439
    %v1705 = vunpack.c.l.b16 %v440
    %v1706 = vunpack.c.h.b16 %v440
    %v1707 = vunpack.c.l.b16 %v441
    %v1708 = vunpack.c.h.b16 %v441
    %v1709 = vunpack.c.l.b16 %v442
    %v1710 = vunpack.c.h.b16 %v442
    %v1711 = vunpack.c.l.b16 %v443
    %v1712 = vunpack.c.h.b16 %v443
    %v1713 = vunpack.c.l.b16 %v444
    %v1714 = vunpack.c.h.b16 %v444
    %v1715 = vunpack.c.l.b16 %v445
    %v1716 = vunpack.c.h.b16 %v445
    %v1717 = vunpack.c.l.b16 %v446
    %v1718 = vunpack.c.h.b16 %v446
    %v1719 = vunpack.c.l.b16 %v447
    %v1720 = vunpack.c.h.b16 %v447
    %v1721 = vunpack.c.l.b16 %v448
    %v1722 = vunpack.c.h.b16 %v448
    %v1723 = vunpack.c.l.b16 %v449
    %v1724 = vunpack.c.h.b16 %v449
    %v1725 = vunpack.c.l.b16 %v450
    %v1726 = vunpack.c.h.b16 %v450
    %v1727 = vunpack.c.l.b16 %v451
    %v1728 = vunpack.c.h.b16 %v451
    %v1729 = vunpack.c.l.b16 %v452
    %v1730 = vunpack.c.h.b16 %v452
    %v1731 = vunpack.c.l.b16 %v453
    %v1732 = vunpack.c.h.b16 %v453
    %v1733 = vunpack.c.l.b16 %v454
    %v1734 = vunpack.c.h.b16 %v454
    %v1735 = vunpack.c.l.b16 %v455
    %v1736 = vunpack.c.h.b16 %v455
    %v1737 = vunpack.c.l.b16 %v456
    %v1738 = vunpack.c.h.b16 %v456
    %v1739 = vunpack.c.l.b16 %v457
    %v1740 = vunpack.c.h.b16 %v457
    %v1741 = vunpack.c.l.b16 %v458
    %v1742 = vunpack.c.h.b16 %v458
    %v1743 = vunpack.c.l.b16 %v459
    %v1744 = vunpack.c.h.b16 %v459
    %v1745 = vunpack.c.l.b16 %v460
    %v1746 = vunpack.c.h.b16 %v460
    %v1747 = vunpack.c.l.b16 %v461
    %v1748 = vunpack.c.h.b16 %v461
    %v1749 = vunpack.c.l.b16 %v462
    %v1750 = vunpack.c.h.b16 %v462
    %v1751 = vunpack.c.l.b16 %v463
    %v1752 = vunpack.c.h.b16 %v463
    %v1753 = vunpack.c.l.b16 %v464
    %v1754 = vunpack.c.h.b16 %v464
    %v1755 = vunpack.c.l.b16 %v465
    %v1756 = vunpack.c.h.b16 %v465
    %v1757 = vunpack.c.l.b16 %v466
    %v1758 = vunpack.c.h.b16 %v466
    %v1759 = vunpack.c.l.b16 %v467
    %v1760 = vunpack.c.h.b16 %v467
    %v1761 = vunpack.c.l.b16 %v468
    %v1762 = vunpack.c.h.b16 %v468
    %v1763 = vunpack.c.l.b16 %v469
    %v1764 = vunpack.c.h.b16 %v469
    %v1765 = vunpack.c.l.b16 %v470
    %v1766 = vunpack.c.h.b16 %v470
    %v1767 = vunpack.c.l.b16 %v471
    %v1768 = vunpack.c.h.b16 %v471
    %v1769 = vunpack.c.l.b16 %v472
    %v1770 = vunpack.c.h.b16 %v472
    %v1771 = vunpack.c.l.b16 %v473
    %v1772 = vunpack.c.h.b16 %v473
    %v1773 = vunpack.c.l.b16 %v474
    %v1774 = vunpack.c.h.b16 %v474
    %v1775 = vunpack.c.l.b16 %v475
    %v1776 = vunpack.c.h.b16 %v475
    %v1777 = vunpack.c.l.b16 %v476
    %v1778 = vunpack.c.h.b16 %v476
    %v1779 = vunpack.c.l.b16 %v477
    %v1780 = vunpack.c.h.b16 %v477
    %v1781 = vunpack.c.l.b16 %v478
    %v1782 = vunpack.c.h.b16 %v478
    %v1783 = vunpack.c.l.b16 %v479
    %v1784 = vunpack.c.h.b16 %v479
    %v1785 = vunpack.c.l.b16 %v480
    %v1786 = vunpack.c.h.b16 %v480
    %v1787 = vunpack.c.l.b16 %v481
    %v1788 = vunpack.c.h.b16 %v481
    %v1789 = vunpack.c.l.b16 %v482
    %v1790 = vunpack.c.h.b16 %v482
    %v1791 = vunpack.c.l.b16 %v483
    %v1792 = vunpack.c.h.b16 %v483
    %v1793 = vunpack.c.l.b16 %v484
    %v1794 = vunpack.c.h.b16 %v484
    %v1795 = vunpack.c.l.b16 %v485
    %v1796 = vunpack.c.h.b16 %v485
    %v1797 = vunpack.c.l.b16 %v486
    %v1798 = vunpack.c.h.b16 %v486
    %v1799 = vunpack.c.l.b16 %v487
    %v1800 = vunpack.c.h.b16 %v487
    %v1801 = vunpack.c.l.b16 %v488
    %v1802 = vunpack.c.h.b16 %v488
    %v1803 = vunpack.c.l.b16 %v489
    %v1804 = vunpack.c.h.b16 %v489
    %v1805 = vunpack.c.l.b16 %v490
    %v1806 = vunpack.c.h.b16 %v490
    %v1807 = vunpack.c.l.b16 %v491
    %v1808 = vunpack.c.h.b16 %v491
    %v1809 = vunpack.c.l.b16 %v492
    %v1810 = vunpack.c.h.b16 %v492
    %v1811 = vunpack.c.l.b16 %v493
    %v1812 = vunpack.c.h.b16 %v493
    %v1813 = vunpack.c.l.b16 %v494
    %v1814 = vunpack.c.h.b16 %v494
    %v1815 = vunpack.c.l.b16 %v495
    %v1816 = vunpack.c.h.b16 %v495
    %v1817 = vunpack.c.l.b16 %v496
    %v1818 = vunpack.c.h.b16 %v496
    %v1819 = vunpack.c.l.b16 %v497
    %v1820 = vunpack.c.h.b16 %v497
    %v1821 = vunpack.c.l.b16 %v498
    %v1822 = vunpack.c.h.b16 %v498
    %v1823 = vunpack.c.l.b16 %v499
    %v1824 = vunpack.c.h.b16 %v499
    %v1825 = vunpack.c.l.b16 %v500
    %v1826 = vunpack.c.h.b16 %v500
    %v1827 = vunpack.c.l.b16 %v501
    %v1828 = vunpack.c.h.b16 %v501
    %v1829 = vunpack.c.l.b16 %v502
    %v1830 = vunpack.c.h.b16 %v502
    %v1831 = vunpack.c.l.b16 %v503
    %v1832 = vunpack.c.h.b16 %v503
    %v1833 = vunpack.c.l.b16 %v504
    %v1834 = vunpack.c.h.b16 %v504
    %v1835 = vunpack.c.l.b16 %v505
    %v1836 = vunpack.c.h.b16 %v505
    %v1837 = vunpack.c.l.b16 %v506
    %v1838 = vunpack.c.h.b16 %v506
    %v1839 = vunpack.c.l.b16 %v507
    %v1840 = vunpack.c.h.b16 %v507
    %v1841 = vunpack.c.l.b16 %v508
    %v1842 = vunpack.c.h.b16 %v508
    %v1843 = vunpack.c.l.b16 %v509
    %v1844 = vunpack.c.h.b16 %v509
    %v1845 = vunpack.c.l.b16 %v510
    %v1846 = vunpack.c.h.b16 %v510
    %v1847 = vunpack.c.l.b16 %v511
    %v1848 = vunpack.c.h.b16 %v511
    %v1849 = vunpack.c.l.b16 %v512
    %v1850 = vunpack.c.h.b16 %v512
    %v1851 = vunpack.c.l.b16 %v513
    %v1852 = vunpack.c.h.b16 %v513
    %v1853 = vunpack.c.l.b16 %v514
    %v1854 = vunpack.c.h.b16 %v514
    %v1855 = vunpack.c.l.b16 %v515
    %v1856 = vunpack.c.h.b16 %v515
    %v1857 = vunpack.c.l.b16 %v516
    %v1858 = vunpack.c.h.b16 %v516
    %v1859 = vunpack.c.l.b16 %v517
    %v1860 = vunpack.c.h.b16 %v517
    %v1861 = vunpack.c.l.b16 %v518
    %v1862 = vunpack.c.h.b16 %v518
    %v1863 = vunpack.c.l.b16 %v519
    %v1864 = vunpack.c.h.b16 %v519
    %v1865 = vunpack.c.l.b16 %v520
    %v1866 = vunpack.c.h.b16 %v520
    %v1867 = vunpack.c.l.b16 %v521
    %v1868 = vunpack.c.h.b16 %v521
    %v1869 = vunpack.c.l.b16 %v522
    %v1870 = vunpack.c.h.b16 %v522
    %v1871 = vunpack.c.l.b16 %v523
    %v1872 = vunpack.c.h.b16 %v523
    %v1873 = vunpack.c.l.b16 %v524
    %v1874 = vunpack.c.h.b16 %v524
    %v1875 = vunpack.c.l.b16 %v525
    %v1876 = vunpack.c.h.b16 %v525
    %v1877 = vunpack.c.l.b16 %v526
    %v1878 = vunpack.c.h.b16 %v526
    %v1879 = vunpack.c.l.b16 %v527
    %v1880 = vunpack.c.h.b16 %v527
    %v1881 = vunpack.c.l.b16 %v528
    %v1882 = vunpack.c.h.b16 %v528
    %v1883 = vunpack.c.l.b16 %v529
    %v1884 = vunpack.c.h.b16 %v529
    %v1885 = vunpack.c.l.b16 %v530
    %v1886 = vunpack.c.h.b16 %v530
    %v1887 = vunpack.c.l.b16 %v531
    %v1888 = vunpack.c.h.b16 %v531
    %v1889 = vunpack.c.l.b16 %v532
    %v1890 = vunpack.c.h.b16 %v532
    %v1891 = vunpack.c.l.b16 %v533
    %v1892 = vunpack.c.h.b16 %v533
    %v1893 = vunpack.c.l.b16 %v534
    %v1894 = vunpack.c.h.b16 %v534
    %v1895 = vunpack.c.l.b16 %v535
    %v1896 = vunpack.c.h.b16 %v535
    %v1897 = vunpack.c.l.b16 %v536
    %v1898 = vunpack.c.h.b16 %v536
    %v1899 = vunpack.c.l.b16 %v537
    %v1900 = vunpack.c.h.b16 %v537
    %v1901 = vunpack.c.l.b16 %v538
    %v1902 = vunpack.c.h.b16 %v538
    %v1903 = vunpack.c.l.b16 %v539
    %v1904 = vunpack.c.h.b16 %v539
    %v1905 = vunpack.c.l.b16 %v540
    %v1906 = vunpack.c.h.b16 %v540
    %v1907 = vunpack.c.l.b16 %v541
    %v1908 = vunpack.c.h.b16 %v541
    %v1909 = vunpack.c.l.b16 %v542
    %v1910 = vunpack.c.h.b16 %v542
    %v1911 = vunpack.c.l.b16 %v543
    %v1912 = vunpack.c.h.b16 %v543
    %v1913 = vunpack.c.l.b16 %v544
    %v1914 = vunpack.c.h.b16 %v544
    %v1915 = vunpack.c.l.b16 %v545
    %v1916 = vunpack.c.h.b16 %v545
    %v1917 = vunpack.c.l.b16 %v546
    %v1918 = vunpack.c.h.b16 %v546
    %v1919 = vunpack.c.l.b16 %v547
    %v1920 = vunpack.c.h.b16 %v547
    %v1921 = vunpack.c.l.b16 %v548
    %v1922 = vunpack.c.h.b16 %v548
    %v1923 = vunpack.c.l.b16 %v549
    %v1924 = vunpack.c.h.b16 %v549
    %v1925 = vunpack.c.l.b16 %v550
    %v1926 = vunpack.c.h.b16 %v550
    %v1927 = vunpack.c.l.b16 %v551
    %v1928 = vunpack.c.h.b16 %v551
    %v1929 = vunpack.c.l.b16 %v552
    %v1930 = vunpack.c.h.b16 %v552
    %v1931 = vunpack.c.l.b16 %v553
    %v1932 = vunpack.c.h.b16 %v553
    %v1933 = vunpack.c.l.b16 %v554
    %v1934 = vunpack.c.h.b16 %v554
    %v1935 = vunpack.c.l.b16 %v555
    %v1936 = vunpack.c.h.b16 %v555
    %v1937 = vunpack.c.l.b16 %v556
    %v1938 = vunpack.c.h.b16 %v556
    %v1939 = vunpack.c.l.b16 %v557
    %v1940 = vunpack.c.h.b16 %v557
    %v1941 = vunpack.c.l.b16 %v558
    %v1942 = vunpack.c.h.b16 %v558
    %v1943 = vunpack.c.l.b16 %v559
    %v1944 = vunpack.c.h.b16 %v559
    %v1945 = vunpack.c.l.b16 %v560
    %v1946 = vunpack.c.h.b16 %v560
    %v1947 = vunpack.c.l.b16 %v561
    %v1948 = vunpack.c.h.b16 %v561
    %v1949 = vunpack.c.l.b16 %v562
    %v1950 = vunpack.c.h.b16 %v562
    %v1951 = vunpack.c.l.b16 %v563
    %v1952 = vunpack.c.h.b16 %v563
    %v1953 = vunpack.c.l.b16 %v564
    %v1954 = vunpack.c.h.b16 %v564
    %v1955 = vunpack.c.l.b16 %v565
    %v1956 = vunpack.c.h.b16 %v565
    %v1957 = vunpack.c.l.b16 %v566
    %v1958 = vunpack.c.h.b16 %v566
    %v1959 = vunpack.c.l.b16 %v567
    %v1960 = vunpack.c.h.b16 %v567
    %v1961 = vunpack.c.l.b16 %v568
    %v1962 = vunpack.c.h.b16 %v568
    %v1963 = vunpack.c.l.b16 %v569
    %v1964 = vunpack.c.h.b16 %v569
    %v1965 = vunpack.c.l.b16 %v570
    %v1966 = vunpack.c.h.b16 %v570
    %v1967 = vunpack.c.l.b16 %v571
    %v1968 = vunpack.c.h.b16 %v571
    %v1969 = vunpack.c.l.b16 %v572
    %v1970 = vunpack.c.h.b16 %v572
    %v1971 = vunpack.c.l.b16 %v573
    %v1972 = vunpack.c.h.b16 %v573
    %v1973 = vunpack.c.l.b16 %v574
    %v1974 = vunpack.c.h.b16 %v574
    %v1975 = vunpack.c.l.b16 %v575
    %v1976 = vunpack.c.h.b16 %v575
    %v1977 = vunpack.c.l.b16 %v576
    %v1978 = vunpack.c.h.b16 %v576
    %v1979 = vunpack.c.l.b16 %v577
    %v1980 = vunpack.c.h.b16 %v577
    %v1981 = vunpack.c.l.b16 %v578
    %v1982 = vunpack.c.h.b16 %v578
    %v1983 = vunpack.c.l.b16 %v579
    %v1984 = vunpack.c.h.b16 %v579
    %v1985 = vunpack.c.l.b16 %v580
    %v1986 = vunpack.c.h.b16 %v580
    %v1987 = vunpack.c.l.b16 %v581
    %v1988 = vunpack.c.h.b16 %v581
    %v1989 = vunpack.c.l.b16 %v582
    %v1990 = vunpack.c.h.b16 %v582
    %v1991 = vunpack.c.l.b16 %v583
    %v1992 = vunpack.c.h.b16 %v583
    %v1993 = vunpack.c.l.b16 %v584
    %v1994 = vunpack.c.h.b16 %v584
    %v1995 = vunpack.c.l.b16 %v585
    %v1996 = vunpack.c.h.b16 %v585
    %v1997 = vunpack.c.l.b16 %v586
    %v1998 = vunpack.c.h.b16 %v586
    %v1999 = vunpack.c.l.b16 %v587
    %v2000 = vunpack.c.h.b16 %v587
    %v2001 = vunpack.c.l.b16 %v588
    %v2002 = vunpack.c.h.b16 %v588
    %v2003 = vunpack.c.l.b16 %v589
    %v2004 = vunpack.c.h.b16 %v589
    %v2005 = vunpack.c.l.b16 %v590
    %v2006 = vunpack.c.h.b16 %v590
    %v2007 = vunpack.c.l.b16 %v591
    %v2008 = vunpack.c.h.b16 %v591
    %v2009 = vunpack.c.l.b16 %v592
    %v2010 = vunpack.c.h.b16 %v592
    %v2011 = vunpack.c.l.b16 %v593
    %v2012 = vunpack.c.h.b16 %v593
    %v2013 = vunpack.c.l.b16 %v594
    %v2014 = vunpack.c.h.b16 %v594
    %v2015 = vunpack.c.l.b16 %v595
    %v2016 = vunpack.c.h.b16 %v595
    %v2017 = vunpack.c.l.b16 %v596
    %v2018 = vunpack.c.h.b16 %v596
    %v2019 = vunpack.c.l.b16 %v597
    %v2020 = vunpack.c.h.b16 %v597
    %v2021 = vunpack.c.l.b16 %v598
    %v2022 = vunpack.c.h.b16 %v598
    %v2023 = vunpack.c.l.b16 %v599
    %v2024 = vunpack.c.h.b16 %v599
    %v2025 = vunpack.c.l.b16 %v600
    %v2026 = vunpack.c.h.b16 %v600
    %v2027 = vunpack.c.l.b16 %v601
    %v2028 = vunpack.c.h.b16 %v601
    %v2029 = vunpack.c.l.b16 %v602
    %v2030 = vunpack.c.h.b16 %v602
    %v2031 = vunpack.c.l.b16 %v603
    %v2032 = vunpack.c.h.b16 %v603
    %v2033 = vunpack.c.l.b16 %v604
    %v2034 = vunpack.c.h.b16 %v604
    %v2035 = vunpack.c.l.b16 %v605
    %v2036 = vunpack.c.h.b16 %v605
    %v2037 = vunpack.c.l.b16 %v606
    %v2038 = vunpack.c.h.b16 %v606
    %v2039 = vunpack.c.l.b16 %v607
    %v2040 = vunpack.c.h.b16 %v607
    %v2041 = vunpack.c.l.b16 %v608
    %v2042 = vunpack.c.h.b16 %v608
    %v2043 = vunpack.c.l.b16 %v609
    %v2044 = vunpack.c.h.b16 %v609
    %v2045 = vunpack.c.l.b16 %v610
    %v2046 = vunpack.c.h.b16 %v610
    %v2047 = vunpack.c.l.b16 %v611
    %v2048 = vunpack.c.h.b16 %v611
    %v2049 = vunpack.c.l.b16 %v612
    %v2050 = vunpack.c.h.b16 %v612
    %v2051 = vunpack.c.l.b16 %v613
    %v2052 = vunpack.c.h.b16 %v613
    %v2053 = vunpack.c.l.b16 %v614
    %v2054 = vunpack.c.h.b16 %v614
    %v2055 = vunpack.c.l.b16 %v615
    %v2056 = vunpack.c.h.b16 %v615
    %v2057 = vunpack.c.l.b16 %v616
    %v2058 = vunpack.c.h.b16 %v616
    %v2059 = vunpack.c.l.b16 %v617
    %v2060 = vunpack.c.h.b16 %v617
    %v2061 = vunpack.c.l.b16 %v618
    %v2062 = vunpack.c.h.b16 %v618
    %v2063 = vunpack.c.l.b16 %v619
    %v2064 = vunpack.c.h.b16 %v619
    %v2065 = vunpack.c.l.b16 %v620
    %v2066 = vunpack.c.h.b16 %v620
    %v2067 = vunpack.c.l.b16 %v621
    %v2068 = vunpack.c.h.b16 %v621
    %v2069 = vunpack.c.l.b16 %v622
    %v2070 = vunpack.c.h.b16 %v622
    %v2071 = vunpack.c.l.b16 %v623
    %v2072 = vunpack.c.h.b16 %v623
    %v2073 = vunpack.c.l.b16 %v624
    %v2074 = vunpack.c.h.b16 %v624
    %v2075 = vunpack.c.l.b16 %v625
    %v2076 = vunpack.c.h.b16 %v625
    %v2077 = vunpack.c.l.b16 %v626
    %v2078 = vunpack.c.h.b16 %v626
    %v2079 = vunpack.c.l.b16 %v627
    %v2080 = vunpack.c.h.b16 %v627
    %v2081 = vunpack.c.l.b16 %v628
    %v2082 = vunpack.c.h.b16 %v628
    %v2083 = vunpack.c.l.b16 %v629
    %v2084 = vunpack.c.h.b16 %v629
    %v2085 = vunpack.c.l.b16 %v630
    %v2086 = vunpack.c.h.b16 %v630
    %v2087 = vunpack.c.l.b16 %v631
    %v2088 = vunpack.c.h.b16 %v631
    %v2089 = vunpack.c.l.b16 %v632
    %v2090 = vunpack.c.h.b16 %v632
    %v2091 = vunpack.c.l.b16 %v633
    %v2092 = vunpack.c.h.b16 %v633
    %v2093 = vunpack.c.l.b16 %v634
    %v2094 = vunpack.c.h.b16 %v634
    %v2095 = vunpack.c.l.b16 %v635
    %v2096 = vunpack.c.h.b16 %v635
    %v2097 = vunpack.c.l.b16 %v636
    %v2098 = vunpack.c.h.b16 %v636
    %v2099 = vunpack.c.l.b16 %v637
    %v2100 = vunpack.c.h.b16 %v637
    %v2101 = vunpack.c.l.b16 %v638
    %v2102 = vunpack.c.h.b16 %v638
    %v2103 = vunpack.c.l.b16 %v639
    %v2104 = vunpack.c.h.b16 %v639
    %v2105 = vunpack.c.l.b16 %v640
    %v2106 = vunpack.c.h.b16 %v640
    %v2107 = vunpack.c.l.b16 %v641
    %v2108 = vunpack.c.h.b16 %v641
    %v2109 = vunpack.c.l.b16 %v642
    %v2110 = vunpack.c.h.b16 %v642
    %v2111 = vunpack.c.l.b16 %v643
    %v2112 = vunpack.c.h.b16 %v643
    %v2113 = vunpack.c.l.b16 %v644
    %v2114 = vunpack.c.h.b16 %v644
    %v2115 = vunpack.c.l.b16 %v645
    %v2116 = vunpack.c.h.b16 %v645
    %v2117 = vunpack.c.l.b16 %v646
    %v2118 = vunpack.c.h.b16 %v646
    %v2119 = vunpack.c.l.b16 %v647
    %v2120 = vunpack.c.h.b16 %v647
    %v2121 = vunpack.c.l.b16 %v648
    %v2122 = vunpack.c.h.b16 %v648
    %v2123 = vunpack.c.l.b16 %v649
    %v2124 = vunpack.c.h.b16 %v649
    %v2125 = vunpack.c.l.b16 %v650
    %v2126 = vunpack.c.h.b16 %v650
    %v2127 = vunpack.c.l.b16 %v651
    %v2128 = vunpack.c.h.b16 %v651
    %v2129 = vunpack.c.l.b16 %v652
    %v2130 = vunpack.c.h.b16 %v652
    %v2131 = vunpack.c.l.b16 %v653
    %v2132 = vunpack.c.h.b16 %v653
    %v2133 = vunpack.c.l.b16 %v654
    %v2134 = vunpack.c.h.b16 %v654
    %v2135 = vunpack.c.l.b16 %v655
    %v2136 = vunpack.c.h.b16 %v655
    %v2137 = vunpack.c.l.b16 %v656
    %v2138 = vunpack.c.h.b16 %v656
    %v2139 = vunpack.c.l.b16 %v657
    %v2140 = vunpack.c.h.b16 %v657
    %v2141 = vunpack.c.l.b16 %v658
    %v2142 = vunpack.c.h.b16 %v658
    %v2143 = vunpack.c.l.b16 %v659
    %v2144 = vunpack.c.h.b16 %v659
    %v2145 = vunpack.c.l.b16 %v660
    %v2146 = vunpack.c.h.b16 %v660
    %v2147 = vunpack.c.l.b16 %v661
    %v2148 = vunpack.c.h.b16 %v661
    %v2149 = vunpack.c.l.b16 %v662
    %v2150 = vunpack.c.h.b16 %v662
    %v2151 = vunpack.c.l.b16 %v663
    %v2152 = vunpack.c.h.b16 %v663
    %v2153 = vunpack.c.l.b16 %v664
    %v2154 = vunpack.c.h.b16 %v664
    %v2155 = vunpack.c.l.b16 %v665
    %v2156 = vunpack.c.h.b16 %v665
    %v2157 = vunpack.c.l.b16 %v666
    %v2158 = vunpack.c.h.b16 %v666
    %v2159 = vunpack.c.l.b16 %v667
    %v2160 = vunpack.c.h.b16 %v667
    %v2161 = vunpack.c.l.b16 %v668
    %v2162 = vunpack.c.h.b16 %v668
    %v2163 = vunpack.c.l.b16 %v669
    %v2164 = vunpack.c.h.b16 %v669
    %v2165 = vunpack.c.l.b16 %v670
    %v2166 = vunpack.c.h.b16 %v670
    %v2167 = vunpack.c.l.b16 %v671
    %v2168 = vunpack.c.h.b16 %v671
    %v2169 = vunpack.c.l.b16 %v672
    %v2170 = vunpack.c.h.b16 %v672
    %v2171 = vunpack.c.l.b16 %v673
    %v2172 = vunpack.c.h.b16 %v673
    %v2173 = vunpack.c.l.b16 %v674
    %v2174 = vunpack.c.h.b16 %v674
    %v2175 = vunpack.c.l.b16 %v675
    %v2176 = vunpack.c.h.b16 %v675
    %v2177 = vunpack.c.l.b16 %v676
    %v2178 = vunpack.c.h.b16 %v676
    %v2179 = vunpack.c.l.b16 %v677
    %v2180 = vunpack.c.h.b16 %v677
    %v2181 = vunpack.c.l.b16 %v678
    %v2182 = vunpack.c.h.b16 %v678
    %v2183 = vunpack.c.l.b16 %v679
    %v2184 = vunpack.c.h.b16 %v679
    %v2185 = vunpack.c.l.b16 %v680
    %v2186 = vunpack.c.h.b16 %v680
    %v2187 = vunpack.c.l.b16 %v681
    %v2188 = vunpack.c.h.b16 %v681
    %v2189 = vunpack.c.l.b16 %v682
    %v2190 = vunpack.c.h.b16 %v682
    %v2191 = vunpack.c.l.b16 %v683
    %v2192 = vunpack.c.h.b16 %v683
    %v2193 = vunpack.c.l.b16 %v684
    %v2194 = vunpack.c.h.b16 %v684
    %v2195 = vunpack.c.l.b16 %v685
    %v2196 = vunpack.c.h.b16 %v685
    %v2197 = vunpack.c.l.b16 %v686
    %v2198 = vunpack.c.h.b16 %v686
    %v2199 = vunpack.c.l.b16 %v687
    %v2200 = vunpack.c.h.b16 %v687
    %v2201 = vunpack.c.l.b16 %v688
    %v2202 = vunpack.c.h.b16 %v688
    %v2203 = vunpack.c.l.b16 %v689
    %v2204 = vunpack.c.h.b16 %v689
    %v2205 = vunpack.c.l.b16 %v690
    %v2206 = vunpack.c.h.b16 %v690
    %v2207 = vunpack.c.l.b16 %v691
    %v2208 = vunpack.c.h.b16 %v691
    %v2209 = vunpack.c.l.b16 %v692
    %v2210 = vunpack.c.h.b16 %v692
    %v2211 = vunpack.c.l.b16 %v693
    %v2212 = vunpack.c.h.b16 %v693
    %v2213 = vunpack.c.l.b16 %v694
    %v2214 = vunpack.c.h.b16 %v694
    %v2215 = vunpack.c.l.b16 %v695
    %v2216 = vunpack.c.h.b16 %v695
    %v2217 = vunpack.c.l.b16 %v696
    %v2218 = vunpack.c.h.b16 %v696
    %v2219 = vunpack.c.l.b16 %v697
    %v2220 = vunpack.c.h.b16 %v697
    %v2221 = vunpack.c.l.b16 %v698
    %v2222 = vunpack.c.h.b16 %v698
    %v2223 = vunpack.c.l.b16 %v699
    %v2224 = vunpack.c.h.b16 %v699
    %v2225 = vunpack.c.l.b16 %v700
    %v2226 = vunpack.c.h.b16 %v700
    %v2227 = vunpack.c.l.b16 %v701
    %v2228 = vunpack.c.h.b16 %v701
    %v2229 = vunpack.c.l.b16 %v702
    %v2230 = vunpack.c.h.b16 %v702
    %v2231 = vunpack.c.l.b16 %v703
    %v2232 = vunpack.c.h.b16 %v703
    %v2233 = vunpack.c.l.b16 %v704
    %v2234 = vunpack.c.h.b16 %v704
    %v2235 = vunpack.c.l.b16 %v705
    %v2236 = vunpack.c.h.b16 %v705
    %v2237 = vunpack.c.l.b16 %v706
    %v2238 = vunpack.c.h.b16 %v706
    %v2239 = vunpack.c.l.b16 %v707
    %v2240 = vunpack.c.h.b16 %v707
    %v2241 = vunpack.c.l.b16 %v708
    %v2242 = vunpack.c.h.b16 %v708
    %v2243 = vunpack.c.l.b16 %v709
    %v2244 = vunpack.c.h.b16 %v709
    %v2245 = vunpack.c.l.b16 %v710
    %v2246 = vunpack.c.h.b16 %v710
    %v2247 = vpack.c.b16 %v1231, %v1223
    %v2248 = vpack.c.b16 %v1232, %v1224
    %v2249 = vpack.c.b16 %v1233, %v1225
    %v2250 = vpack.c.b16 %v1234, %v1226
    %v2251 = vpack.c.b16 %v1235, %v1227
    %v2252 = vpack.c.b16 %v1236, %v1228
    %v2253 = vpack.c.b16 %v1237, %v1229
    %v2254 = vpack.c.b16 %v1238, %v1230
    %v2255 = vpack.c.b16 %v1247, %v1239
    %v2256 = vpack.c.b16 %v1248, %v1240
    %v2257 = vpack.c.b16 %v1249, %v1241
    %v2258 = vpack.c.b16 %v1250, %v1242
    %v2259 = vpack.c.b16 %v1251, %v1243
    %v2260 = vpack.c.b16 %v1252, %v1244
    %v2261 = vpack.c.b16 %v1253, %v1245
    %v2262 = vpack.c.b16 %v1254, %v1246
    %v2263 = vpack.c.b16 %v1263, %v1255
    %v2264 = vpack.c.b16 %v1264, %v1256
    %v2265 = vpack.c.b16 %v1265, %v1257
    %v2266 = vpack.c.b16 %v1266, %v1258
    %v2267 = vpack.c.b16 %v1267, %v1259
    %v2268 = vpack.c.b16 %v1268, %v1260
    %v2269 = vpack.c.b16 %v1269, %v1261
    %v2270 = vpack.c.b16 %v1270, %v1262
    %v2271 = vpack.c.b16 %v1279, %v1271
    %v2272 = vpack.c.b16 %v1280, %v1272
    %v2273 = vpack.c.b16 %v1281, %v1273
    %v2274 = vpack.c.b16 %v1282, %v1274
    %v2275 = vpack.c.b16 %v1283, %v1275
    %v2276 = vpack.c.b16 %v1284, %v1276
    %v2277 = vpack.c.b16 %v1285, %v1277
    %v2278 = vpack.c.b16 %v1286, %v1278
    %v2279 = vpack.c.b16 %v1295, %v1287
    %v2280 = vpack.c.b16 %v1296, %v1288
    %v2281 = vpack.c.b16 %v1297, %v1289
    %v2282 = vpack.c.b16 %v1298, %v1290
    %v2283 = vpack.c.b16 %v1299, %v1291
    %v2284 = vpack.c.b16 %v1300, %v1292
    %v2285 = vpack.c.b16 %v1301, %v1293
    %v2286 = vpack.c.b16 %v1302, %v1294
    %v2287 = vpack.c.b16 %v1311, %v1303
    %v2288 = vpack.c.b16 %v1312, %v1304
    %v2289 = vpack.c.b16 %v1313, %v1305
    %v2290 = vpack.c.b16 %v1314, %v1306
    %v2291 = vpack.c.b16 %v1315, %v1307
    %v2292 = vpack.c.b16 %v1316, %v1308
    %v2293 = vpack.c.b16 %v1317, %v1309
    %v2294 = vpack.c.b16 %v1318, %v1310
    %v2295 = vpack.c.b16 %v1327, %v1319
    %v2296 = vpack.c.b16 %v1328, %v1320
    %v2297 = vpack.c.b16 %v1329, %v1321
    %v2298 = vpack.c.b16 %v1330, %v1322
    %v2299 = vpack.c.b16 %v1331, %v1323
    %v2300 = vpack.c.b16 %v1332, %v1324
    %v2301 = vpack.c.b16 %v1333, %v1325
    %v2302 = vpack.c.b16 %v1334, %v1326
    %v2303 = vpack.c.b16 %v1343, %v1335
    %v2304 = vpack.c.b16 %v1344, %v1336
    %v2305 = vpack.c.b16 %v1345, %v1337
    %v2306 = vpack.c.b16 %v1346, %v1338
    %v2307 = vpack.c.b16 %v1347, %v1339
    %v2308 = vpack.c.b16 %v1348, %v1340
    %v2309 = vpack.c.b16 %v1349, %v1341
    %v2310 = vpack.c.b16 %v1350, %v1342
    %v2311 = vpack.c.b16 %v1359, %v1351
    %v2312 = vpack.c.b16 %v1360, %v1352
    %v2313 = vpack.c.b16 %v1361, %v1353
    %v2314 = vpack.c.b16 %v1362, %v1354
    %v2315 = vpack.c.b16 %v1363, %v1355
    %v2316 = vpack.c.b16 %v1364, %v1356
    %v2317 = vpack.c.b16 %v1365, %v1357
    %v2318 = vpack.c.b16 %v1366, %v1358
    %v2319 = vpack.c.b16 %v1375, %v1367
    %v2320 = vpack.c.b16 %v1376, %v1368
    %v2321 = vpack.c.b16 %v1377, %v1369
    %v2322 = vpack.c.b16 %v1378, %v1370
    %v2323 = vpack.c.b16 %v1379, %v1371
    %v2324 = vpack.c.b16 %v1380, %v1372
    %v2325 = vpack.c.b16 %v1381, %v1373
    %v2326 = vpack.c.b16 %v1382, %v1374
    %v2327 = vpack.c.b16 %v1391, %v1383
    %v2328 = vpack.c.b16 %v1392, %v1384
    %v2329 = vpack.c.b16 %v1393, %v1385
    %v2330 = vpack.c.b16 %v1394, %v1386
    %v2331 = vpack.c.b16 %v1395, %v1387
    %v2332 = vpack.c.b16 %v1396, %v1388
    %v2333 = vpack.c.b16 %v1397, %v1389
    %v2334 = vpack.c.b16 %v1398, %v1390
    %v2335 = vpack.c.b16 %v1407, %v1399
    %v2336 = vpack.c.b16 %v1408, %v1400
    %v2337 = vpack.c.b16 %v1409, %v1401
    %v2338 = vpack.c.b16 %v1410, %v1402
    %v2339 = vpack.c.b16 %v1411, %v1403
    %v2340 = vpack.c.b16 %v1412, %v1404
    %v2341 = vpack.c.b16 %v1413, %v1405
    %v2342 = vpack.c.b16 %v1414, %v1406
    %v2343 = vpack.c.b16 %v1423, %v1415
    %v2344 = vpack.c.b16 %v1424, %v1416
    %v2345 = vpack.c.b16 %v1425, %v1417
    %v2346 = vpack.c.b16 %v1426, %v1418
    %v2347 = vpack.c.b16 %v1427, %v1419
    %v2348 = vpack.c.b16 %v1428, %v1420
    %v2349 = vpack.c.b16 %v1429, %v1421
    %v2350 = vpack.c.b16 %v1430, %v1422
    %v2351 = vpack.c.b16 %v1439, %v1431
    %v2352 = vpack.c.b16 %v1440, %v1432
    %v2353 = vpack.c.b16 %v1441, %v1433
    %v2354 = vpack.c.b16 %v1442, %v1434
    %v2355 = vpack.c.b16 %v1443, %v1435
    %v2356 = vpack.c.b16 %v1444, %v1436
    %v2357 = vpack.c.b16 %v1445, %v1437
    %v2358 = vpack.c.b16 %v1446, %v1438
    %v2359 = vpack.c.b16 %v1455, %v1447
    %v2360 = vpack.c.b16 %v1456, %v1448
    %v2361 = vpack.c.b16 %v1457, %v1449
    %v2362 = vpack.c.b16 %v1458, %v1450
    %v2363 = vpack.c.b16 %v1459, %v1451
    %v2364 = vpack.c.b16 %v1460, %v1452
    %v2365 = vpack.c.b16 %v1461, %v1453
    %v2366 = vpack.c.b16 %v1462, %v1454
    %v2367 = vpack.c.b16 %v1471, %v1463
    %v2368 = vpack.c.b16 %v1472, %v1464
    %v2369 = vpack.c.b16 %v1473, %v1465
    %v2370 = vpack.c.b16 %v1474, %v1466
    %v2371 = vpack.c.b16 %v1475, %v1467
    %v2372 = vpack.c.b16 %v1476, %v1468
    %v2373 = vpack.c.b16 %v1477, %v1469
    %v2374 = vpack.c.b16 %v1478, %v1470
    %v2375 = vpack.c.b16 %v1487, %v1479
    %v2376 = vpack.c.b16 %v1488, %v1480
    %v2377 = vpack.c.b16 %v1489, %v1481
    %v2378 = vpack.c.b16 %v1490, %v1482
    %v2379 = vpack.c.b16 %v1491, %v1483
    %v2380 = vpack.c.b16 %v1492, %v1484
    %v2381 = vpack.c.b16 %v1493, %v1485
    %v2382 = vpack.c.b16 %v1494, %v1486
    %v2383 = vpack.c.b16 %v1503, %v1495
    %v2384 = vpack.c.b16 %v1504, %v1496
    %v2385 = vpack.c.b16 %v1505, %v1497
    %v2386 = vpack.c.b16 %v1506, %v1498
    %v2387 = vpack.c.b16 %v1507, %v1499
    %v2388 = vpack.c.b16 %v1508, %v1500
    %v2389 = vpack.c.b16 %v1509, %v1501
    %v2390 = vpack.c.b16 %v1510, %v1502
    %v2391 = vpack.c.b16 %v1519, %v1511
    %v2392 = vpack.c.b16 %v1520, %v1512
    %v2393 = vpack.c.b16 %v1521, %v1513
    %v2394 = vpack.c.b16 %v1522, %v1514
    %v2395 = vpack.c.b16 %v1523, %v1515
    %v2396 = vpack.c.b16 %v1524, %v1516
    %v2397 = vpack.c.b16 %v1525, %v1517
    %v2398 = vpack.c.b16 %v1526, %v1518
    %v2399 = vpack.c.b16 %v1535, %v1527
    %v2400 = vpack.c.b16 %v1536, %v1528
    %v2401 = vpack.c.b16 %v1537, %v1529
    %v2402 = vpack.c.b16 %v1538, %v1530
    %v2403 = vpack.c.b16 %v1539, %v1531
    %v2404 = vpack.c.b16 %v1540, %v1532
    %v2405 = vpack.c.b16 %v1541, %v1533
    %v2406 = vpack.c.b16 %v1542, %v1534
    %v2407 = vpack.c.b16 %v1551, %v1543
    %v2408 = vpack.c.b16 %v1552, %v1544
    %v2409 = vpack.c.b16 %v1553, %v1545
    %v2410 = vpack.c.b16 %v1554, %v1546
    %v2411 = vpack.c.b16 %v1555, %v1547
    %v2412 = vpack.c.b16 %v1556, %v1548
    %v2413 = vpack.c.b16 %v1557, %v1549
    %v2414 = vpack.c.b16 %v1558, %v1550
    %v2415 = vpack.c.b16 %v1567, %v1559
    %v2416 = vpack.c.b16 %v1568, %v1560
    %v2417 = vpack.c.b16 %v1569, %v1561
    %v2418 = vpack.c.b16 %v1570, %v1562
    %v2419 = vpack.c.b16 %v1571, %v1563
    %v2420 = vpack.c.b16 %v1572, %v1564
    %v2421 = vpack.c.b16 %v1573, %v1565
    %v2422 = vpack.c.b16 %v1574, %v1566
    %v2423 = vpack.c.b16 %v1583, %v1575
    %v2424 = vpack.c.b16 %v1584, %v1576
    %v2425 = vpack.c.b16 %v1585, %v1577
    %v2426 = vpack.c.b16 %v1586, %v1578
    %v2427 = vpack.c.b16 %v1587, %v1579
    %v2428 = vpack.c.b16 %v1588, %v1580
    %v2429 = vpack.c.b16 %v1589, %v1581
    %v2430 = vpack.c.b16 %v1590, %v1582
    %v2431 = vpack.c.b16 %v1599, %v1591
    %v2432 = vpack.c.b16 %v1600, %v1592
    %v2433 = vpack.c.b16 %v1601, %v1593
    %v2434 = vpack.c.b16 %v1602, %v1594
    %v2435 = vpack.c.b16 %v1603, %v1595
    %v2436 = vpack.c.b16 %v1604, %v1596
    %v2437 = vpack.c.b16 %v1605, %v1597
    %v2438 = vpack.c.b16 %v1606, %v1598
    %v2439 = vpack.c.b16 %v1615, %v1607
    %v2440 = vpack.c.b16 %v1616, %v1608
    %v2441 = vpack.c.b16 %v1617, %v1609
    %v2442 = vpack.c.b16 %v1618, %v1610
    %v2443 = vpack.c.b16 %v1619, %v1611
    %v2444 = vpack.c.b16 %v1620, %v1612
    %v2445 = vpack.c.b16 %v1621, %v1613
    %v2446 = vpack.c.b16 %v1622, %v1614
    %v2447 = vpack.c.b16 %v1631, %v1623
    %v2448 = vpack.c.b16 %v1632, %v1624
    %v2449 = vpack.c.b16 %v1633, %v1625
    %v2450 = vpack.c.b16 %v1634, %v1626
    %v2451 = vpack.c.b16 %v1635, %v1627
    %v2452 = vpack.c.b16 %v1636, %v1628
    %v2453 = vpack.c.b16 %v1637, %v1629
    %v2454 = vpack.c.b16 %v1638, %v1630
    %v2455 = vpack.c.b16 %v1647, %v1639
    %v2456 = vpack.c.b16 %v1648, %v1640
    %v2457 = vpack.c.b16 %v1649, %v1641
    %v2458 = vpack.c.b16 %v1650, %v1642
    %v2459 = vpack.c.b16 %v1651, %v1643
    %v2460 = vpack.c.b16 %v1652, %v1644
    %v2461 = vpack.c.b16 %v1653, %v1645
    %v2462 = vpack.c.b16 %v1654, %v1646
    %v2463 = vpack.c.b16 %v1663, %v1655
    %v2464 = vpack.c.b16 %v1664, %v1656
    %v2465 = vpack.c.b16 %v1665, %v1657
    %v2466 = vpack.c.b16 %v1666, %v1658
    %v2467 = vpack.c.b16 %v1667, %v1659
    %v2468 = vpack.c.b16 %v1668, %v1660
    %v2469 = vpack.c.b16 %v1669, %v1661
    %v2470 = vpack.c.b16 %v1670, %v1662
    %v2471 = vpack.c.b16 %v1679, %v1671
    %v2472 = vpack.c.b16 %v1680, %v1672
    %v2473 = vpack.c.b16 %v1681, %v1673
    %v2474 = vpack.c.b16 %v1682, %v1674
    %v2475 = vpack.c.b16 %v1683, %v1675
    %v2476 = vpack.c.b16 %v1684, %v1676
    %v2477 = vpack.c.b16 %v1685, %v1677
    %v2478 = vpack.c.b16 %v1686, %v1678
    %v2479 = vpack.c.b16 %v1695, %v1687
    %v2480 = vpack.c.b16 %v1696, %v1688
    %v2481 = vpack.c.b16 %v1697, %v1689
    %v2482 = vpack.c.b16 %v1698, %v1690
    %v2483 = vpack.c.b16 %v1699, %v1691
    %v2484 = vpack.c.b16 %v1700, %v1692
    %v2485 = vpack.c.b16 %v1701, %v1693
    %v2486 = vpack.c.b16 %v1702, %v1694
    %v2487 = vpack.c.b16 %v1711, %v1703
    %v2488 = vpack.c.b16 %v1712, %v1704
    %v2489 = vpack.c.b16 %v1713, %v1705
    %v2490 = vpack.c.b16 %v1714, %v1706
    %v2491 = vpack.c.b16 %v1715, %v1707
    %v2492 = vpack.c.b16 %v1716, %v1708
    %v2493 = vpack.c.b16 %v1717, %v1709
    %v2494 = vpack.c.b16 %v1718, %v1710
    %v2495 = vpack.c.b16 %v1727, %v1719
    %v2496 = vpack.c.b16 %v1728, %v1720
    %v2497 = vpack.c.b16 %v1729, %v1721
    %v2498 = vpack.c.b16 %v1730, %v1722
    %v2499 = vpack.c.b16 %v1731, %v1723
    %v2500 = vpack.c.b16 %v1732, %v1724
    %v2501 = vpack.c.b16 %v1733, %v1725
    %v2502 = vpack.c.b16 %v1734, %v1726
    %v2503 = vpack.c.b16 %v1743, %v1735
    %v2504 = vpack.c.b16 %v1744, %v1736
    %v2505 = vpack.c.b16 %v1745, %v1737
    %v2506 = vpack.c.b16 %v1746, %v1738
    %v2507 = vpack.c.b16 %v1747, %v1739
    %v2508 = vpack.c.b16 %v1748, %v1740
    %v2509 = vpack.c.b16 %v1749, %v1741
    %v2510 = vpack.c.b16 %v1750, %v1742
    %v2511 = vpack.c.b16 %v1759, %v1751
    %v2512 = vpack.c.b16 %v1760, %v1752
    %v2513 = vpack.c.b16 %v1761, %v1753
    %v2514 = vpack.c.b16 %v1762, %v1754
    %v2515 = vpack.c.b16 %v1763, %v1755
    %v2516 = vpack.c.b16 %v1764, %v1756
    %v2517 = vpack.c.b16 %v1765, %v1757
    %v2518 = vpack.c.b16 %v1766, %v1758
    %v2519 = vpack.c.b16 %v1775, %v1767
    %v2520 = vpack.c.b16 %v1776, %v1768
    %v2521 = vpack.c.b16 %v1777, %v1769
    %v2522 = vpack.c.b16 %v1778, %v1770
    %v2523 = vpack.c.b16 %v1779, %v1771
    %v2524 = vpack.c.b16 %v1780, %v1772
    %v2525 = vpack.c.b16 %v1781, %v1773
    %v2526 = vpack.c.b16 %v1782, %v1774
    %v2527 = vpack.c.b16 %v1791, %v1783
    %v2528 = vpack.c.b16 %v1792, %v1784
    %v2529 = vpack.c.b16 %v1793, %v1785
    %v2530 = vpack.c.b16 %v1794, %v1786
    %v2531 = vpack.c.b16 %v1795, %v1787
    %v2532 = vpack.c.b16 %v1796, %v1788
    %v2533 = vpack.c.b16 %v1797, %v1789
    %v2534 = vpack.c.b16 %v1798, %v1790
    %v2535 = vpack.c.b16 %v1807, %v1799
    %v2536 = vpack.c.b16 %v1808, %v1800
    %v2537 = vpack.c.b16 %v1809, %v1801
    %v2538 = vpack.c.b16 %v1810, %v1802
    %v2539 = vpack.c.b16 %v1811, %v1803
    %v2540 = vpack.c.b16 %v1812, %v1804
    %v2541 = vpack.c.b16 %v1813, %v1805
    %v2542 = vpack.c.b16 %v1814, %v1806
    %v2543 = vpack.c.b16 %v1823, %v1815
    %v2544 = vpack.c.b16 %v1824, %v1816
    %v2545 = vpack.c.b16 %v1825, %v1817
    %v2546 = vpack.c.b16 %v1826, %v1818
    %v2547 = vpack.c.b16 %v1827, %v1819
    %v2548 = vpack.c.b16 %v1828, %v1820
    %v2549 = vpack.c.b16 %v1829, %v1821
    %v2550 = vpack.c.b16 %v1830, %v1822
    %v2551 = vpack.c.b16 %v1839, %v1831
    %v2552 = vpack.c.b16 %v1840, %v1832
    %v2553 = vpack.c.b16 %v1841, %v1833
    %v2554 = vpack.c.b16 %v1842, %v1834
    %v2555 = vpack.c.b16 %v1843, %v1835
    %v2556 = vpack.c.b16 %v1844, %v1836
    %v2557 = vpack.c.b16 %v1845, %v1837
    %v2558 = vpack.c.b16 %v1846, %v1838
    %v2559 = vpack.c.b16 %v1855, %v1847
    %v2560 = vpack.c.b16 %v1856, %v1848
    %v2561 = vpack.c.b16 %v1857, %v1849
    %v2562 = vpack.c.b16 %v1858, %v1850
    %v2563 = vpack.c.b16 %v1859, %v1851
    %v2564 = vpack.c.b16 %v1860, %v1852
    %v2565 = vpack.c.b16 %v1861, %v1853
    %v2566 = vpack.c.b16 %v1862, %v1854
    %v2567 = vpack.c.b16 %v1871, %v1863
    %v2568 = vpack.c.b16 %v1872, %v1864
    %v2569 = vpack.c.b16 %v1873, %v1865
    %v2570 = vpack.c.b16 %v1874, %v1866
    %v2571 = vpack.c.b16 %v1875, %v1867
    %v2572 = vpack.c.b16 %v1876, %v1868
    %v2573 = vpack.c.b16 %v1877, %v1869
    %v2574 = vpack.c.b16 %v1878, %v1870
    %v2575 = vpack.c.b16 %v1887, %v1879
    %v2576 = vpack.c.b16 %v1888, %v1880
    %v2577 = vpack.c.b16 %v1889, %v1881
    %v2578 = vpack.c.b16 %v1890, %v1882
    %v2579 = vpack.c.b16 %v1891, %v1883
    %v2580 = vpack.c.b16 %v1892, %v1884
    %v2581 = vpack.c.b16 %v1893, %v1885
    %v2582 = vpack.c.b16 %v1894, %v1886
    %v2583 = vpack.c.b16 %v1903, %v1895
    %v2584 = vpack.c.b16 %v1904, %v1896
    %v2585 = vpack.c.b16 %v1905, %v1897
    %v2586 = vpack.c.b16 %v1906, %v1898
    %v2587 = vpack.c.b16 %v1907, %v1899
    %v2588 = vpack.c.b16 %v1908, %v1900
    %v2589 = vpack.c.b16 %v1909, %v1901
    %v2590 = vpack.c.b16 %v1910, %v1902
    %v2591 = vpack.c.b16 %v1919, %v1911
    %v2592 = vpack.c.b16 %v1920, %v1912
    %v2593 = vpack.c.b16 %v1921, %v1913
    %v2594 = vpack.c.b16 %v1922, %v1914
    %v2595 = vpack.c.b16 %v1923, %v1915
    %v2596 = vpack.c.b16 %v1924, %v1916
    %v2597 = vpack.c.b16 %v1925, %v1917
    %v2598 = vpack.c.b16 %v1926, %v1918
    %v2599 = vpack.c.b16 %v1935, %v1927
    %v2600 = vpack.c.b16 %v1936, %v1928
    %v2601 = vpack.c.b16 %v1937, %v1929
    %v2602 = vpack.c.b16 %v1938, %v1930
    %v2603 = vpack.c.b16 %v1939, %v1931
    %v2604 = vpack.c.b16 %v1940, %v1932
    %v2605 = vpack.c.b16 %v1941, %v1933
    %v2606 = vpack.c.b16 %v1942, %v1934
    %v2607 = vpack.c.b16 %v1951, %v1943
    %v2608 = vpack.c.b16 %v1952, %v1944
    %v2609 = vpack.c.b16 %v1953, %v1945
    %v2610 = vpack.c.b16 %v1954, %v1946
    %v2611 = vpack.c.b16 %v1955, %v1947
    %v2612 = vpack.c.b16 %v1956, %v1948
    %v2613 = vpack.c.b16 %v1957, %v1949
    %v2614 = vpack.c.b16 %v1958, %v1950
    %v2615 = vpack.c.b16 %v1967, %v1959
    %v2616 = vpack.c.b16 %v1968, %v1960
    %v2617 = vpack.c.b16 %v1969, %v1961
    %v2618 = vpack.c.b16 %v1970, %v1962
    %v2619 = vpack.c.b16 %v1971, %v1963
    %v2620 = vpack.c.b16 %v1972, %v1964
    %v2621 = vpack.c.b16 %v1973, %v1965
    %v2622 = vpack.c.b16 %v1974, %v1966
    %v2623 = vpack.c.b16 %v1983, %v1975
    %v2624 = vpack.c.b16 %v1984, %v1976
    %v2625 = vpack.c.b16 %v1985, %v1977
    %v2626 = vpack.c.b16 %v1986, %v1978
    %v2627 = vpack.c.b16 %v1987, %v1979
    %v2628 = vpack.c.b16 %v1988, %v1980
    %v2629 = vpack.c.b16 %v1989, %v1981
    %v2630 = vpack.c.b16 %v1990, %v1982
    %v2631 = vpack.c.b16 %v1999, %v1991
    %v2632 = vpack.c.b16 %v2000, %v1992
    %v2633 = vpack.c.b16 %v2001, %v1993
    %v2634 = vpack.c.b16 %v2002, %v1994
    %v2635 = vpack.c.b16 %v2003, %v1995
    %v2636 = vpack.c.b16 %v2004, %v1996
    %v2637 = vpack.c.b16 %v2005, %v1997
    %v2638 = vpack.c.b16 %v2006, %v1998
    %v2639 = vpack.c.b16 %v2015, %v2007
    %v2640 = vpack.c.b16 %v2016, %v2008
    %v2641 = vpack.c.b16 %v2017, %v2009
    %v2642 = vpack.c.b16 %v2018, %v2010
    %v2643 = vpack.c.b16 %v2019, %v2011
    %v2644 = vpack.c.b16 %v2020, %v2012
    %v2645 = vpack.c.b16 %v2021, %v2013
    %v2646 = vpack.c.b16 %v2022, %v2014
    %v2647 = vpack.c.b16 %v2031, %v2023
    %v2648 = vpack.c.b16 %v2032, %v2024
    %v2649 = vpack.c.b16 %v2033, %v2025
    %v2650 = vpack.c.b16 %v2034, %v2026
    %v2651 = vpack.c.b16 %v2035, %v2027
    %v2652 = vpack.c.b16 %v2036, %v2028
    %v2653 = vpack.c.b16 %v2037, %v2029
    %v2654 = vpack.c.b16 %v2038, %v2030
    %v2655 = vpack.c.b16 %v2047, %v2039
    %v2656 = vpack.c.b16 %v2048, %v2040
    %v2657 = vpack.c.b16 %v2049, %v2041
    %v2658 = vpack.c.b16 %v2050, %v2042
    %v2659 = vpack.c.b16 %v2051, %v2043
    %v2660 = vpack.c.b16 %v2052, %v2044
    %v2661 = vpack.c.b16 %v2053, %v2045
    %v2662 = vpack.c.b16 %v2054, %v2046
    %v2663 = vpack.c.b16 %v2063, %v2055
    %v2664 = vpack.c.b16 %v2064, %v2056
    %v2665 = vpack.c.b16 %v2065, %v2057
    %v2666 = vpack.c.b16 %v2066, %v2058
    %v2667 = vpack.c.b16 %v2067, %v2059
    %v2668 = vpack.c.b16 %v2068, %v2060
    %v2669 = vpack.c.b16 %v2069, %v2061
    %v2670 = vpack.c.b16 %v2070, %v2062
    %v2671 = vpack.c.b16 %v2079, %v2071
    %v2672 = vpack.c.b16 %v2080, %v2072
    %v2673 = vpack.c.b16 %v2081, %v2073
    %v2674 = vpack.c.b16 %v2082, %v2074
    %v2675 = vpack.c.b16 %v2083, %v2075
    %v2676 = vpack.c.b16 %v2084, %v2076
    %v2677 = vpack.c.b16 %v2085, %v2077
    %v2678 = vpack.c.b16 %v2086, %v2078
    %v2679 = vpack.c.b16 %v2095, %v2087
    %v2680 = vpack.c.b16 %v2096, %v2088
    %v2681 = vpack.c.b16 %v2097, %v2089
    %v2682 = vpack.c.b16 %v2098, %v2090
    %v2683 = vpack.c.b16 %v2099, %v2091
    %v2684 = vpack.c.b16 %v2100, %v2092
    %v2685 = vpack.c.b16 %v2101, %v2093
    %v2686 = vpack.c.b16 %v2102, %v2094
    %v2687 = vpack.c.b16 %v2111, %v2103
    %v2688 = vpack.c.b16 %v2112, %v2104
    %v2689 = vpack.c.b16 %v2113, %v2105
    %v2690 = vpack.c.b16 %v2114, %v2106
    %v2691 = vpack.c.b16 %v2115, %v2107
    %v2692 = vpack.c.b16 %v2116, %v2108
    %v2693 = vpack.c.b16 %v2117, %v2109
    %v2694 = vpack.c.b16 %v2118, %v2110
    %v2695 = vpack.c.b16 %v2127, %v2119
    %v2696 = vpack.c.b16 %v2128, %v2120
    %v2697 = vpack.c.b16 %v2129, %v2121
    %v2698 = vpack.c.b16 %v2130, %v2122
    %v2699 = vpack.c.b16 %v2131, %v2123
    %v2700 = vpack.c.b16 %v2132, %v2124
    %v2701 = vpack.c.b16 %v2133, %v2125
    %v2702 = vpack.c.b16 %v2134, %v2126
    %v2703 = vpack.c.b16 %v2143, %v2135
    %v2704 = vpack.c.b16 %v2144, %v2136
    %v2705 = vpack.c.b16 %v2145, %v2137
    %v2706 = vpack.c.b16 %v2146, %v2138
    %v2707 = vpack.c.b16 %v2147, %v2139
    %v2708 = vpack.c.b16 %v2148, %v2140
    %v2709 = vpack.c.b16 %v2149, %v2141
    %v2710 = vpack.c.b16 %v2150, %v2142
    %v2711 = vpack.c.b16 %v2159, %v2151
    %v2712 = vpack.c.b16 %v2160, %v2152
    %v2713 = vpack.c.b16 %v2161, %v2153
    %v2714 = vpack.c.b16 %v2162, %v2154
    %v2715 = vpack.c.b16 %v2163, %v2155
    %v2716 = vpack.c.b16 %v2164, %v2156
    %v2717 = vpack.c.b16 %v2165, %v2157
    %v2718 = vpack.c.b16 %v2166, %v2158
    %v2719 = vpack.c.b16 %v2175, %v2167
    %v2720 = vpack.c.b16 %v2176, %v2168
    %v2721 = vpack.c.b16 %v2177, %v2169
    %v2722 = vpack.c.b16 %v2178, %v2170
    %v2723 = vpack.c.b16 %v2179, %v2171
    %v2724 = vpack.c.b16 %v2180, %v2172
    %v2725 = vpack.c.b16 %v2181, %v2173
    %v2726 = vpack.c.b16 %v2182, %v2174
    %v2727 = vpack.c.b16 %v2191, %v2183
    %v2728 = vpack.c.b16 %v2192, %v2184
    %v2729 = vpack.c.b16 %v2193, %v2185
    %v2730 = vpack.c.b16 %v2194, %v2186
    %v2731 = vpack.c.b16 %v2195, %v2187
    %v2732 = vpack.c.b16 %v2196, %v2188
    %v2733 = vpack.c.b16 %v2197, %v2189
    %v2734 = vpack.c.b16 %v2198, %v2190
    %v2735 = vpack.c.b16 %v2207, %v2199
    %v2736 = vpack.c.b16 %v2208, %v2200
    %v2737 = vpack.c.b16 %v2209, %v2201
    %v2738 = vpack.c.b16 %v2210, %v2202
    %v2739 = vpack.c.b16 %v2211, %v2203
    %v2740 = vpack.c.b16 %v2212, %v2204
    %v2741 = vpack.c.b16 %v2213, %v2205
    %v2742 = vpack.c.b16 %v2214, %v2206
    %v2743 = vpack.c.b16 %v2223, %v2215
    %v2744 = vpack.c.b16 %v2224, %v2216
    %v2745 = vpack.c.b16 %v2225, %v2217
    %v2746 = vpack.c.b16 %v2226, %v2218
    %v2747 = vpack.c.b16 %v2227, %v2219
    %v2748 = vpack.c.b16 %v2228, %v2220
    %v2749 = vpack.c.b16 %v2229, %v2221
    %v2750 = vpack.c.b16 %v2230, %v2222
    %v2751 = vpack.c.b16 %v2239, %v2231
    %v2752 = vpack.c.b16 %v2240, %v2232
    %v2753 = vpack.c.b16 %v2241, %v2233
    %v2754 = vpack.c.b16 %v2242, %v2234
    %v2755 = vpack.c.b16 %v2243, %v2235
    %v2756 = vpack.c.b16 %v2244, %v2236
    %v2757 = vpack.c.b16 %v2245, %v2237
    %v2758 = vpack.c.b16 %v2246, %v2238
    %3271 = vmatpush.bf16.msra.mxu0 %v2303
    %3272 = vmatpush.bf16.msra.mxu0 %v2295
    %3273 = vmatpush.bf16.msra.mxu0 %v2287
    %3274 = vmatpush.bf16.msra.mxu0 %v2279
    %3275 = vmatpush.bf16.msra.mxu0 %v2271
    %3276 = vmatpush.bf16.msra.mxu0 %v2263
    %3277 = vmatpush.bf16.msra.mxu0 %v2255
    %3278 = vmatpush.bf16.msra.mxu0 %v2247
    %3279 = vmatmul.bf16.gmra.mxu0 %v191
    %v3280 = vpop.f32.mrf.mxu0
    %v3281 = vadd.f32 0.0, %v3280
    %v3282 = vpop.f32.mrf.mxu0
    %v3283 = vadd.f32 0.0, %v3282
    %3284 = vdwg.mxu0
    %3285 = vmatpush.bf16.msra.mxu0 %v2367
    %3286 = vmatpush.bf16.msra.mxu0 %v2359
    %3287 = vmatpush.bf16.msra.mxu0 %v2351
    %3288 = vmatpush.bf16.msra.mxu0 %v2343
    %3289 = vmatpush.bf16.msra.mxu0 %v2335
    %3290 = vmatpush.bf16.msra.mxu0 %v2327
    %3291 = vmatpush.bf16.msra.mxu0 %v2319
    %3292 = vmatpush.bf16.msra.mxu0 %v2311
    %3293 = vmatmul.bf16.gmra.mxu0 %v192
    %v3294 = vpop.f32.mrf.mxu0
    %v3295 = vadd.f32 %v3281, %v3294
    %v3296 = vpop.f32.mrf.mxu0
    %v3297 = vadd.f32 %v3283, %v3296
    %3298 = vdwg.mxu0
    %3299 = vmatpush.bf16.msra.mxu0 %v2431
    %3300 = vmatpush.bf16.msra.mxu0 %v2423
    %3301 = vmatpush.bf16.msra.mxu0 %v2415
    %3302 = vmatpush.bf16.msra.mxu0 %v2407
    %3303 = vmatpush.bf16.msra.mxu0 %v2399
    %3304 = vmatpush.bf16.msra.mxu0 %v2391
    %3305 = vmatpush.bf16.msra.mxu0 %v2383
    %3306 = vmatpush.bf16.msra.mxu0 %v2375
    %3307 = vmatmul.bf16.gmra.mxu0 %v193
    %v3308 = vpop.f32.mrf.mxu0
    %v3309 = vadd.f32 %v3295, %v3308
    %v3310 = vpop.f32.mrf.mxu0
    %v3311 = vadd.f32 %v3297, %v3310
    %3312 = vdwg.mxu0
    %3313 = vmatpush.bf16.msra.mxu0 %v2495
    %3314 = vmatpush.bf16.msra.mxu0 %v2487
    %3315 = vmatpush.bf16.msra.mxu0 %v2479
    %3316 = vmatpush.bf16.msra.mxu0 %v2471
    %3317 = vmatpush.bf16.msra.mxu0 %v2463
    %3318 = vmatpush.bf16.msra.mxu0 %v2455
    %3319 = vmatpush.bf16.msra.mxu0 %v2447
    %3320 = vmatpush.bf16.msra.mxu0 %v2439
    %3321 = vmatmul.bf16.gmra.mxu0 %v194
    %v3322 = vpop.f32.mrf.mxu0
    %v3323 = vadd.f32 %v3309, %v3322
    %v3324 = vpop.f32.mrf.mxu0
    %v3325 = vadd.f32 %v3311, %v3324
    %3326 = vdwg.mxu0
    %3327 = vmatpush.bf16.msra.mxu0 %v2559
    %3328 = vmatpush.bf16.msra.mxu0 %v2551
    %3329 = vmatpush.bf16.msra.mxu0 %v2543
    %3330 = vmatpush.bf16.msra.mxu0 %v2535
    %3331 = vmatpush.bf16.msra.mxu0 %v2527
    %3332 = vmatpush.bf16.msra.mxu0 %v2519
    %3333 = vmatpush.bf16.msra.mxu0 %v2511
    %3334 = vmatpush.bf16.msra.mxu0 %v2503
    %3335 = vmatmul.bf16.gmra.mxu0 %v195
    %v3336 = vpop.f32.mrf.mxu0
    %v3337 = vadd.f32 %v3323, %v3336
    %v3338 = vpop.f32.mrf.mxu0
    %v3339 = vadd.f32 %v3325, %v3338
    %3340 = vdwg.mxu0
    %3341 = vmatpush.bf16.msra.mxu0 %v2623
    %3342 = vmatpush.bf16.msra.mxu0 %v2615
    %3343 = vmatpush.bf16.msra.mxu0 %v2607
    %3344 = vmatpush.bf16.msra.mxu0 %v2599
    %3345 = vmatpush.bf16.msra.mxu0 %v2591
    %3346 = vmatpush.bf16.msra.mxu0 %v2583
    %3347 = vmatpush.bf16.msra.mxu0 %v2575
    %3348 = vmatpush.bf16.msra.mxu0 %v2567
    %3349 = vmatmul.bf16.gmra.mxu0 %v196
    %v3350 = vpop.f32.mrf.mxu0
    %v3351 = vadd.f32 %v3337, %v3350
    %v3352 = vpop.f32.mrf.mxu0
    %v3353 = vadd.f32 %v3339, %v3352
    %3354 = vdwg.mxu0
    %3355 = vmatpush.bf16.msra.mxu0 %v2687
    %3356 = vmatpush.bf16.msra.mxu0 %v2679
    %3357 = vmatpush.bf16.msra.mxu0 %v2671
    %3358 = vmatpush.bf16.msra.mxu0 %v2663
    %3359 = vmatpush.bf16.msra.mxu0 %v2655
    %3360 = vmatpush.bf16.msra.mxu0 %v2647
    %3361 = vmatpush.bf16.msra.mxu0 %v2639
    %3362 = vmatpush.bf16.msra.mxu0 %v2631
    %3363 = vmatmul.bf16.gmra.mxu0 %v197
    %v3364 = vpop.f32.mrf.mxu0
    %v3365 = vadd.f32 %v3351, %v3364
    %v3366 = vpop.f32.mrf.mxu0
    %v3367 = vadd.f32 %v3353, %v3366
    %3368 = vdwg.mxu0
    %3369 = vmatpush.bf16.msra.mxu0 %v2751
    %3370 = vmatpush.bf16.msra.mxu0 %v2743
    %3371 = vmatpush.bf16.msra.mxu0 %v2735
    %3372 = vmatpush.bf16.msra.mxu0 %v2727
    %3373 = vmatpush.bf16.msra.mxu0 %v2719
    %3374 = vmatpush.bf16.msra.mxu0 %v2711
    %3375 = vmatpush.bf16.msra.mxu0 %v2703
    %3376 = vmatpush.bf16.msra.mxu0 %v2695
    %3377 = vmatmul.bf16.gmra.mxu0 %v198
    %v3378 = vpop.f32.mrf.mxu0
    %v3379 = vadd.f32 %v3365, %v3378
    %v3380 = vpop.f32.mrf.mxu0
    %v3381 = vadd.f32 %v3367, %v3380
    %3382 = vdwg.mxu0
    %3383 = vmatpush.bf16.msra.mxu0 %v2304
    %3384 = vmatpush.bf16.msra.mxu0 %v2296
    %3385 = vmatpush.bf16.msra.mxu0 %v2288
    %3386 = vmatpush.bf16.msra.mxu0 %v2280
    %3387 = vmatpush.bf16.msra.mxu0 %v2272
    %3388 = vmatpush.bf16.msra.mxu0 %v2264
    %3389 = vmatpush.bf16.msra.mxu0 %v2256
    %3390 = vmatpush.bf16.msra.mxu0 %v2248
    %3391 = vmatmul.bf16.gmra.mxu0 %v191
    %v3392 = vpop.f32.mrf.mxu0
    %v3393 = vadd.f32 0.0, %v3392
    %v3394 = vpop.f32.mrf.mxu0
    %v3395 = vadd.f32 0.0, %v3394
    %3396 = vdwg.mxu0
    %3397 = vmatpush.bf16.msra.mxu0 %v2368
    %3398 = vmatpush.bf16.msra.mxu0 %v2360
    %3399 = vmatpush.bf16.msra.mxu0 %v2352
    %3400 = vmatpush.bf16.msra.mxu0 %v2344
    %3401 = vmatpush.bf16.msra.mxu0 %v2336
    %3402 = vmatpush.bf16.msra.mxu0 %v2328
    %3403 = vmatpush.bf16.msra.mxu0 %v2320
    %3404 = vmatpush.bf16.msra.mxu0 %v2312
    %3405 = vmatmul.bf16.gmra.mxu0 %v192
    %v3406 = vpop.f32.mrf.mxu0
    %v3407 = vadd.f32 %v3393, %v3406
    %v3408 = vpop.f32.mrf.mxu0
    %v3409 = vadd.f32 %v3395, %v3408
    %3410 = vdwg.mxu0
    %3411 = vmatpush.bf16.msra.mxu0 %v2432
    %3412 = vmatpush.bf16.msra.mxu0 %v2424
    %3413 = vmatpush.bf16.msra.mxu0 %v2416
    %3414 = vmatpush.bf16.msra.mxu0 %v2408
    %3415 = vmatpush.bf16.msra.mxu0 %v2400
    %3416 = vmatpush.bf16.msra.mxu0 %v2392
    %3417 = vmatpush.bf16.msra.mxu0 %v2384
    %3418 = vmatpush.bf16.msra.mxu0 %v2376
    %3419 = vmatmul.bf16.gmra.mxu0 %v193
    %v3420 = vpop.f32.mrf.mxu0
    %v3421 = vadd.f32 %v3407, %v3420
    %v3422 = vpop.f32.mrf.mxu0
    %v3423 = vadd.f32 %v3409, %v3422
    %3424 = vdwg.mxu0
    %3425 = vmatpush.bf16.msra.mxu0 %v2496
    %3426 = vmatpush.bf16.msra.mxu0 %v2488
    %3427 = vmatpush.bf16.msra.mxu0 %v2480
    %3428 = vmatpush.bf16.msra.mxu0 %v2472
    %3429 = vmatpush.bf16.msra.mxu0 %v2464
    %3430 = vmatpush.bf16.msra.mxu0 %v2456
    %3431 = vmatpush.bf16.msra.mxu0 %v2448
    %3432 = vmatpush.bf16.msra.mxu0 %v2440
    %3433 = vmatmul.bf16.gmra.mxu0 %v194
    %v3434 = vpop.f32.mrf.mxu0
    %v3435 = vadd.f32 %v3421, %v3434
    %v3436 = vpop.f32.mrf.mxu0
    %v3437 = vadd.f32 %v3423, %v3436
    %3438 = vdwg.mxu0
    %3439 = vmatpush.bf16.msra.mxu0 %v2560
    %3440 = vmatpush.bf16.msra.mxu0 %v2552
    %3441 = vmatpush.bf16.msra.mxu0 %v2544
    %3442 = vmatpush.bf16.msra.mxu0 %v2536
    %3443 = vmatpush.bf16.msra.mxu0 %v2528
    %3444 = vmatpush.bf16.msra.mxu0 %v2520
    %3445 = vmatpush.bf16.msra.mxu0 %v2512
    %3446 = vmatpush.bf16.msra.mxu0 %v2504
    %3447 = vmatmul.bf16.gmra.mxu0 %v195
    %v3448 = vpop.f32.mrf.mxu0
    %v3449 = vadd.f32 %v3435, %v3448
    %v3450 = vpop.f32.mrf.mxu0
    %v3451 = vadd.f32 %v3437, %v3450
    %3452 = vdwg.mxu0
    %3453 = vmatpush.bf16.msra.mxu0 %v2624
    %3454 = vmatpush.bf16.msra.mxu0 %v2616
    %3455 = vmatpush.bf16.msra.mxu0 %v2608
    %3456 = vmatpush.bf16.msra.mxu0 %v2600
    %3457 = vmatpush.bf16.msra.mxu0 %v2592
    %3458 = vmatpush.bf16.msra.mxu0 %v2584
    %3459 = vmatpush.bf16.msra.mxu0 %v2576
    %3460 = vmatpush.bf16.msra.mxu0 %v2568
    %3461 = vmatmul.bf16.gmra.mxu0 %v196
    %v3462 = vpop.f32.mrf.mxu0
    %v3463 = vadd.f32 %v3449, %v3462
    %v3464 = vpop.f32.mrf.mxu0
    %v3465 = vadd.f32 %v3451, %v3464
    %3466 = vdwg.mxu0
    %3467 = vmatpush.bf16.msra.mxu0 %v2688
    %3468 = vmatpush.bf16.msra.mxu0 %v2680
    %3469 = vmatpush.bf16.msra.mxu0 %v2672
    %3470 = vmatpush.bf16.msra.mxu0 %v2664
    %3471 = vmatpush.bf16.msra.mxu0 %v2656
    %3472 = vmatpush.bf16.msra.mxu0 %v2648
    %3473 = vmatpush.bf16.msra.mxu0 %v2640
    %3474 = vmatpush.bf16.msra.mxu0 %v2632
    %3475 = vmatmul.bf16.gmra.mxu0 %v197
    %v3476 = vpop.f32.mrf.mxu0
    %v3477 = vadd.f32 %v3463, %v3476
    %v3478 = vpop.f32.mrf.mxu0
    %v3479 = vadd.f32 %v3465, %v3478
    %3480 = vdwg.mxu0
    %3481 = vmatpush.bf16.msra.mxu0 %v2752
    %3482 = vmatpush.bf16.msra.mxu0 %v2744
    %3483 = vmatpush.bf16.msra.mxu0 %v2736
    %3484 = vmatpush.bf16.msra.mxu0 %v2728
    %3485 = vmatpush.bf16.msra.mxu0 %v2720
    %3486 = vmatpush.bf16.msra.mxu0 %v2712
    %3487 = vmatpush.bf16.msra.mxu0 %v2704
    %3488 = vmatpush.bf16.msra.mxu0 %v2696
    %3489 = vmatmul.bf16.gmra.mxu0 %v198
    %v3490 = vpop.f32.mrf.mxu0
    %v3491 = vadd.f32 %v3477, %v3490
    %v3492 = vpop.f32.mrf.mxu0
    %v3493 = vadd.f32 %v3479, %v3492
    %3494 = vdwg.mxu0
    %3495 = vmatpush.bf16.msra.mxu0 %v2305
    %3496 = vmatpush.bf16.msra.mxu0 %v2297
    %3497 = vmatpush.bf16.msra.mxu0 %v2289
    %3498 = vmatpush.bf16.msra.mxu0 %v2281
    %3499 = vmatpush.bf16.msra.mxu0 %v2273
    %3500 = vmatpush.bf16.msra.mxu0 %v2265
    %3501 = vmatpush.bf16.msra.mxu0 %v2257
    %3502 = vmatpush.bf16.msra.mxu0 %v2249
    %3503 = vmatmul.bf16.gmra.mxu0 %v191
    %v3504 = vpop.f32.mrf.mxu0
    %v3505 = vadd.f32 0.0, %v3504
    %v3506 = vpop.f32.mrf.mxu0
    %v3507 = vadd.f32 0.0, %v3506
    %3508 = vdwg.mxu0
    %3509 = vmatpush.bf16.msra.mxu0 %v2369
    %3510 = vmatpush.bf16.msra.mxu0 %v2361
    %3511 = vmatpush.bf16.msra.mxu0 %v2353
    %3512 = vmatpush.bf16.msra.mxu0 %v2345
    %3513 = vmatpush.bf16.msra.mxu0 %v2337
    %3514 = vmatpush.bf16.msra.mxu0 %v2329
    %3515 = vmatpush.bf16.msra.mxu0 %v2321
    %3516 = vmatpush.bf16.msra.mxu0 %v2313
    %3517 = vmatmul.bf16.gmra.mxu0 %v192
    %v3518 = vpop.f32.mrf.mxu0
    %v3519 = vadd.f32 %v3505, %v3518
    %v3520 = vpop.f32.mrf.mxu0
    %v3521 = vadd.f32 %v3507, %v3520
    %3522 = vdwg.mxu0
    %3523 = vmatpush.bf16.msra.mxu0 %v2433
    %3524 = vmatpush.bf16.msra.mxu0 %v2425
    %3525 = vmatpush.bf16.msra.mxu0 %v2417
    %3526 = vmatpush.bf16.msra.mxu0 %v2409
    %3527 = vmatpush.bf16.msra.mxu0 %v2401
    %3528 = vmatpush.bf16.msra.mxu0 %v2393
    %3529 = vmatpush.bf16.msra.mxu0 %v2385
    %3530 = vmatpush.bf16.msra.mxu0 %v2377
    %3531 = vmatmul.bf16.gmra.mxu0 %v193
    %v3532 = vpop.f32.mrf.mxu0
    %v3533 = vadd.f32 %v3519, %v3532
    %v3534 = vpop.f32.mrf.mxu0
    %v3535 = vadd.f32 %v3521, %v3534
    %3536 = vdwg.mxu0
    %3537 = vmatpush.bf16.msra.mxu0 %v2497
    %3538 = vmatpush.bf16.msra.mxu0 %v2489
    %3539 = vmatpush.bf16.msra.mxu0 %v2481
    %3540 = vmatpush.bf16.msra.mxu0 %v2473
    %3541 = vmatpush.bf16.msra.mxu0 %v2465
    %3542 = vmatpush.bf16.msra.mxu0 %v2457
    %3543 = vmatpush.bf16.msra.mxu0 %v2449
    %3544 = vmatpush.bf16.msra.mxu0 %v2441
    %3545 = vmatmul.bf16.gmra.mxu0 %v194
    %v3546 = vpop.f32.mrf.mxu0
    %v3547 = vadd.f32 %v3533, %v3546
    %v3548 = vpop.f32.mrf.mxu0
    %v3549 = vadd.f32 %v3535, %v3548
    %3550 = vdwg.mxu0
    %3551 = vmatpush.bf16.msra.mxu0 %v2561
    %3552 = vmatpush.bf16.msra.mxu0 %v2553
    %3553 = vmatpush.bf16.msra.mxu0 %v2545
    %3554 = vmatpush.bf16.msra.mxu0 %v2537
    %3555 = vmatpush.bf16.msra.mxu0 %v2529
    %3556 = vmatpush.bf16.msra.mxu0 %v2521
    %3557 = vmatpush.bf16.msra.mxu0 %v2513
    %3558 = vmatpush.bf16.msra.mxu0 %v2505
    %3559 = vmatmul.bf16.gmra.mxu0 %v195
    %v3560 = vpop.f32.mrf.mxu0
    %v3561 = vadd.f32 %v3547, %v3560
    %v3562 = vpop.f32.mrf.mxu0
    %v3563 = vadd.f32 %v3549, %v3562
    %3564 = vdwg.mxu0
    %3565 = vmatpush.bf16.msra.mxu0 %v2625
    %3566 = vmatpush.bf16.msra.mxu0 %v2617
    %3567 = vmatpush.bf16.msra.mxu0 %v2609
    %3568 = vmatpush.bf16.msra.mxu0 %v2601
    %3569 = vmatpush.bf16.msra.mxu0 %v2593
    %3570 = vmatpush.bf16.msra.mxu0 %v2585
    %3571 = vmatpush.bf16.msra.mxu0 %v2577
    %3572 = vmatpush.bf16.msra.mxu0 %v2569
    %3573 = vmatmul.bf16.gmra.mxu0 %v196
    %v3574 = vpop.f32.mrf.mxu0
    %v3575 = vadd.f32 %v3561, %v3574
    %v3576 = vpop.f32.mrf.mxu0
    %v3577 = vadd.f32 %v3563, %v3576
    %3578 = vdwg.mxu0
    %3579 = vmatpush.bf16.msra.mxu0 %v2689
    %3580 = vmatpush.bf16.msra.mxu0 %v2681
    %3581 = vmatpush.bf16.msra.mxu0 %v2673
    %3582 = vmatpush.bf16.msra.mxu0 %v2665
    %3583 = vmatpush.bf16.msra.mxu0 %v2657
    %3584 = vmatpush.bf16.msra.mxu0 %v2649
    %3585 = vmatpush.bf16.msra.mxu0 %v2641
    %3586 = vmatpush.bf16.msra.mxu0 %v2633
    %3587 = vmatmul.bf16.gmra.mxu0 %v197
    %v3588 = vpop.f32.mrf.mxu0
    %v3589 = vadd.f32 %v3575, %v3588
    %v3590 = vpop.f32.mrf.mxu0
    %v3591 = vadd.f32 %v3577, %v3590
    %3592 = vdwg.mxu0
    %3593 = vmatpush.bf16.msra.mxu0 %v2753
    %3594 = vmatpush.bf16.msra.mxu0 %v2745
    %3595 = vmatpush.bf16.msra.mxu0 %v2737
    %3596 = vmatpush.bf16.msra.mxu0 %v2729
    %3597 = vmatpush.bf16.msra.mxu0 %v2721
    %3598 = vmatpush.bf16.msra.mxu0 %v2713
    %3599 = vmatpush.bf16.msra.mxu0 %v2705
    %3600 = vmatpush.bf16.msra.mxu0 %v2697
    %3601 = vmatmul.bf16.gmra.mxu0 %v198
    %v3602 = vpop.f32.mrf.mxu0
    %v3603 = vadd.f32 %v3589, %v3602
    %v3604 = vpop.f32.mrf.mxu0
    %v3605 = vadd.f32 %v3591, %v3604
    %3606 = vdwg.mxu0
    %3607 = vmatpush.bf16.msra.mxu0 %v2306
    %3608 = vmatpush.bf16.msra.mxu0 %v2298
    %3609 = vmatpush.bf16.msra.mxu0 %v2290
    %3610 = vmatpush.bf16.msra.mxu0 %v2282
    %3611 = vmatpush.bf16.msra.mxu0 %v2274
    %3612 = vmatpush.bf16.msra.mxu0 %v2266
    %3613 = vmatpush.bf16.msra.mxu0 %v2258
    %3614 = vmatpush.bf16.msra.mxu0 %v2250
    %3615 = vmatmul.bf16.gmra.mxu0 %v191
    %v3616 = vpop.f32.mrf.mxu0
    %v3617 = vadd.f32 0.0, %v3616
    %v3618 = vpop.f32.mrf.mxu0
    %v3619 = vadd.f32 0.0, %v3618
    %3620 = vdwg.mxu0
    %3621 = vmatpush.bf16.msra.mxu0 %v2370
    %3622 = vmatpush.bf16.msra.mxu0 %v2362
    %3623 = vmatpush.bf16.msra.mxu0 %v2354
    %3624 = vmatpush.bf16.msra.mxu0 %v2346
    %3625 = vmatpush.bf16.msra.mxu0 %v2338
    %3626 = vmatpush.bf16.msra.mxu0 %v2330
    %3627 = vmatpush.bf16.msra.mxu0 %v2322
    %3628 = vmatpush.bf16.msra.mxu0 %v2314
    %3629 = vmatmul.bf16.gmra.mxu0 %v192
    %v3630 = vpop.f32.mrf.mxu0
    %v3631 = vadd.f32 %v3617, %v3630
    %v3632 = vpop.f32.mrf.mxu0
    %v3633 = vadd.f32 %v3619, %v3632
    %3634 = vdwg.mxu0
    %3635 = vmatpush.bf16.msra.mxu0 %v2434
    %3636 = vmatpush.bf16.msra.mxu0 %v2426
    %3637 = vmatpush.bf16.msra.mxu0 %v2418
    %3638 = vmatpush.bf16.msra.mxu0 %v2410
    %3639 = vmatpush.bf16.msra.mxu0 %v2402
    %3640 = vmatpush.bf16.msra.mxu0 %v2394
    %3641 = vmatpush.bf16.msra.mxu0 %v2386
    %3642 = vmatpush.bf16.msra.mxu0 %v2378
    %3643 = vmatmul.bf16.gmra.mxu0 %v193
    %v3644 = vpop.f32.mrf.mxu0
    %v3645 = vadd.f32 %v3631, %v3644
    %v3646 = vpop.f32.mrf.mxu0
    %v3647 = vadd.f32 %v3633, %v3646
    %3648 = vdwg.mxu0
    %3649 = vmatpush.bf16.msra.mxu0 %v2498
    %3650 = vmatpush.bf16.msra.mxu0 %v2490
    %3651 = vmatpush.bf16.msra.mxu0 %v2482
    %3652 = vmatpush.bf16.msra.mxu0 %v2474
    %3653 = vmatpush.bf16.msra.mxu0 %v2466
    %3654 = vmatpush.bf16.msra.mxu0 %v2458
    %3655 = vmatpush.bf16.msra.mxu0 %v2450
    %3656 = vmatpush.bf16.msra.mxu0 %v2442
    %3657 = vmatmul.bf16.gmra.mxu0 %v194
    %v3658 = vpop.f32.mrf.mxu0
    %v3659 = vadd.f32 %v3645, %v3658
    %v3660 = vpop.f32.mrf.mxu0
    %v3661 = vadd.f32 %v3647, %v3660
    %3662 = vdwg.mxu0
    %3663 = vmatpush.bf16.msra.mxu0 %v2562
    %3664 = vmatpush.bf16.msra.mxu0 %v2554
    %3665 = vmatpush.bf16.msra.mxu0 %v2546
    %3666 = vmatpush.bf16.msra.mxu0 %v2538
    %3667 = vmatpush.bf16.msra.mxu0 %v2530
    %3668 = vmatpush.bf16.msra.mxu0 %v2522
    %3669 = vmatpush.bf16.msra.mxu0 %v2514
    %3670 = vmatpush.bf16.msra.mxu0 %v2506
    %3671 = vmatmul.bf16.gmra.mxu0 %v195
    %v3672 = vpop.f32.mrf.mxu0
    %v3673 = vadd.f32 %v3659, %v3672
    %v3674 = vpop.f32.mrf.mxu0
    %v3675 = vadd.f32 %v3661, %v3674
    %3676 = vdwg.mxu0
    %3677 = vmatpush.bf16.msra.mxu0 %v2626
    %3678 = vmatpush.bf16.msra.mxu0 %v2618
    %3679 = vmatpush.bf16.msra.mxu0 %v2610
    %3680 = vmatpush.bf16.msra.mxu0 %v2602
    %3681 = vmatpush.bf16.msra.mxu0 %v2594
    %3682 = vmatpush.bf16.msra.mxu0 %v2586
    %3683 = vmatpush.bf16.msra.mxu0 %v2578
    %3684 = vmatpush.bf16.msra.mxu0 %v2570
    %3685 = vmatmul.bf16.gmra.mxu0 %v196
    %v3686 = vpop.f32.mrf.mxu0
    %v3687 = vadd.f32 %v3673, %v3686
    %v3688 = vpop.f32.mrf.mxu0
    %v3689 = vadd.f32 %v3675, %v3688
    %3690 = vdwg.mxu0
    %3691 = vmatpush.bf16.msra.mxu0 %v2690
    %3692 = vmatpush.bf16.msra.mxu0 %v2682
    %3693 = vmatpush.bf16.msra.mxu0 %v2674
    %3694 = vmatpush.bf16.msra.mxu0 %v2666
    %3695 = vmatpush.bf16.msra.mxu0 %v2658
    %3696 = vmatpush.bf16.msra.mxu0 %v2650
    %3697 = vmatpush.bf16.msra.mxu0 %v2642
    %3698 = vmatpush.bf16.msra.mxu0 %v2634
    %3699 = vmatmul.bf16.gmra.mxu0 %v197
    %v3700 = vpop.f32.mrf.mxu0
    %v3701 = vadd.f32 %v3687, %v3700
    %v3702 = vpop.f32.mrf.mxu0
    %v3703 = vadd.f32 %v3689, %v3702
    %3704 = vdwg.mxu0
    %3705 = vmatpush.bf16.msra.mxu0 %v2754
    %3706 = vmatpush.bf16.msra.mxu0 %v2746
    %3707 = vmatpush.bf16.msra.mxu0 %v2738
    %3708 = vmatpush.bf16.msra.mxu0 %v2730
    %3709 = vmatpush.bf16.msra.mxu0 %v2722
    %3710 = vmatpush.bf16.msra.mxu0 %v2714
    %3711 = vmatpush.bf16.msra.mxu0 %v2706
    %3712 = vmatpush.bf16.msra.mxu0 %v2698
    %3713 = vmatmul.bf16.gmra.mxu0 %v198
    %v3714 = vpop.f32.mrf.mxu0
    %v3715 = vadd.f32 %v3701, %v3714
    %v3716 = vpop.f32.mrf.mxu0
    %v3717 = vadd.f32 %v3703, %v3716
    %3718 = vdwg.mxu0
    %3719 = vmatpush.bf16.msra.mxu0 %v2307
    %3720 = vmatpush.bf16.msra.mxu0 %v2299
    %3721 = vmatpush.bf16.msra.mxu0 %v2291
    %3722 = vmatpush.bf16.msra.mxu0 %v2283
    %3723 = vmatpush.bf16.msra.mxu0 %v2275
    %3724 = vmatpush.bf16.msra.mxu0 %v2267
    %3725 = vmatpush.bf16.msra.mxu0 %v2259
    %3726 = vmatpush.bf16.msra.mxu0 %v2251
    %3727 = vmatmul.bf16.gmra.mxu0 %v191
    %v3728 = vpop.f32.mrf.mxu0
    %v3729 = vadd.f32 0.0, %v3728
    %v3730 = vpop.f32.mrf.mxu0
    %v3731 = vadd.f32 0.0, %v3730
    %3732 = vdwg.mxu0
    %3733 = vmatpush.bf16.msra.mxu0 %v2371
    %3734 = vmatpush.bf16.msra.mxu0 %v2363
    %3735 = vmatpush.bf16.msra.mxu0 %v2355
    %3736 = vmatpush.bf16.msra.mxu0 %v2347
    %3737 = vmatpush.bf16.msra.mxu0 %v2339
    %3738 = vmatpush.bf16.msra.mxu0 %v2331
    %3739 = vmatpush.bf16.msra.mxu0 %v2323
    %3740 = vmatpush.bf16.msra.mxu0 %v2315
    %3741 = vmatmul.bf16.gmra.mxu0 %v192
    %v3742 = vpop.f32.mrf.mxu0
    %v3743 = vadd.f32 %v3729, %v3742
    %v3744 = vpop.f32.mrf.mxu0
    %v3745 = vadd.f32 %v3731, %v3744
    %3746 = vdwg.mxu0
    %3747 = vmatpush.bf16.msra.mxu0 %v2435
    %3748 = vmatpush.bf16.msra.mxu0 %v2427
    %3749 = vmatpush.bf16.msra.mxu0 %v2419
    %3750 = vmatpush.bf16.msra.mxu0 %v2411
    %3751 = vmatpush.bf16.msra.mxu0 %v2403
    %3752 = vmatpush.bf16.msra.mxu0 %v2395
    %3753 = vmatpush.bf16.msra.mxu0 %v2387
    %3754 = vmatpush.bf16.msra.mxu0 %v2379
    %3755 = vmatmul.bf16.gmra.mxu0 %v193
    %v3756 = vpop.f32.mrf.mxu0
    %v3757 = vadd.f32 %v3743, %v3756
    %v3758 = vpop.f32.mrf.mxu0
    %v3759 = vadd.f32 %v3745, %v3758
    %3760 = vdwg.mxu0
    %3761 = vmatpush.bf16.msra.mxu0 %v2499
    %3762 = vmatpush.bf16.msra.mxu0 %v2491
    %3763 = vmatpush.bf16.msra.mxu0 %v2483
    %3764 = vmatpush.bf16.msra.mxu0 %v2475
    %3765 = vmatpush.bf16.msra.mxu0 %v2467
    %3766 = vmatpush.bf16.msra.mxu0 %v2459
    %3767 = vmatpush.bf16.msra.mxu0 %v2451
    %3768 = vmatpush.bf16.msra.mxu0 %v2443
    %3769 = vmatmul.bf16.gmra.mxu0 %v194
    %v3770 = vpop.f32.mrf.mxu0
    %v3771 = vadd.f32 %v3757, %v3770
    %v3772 = vpop.f32.mrf.mxu0
    %v3773 = vadd.f32 %v3759, %v3772
    %3774 = vdwg.mxu0
    %3775 = vmatpush.bf16.msra.mxu0 %v2563
    %3776 = vmatpush.bf16.msra.mxu0 %v2555
    %3777 = vmatpush.bf16.msra.mxu0 %v2547
    %3778 = vmatpush.bf16.msra.mxu0 %v2539
    %3779 = vmatpush.bf16.msra.mxu0 %v2531
    %3780 = vmatpush.bf16.msra.mxu0 %v2523
    %3781 = vmatpush.bf16.msra.mxu0 %v2515
    %3782 = vmatpush.bf16.msra.mxu0 %v2507
    %3783 = vmatmul.bf16.gmra.mxu0 %v195
    %v3784 = vpop.f32.mrf.mxu0
    %v3785 = vadd.f32 %v3771, %v3784
    %v3786 = vpop.f32.mrf.mxu0
    %v3787 = vadd.f32 %v3773, %v3786
    %3788 = vdwg.mxu0
    %3789 = vmatpush.bf16.msra.mxu0 %v2627
    %3790 = vmatpush.bf16.msra.mxu0 %v2619
    %3791 = vmatpush.bf16.msra.mxu0 %v2611
    %3792 = vmatpush.bf16.msra.mxu0 %v2603
    %3793 = vmatpush.bf16.msra.mxu0 %v2595
    %3794 = vmatpush.bf16.msra.mxu0 %v2587
    %3795 = vmatpush.bf16.msra.mxu0 %v2579
    %3796 = vmatpush.bf16.msra.mxu0 %v2571
    %3797 = vmatmul.bf16.gmra.mxu0 %v196
    %v3798 = vpop.f32.mrf.mxu0
    %v3799 = vadd.f32 %v3785, %v3798
    %v3800 = vpop.f32.mrf.mxu0
    %v3801 = vadd.f32 %v3787, %v3800
    %3802 = vdwg.mxu0
    %3803 = vmatpush.bf16.msra.mxu0 %v2691
    %3804 = vmatpush.bf16.msra.mxu0 %v2683
    %3805 = vmatpush.bf16.msra.mxu0 %v2675
    %3806 = vmatpush.bf16.msra.mxu0 %v2667
    %3807 = vmatpush.bf16.msra.mxu0 %v2659
    %3808 = vmatpush.bf16.msra.mxu0 %v2651
    %3809 = vmatpush.bf16.msra.mxu0 %v2643
    %3810 = vmatpush.bf16.msra.mxu0 %v2635
    %3811 = vmatmul.bf16.gmra.mxu0 %v197
    %v3812 = vpop.f32.mrf.mxu0
    %v3813 = vadd.f32 %v3799, %v3812
    %v3814 = vpop.f32.mrf.mxu0
    %v3815 = vadd.f32 %v3801, %v3814
    %3816 = vdwg.mxu0
    %3817 = vmatpush.bf16.msra.mxu0 %v2755
    %3818 = vmatpush.bf16.msra.mxu0 %v2747
    %3819 = vmatpush.bf16.msra.mxu0 %v2739
    %3820 = vmatpush.bf16.msra.mxu0 %v2731
    %3821 = vmatpush.bf16.msra.mxu0 %v2723
    %3822 = vmatpush.bf16.msra.mxu0 %v2715
    %3823 = vmatpush.bf16.msra.mxu0 %v2707
    %3824 = vmatpush.bf16.msra.mxu0 %v2699
    %3825 = vmatmul.bf16.gmra.mxu0 %v198
    %v3826 = vpop.f32.mrf.mxu0
    %v3827 = vadd.f32 %v3813, %v3826
    %v3828 = vpop.f32.mrf.mxu0
    %v3829 = vadd.f32 %v3815, %v3828
    %3830 = vdwg.mxu0
    %3831 = vmatpush.bf16.msra.mxu0 %v2308
    %3832 = vmatpush.bf16.msra.mxu0 %v2300
    %3833 = vmatpush.bf16.msra.mxu0 %v2292
    %3834 = vmatpush.bf16.msra.mxu0 %v2284
    %3835 = vmatpush.bf16.msra.mxu0 %v2276
    %3836 = vmatpush.bf16.msra.mxu0 %v2268
    %3837 = vmatpush.bf16.msra.mxu0 %v2260
    %3838 = vmatpush.bf16.msra.mxu0 %v2252
    %3839 = vmatmul.bf16.gmra.mxu0 %v191
    %v3840 = vpop.f32.mrf.mxu0
    %v3841 = vadd.f32 0.0, %v3840
    %v3842 = vpop.f32.mrf.mxu0
    %v3843 = vadd.f32 0.0, %v3842
    %3844 = vdwg.mxu0
    %3845 = vmatpush.bf16.msra.mxu0 %v2372
    %3846 = vmatpush.bf16.msra.mxu0 %v2364
    %3847 = vmatpush.bf16.msra.mxu0 %v2356
    %3848 = vmatpush.bf16.msra.mxu0 %v2348
    %3849 = vmatpush.bf16.msra.mxu0 %v2340
    %3850 = vmatpush.bf16.msra.mxu0 %v2332
    %3851 = vmatpush.bf16.msra.mxu0 %v2324
    %3852 = vmatpush.bf16.msra.mxu0 %v2316
    %3853 = vmatmul.bf16.gmra.mxu0 %v192
    %v3854 = vpop.f32.mrf.mxu0
    %v3855 = vadd.f32 %v3841, %v3854
    %v3856 = vpop.f32.mrf.mxu0
    %v3857 = vadd.f32 %v3843, %v3856
    %3858 = vdwg.mxu0
    %3859 = vmatpush.bf16.msra.mxu0 %v2436
    %3860 = vmatpush.bf16.msra.mxu0 %v2428
    %3861 = vmatpush.bf16.msra.mxu0 %v2420
    %3862 = vmatpush.bf16.msra.mxu0 %v2412
    %3863 = vmatpush.bf16.msra.mxu0 %v2404
    %3864 = vmatpush.bf16.msra.mxu0 %v2396
    %3865 = vmatpush.bf16.msra.mxu0 %v2388
    %3866 = vmatpush.bf16.msra.mxu0 %v2380
    %3867 = vmatmul.bf16.gmra.mxu0 %v193
    %v3868 = vpop.f32.mrf.mxu0
    %v3869 = vadd.f32 %v3855, %v3868
    %v3870 = vpop.f32.mrf.mxu0
    %v3871 = vadd.f32 %v3857, %v3870
    %3872 = vdwg.mxu0
    %3873 = vmatpush.bf16.msra.mxu0 %v2500
    %3874 = vmatpush.bf16.msra.mxu0 %v2492
    %3875 = vmatpush.bf16.msra.mxu0 %v2484
    %3876 = vmatpush.bf16.msra.mxu0 %v2476
    %3877 = vmatpush.bf16.msra.mxu0 %v2468
    %3878 = vmatpush.bf16.msra.mxu0 %v2460
    %3879 = vmatpush.bf16.msra.mxu0 %v2452
    %3880 = vmatpush.bf16.msra.mxu0 %v2444
    %3881 = vmatmul.bf16.gmra.mxu0 %v194
    %v3882 = vpop.f32.mrf.mxu0
    %v3883 = vadd.f32 %v3869, %v3882
    %v3884 = vpop.f32.mrf.mxu0
    %v3885 = vadd.f32 %v3871, %v3884
    %3886 = vdwg.mxu0
    %3887 = vmatpush.bf16.msra.mxu0 %v2564
    %3888 = vmatpush.bf16.msra.mxu0 %v2556
    %3889 = vmatpush.bf16.msra.mxu0 %v2548
    %3890 = vmatpush.bf16.msra.mxu0 %v2540
    %3891 = vmatpush.bf16.msra.mxu0 %v2532
    %3892 = vmatpush.bf16.msra.mxu0 %v2524
    %3893 = vmatpush.bf16.msra.mxu0 %v2516
    %3894 = vmatpush.bf16.msra.mxu0 %v2508
    %3895 = vmatmul.bf16.gmra.mxu0 %v195
    %v3896 = vpop.f32.mrf.mxu0
    %v3897 = vadd.f32 %v3883, %v3896
    %v3898 = vpop.f32.mrf.mxu0
    %v3899 = vadd.f32 %v3885, %v3898
    %3900 = vdwg.mxu0
    %3901 = vmatpush.bf16.msra.mxu0 %v2628
    %3902 = vmatpush.bf16.msra.mxu0 %v2620
    %3903 = vmatpush.bf16.msra.mxu0 %v2612
    %3904 = vmatpush.bf16.msra.mxu0 %v2604
    %3905 = vmatpush.bf16.msra.mxu0 %v2596
    %3906 = vmatpush.bf16.msra.mxu0 %v2588
    %3907 = vmatpush.bf16.msra.mxu0 %v2580
    %3908 = vmatpush.bf16.msra.mxu0 %v2572
    %3909 = vmatmul.bf16.gmra.mxu0 %v196
    %v3910 = vpop.f32.mrf.mxu0
    %v3911 = vadd.f32 %v3897, %v3910
    %v3912 = vpop.f32.mrf.mxu0
    %v3913 = vadd.f32 %v3899, %v3912
    %3914 = vdwg.mxu0
    %3915 = vmatpush.bf16.msra.mxu0 %v2692
    %3916 = vmatpush.bf16.msra.mxu0 %v2684
    %3917 = vmatpush.bf16.msra.mxu0 %v2676
    %3918 = vmatpush.bf16.msra.mxu0 %v2668
    %3919 = vmatpush.bf16.msra.mxu0 %v2660
    %3920 = vmatpush.bf16.msra.mxu0 %v2652
    %3921 = vmatpush.bf16.msra.mxu0 %v2644
    %3922 = vmatpush.bf16.msra.mxu0 %v2636
    %3923 = vmatmul.bf16.gmra.mxu0 %v197
    %v3924 = vpop.f32.mrf.mxu0
    %v3925 = vadd.f32 %v3911, %v3924
    %v3926 = vpop.f32.mrf.mxu0
    %v3927 = vadd.f32 %v3913, %v3926
    %3928 = vdwg.mxu0
    %3929 = vmatpush.bf16.msra.mxu0 %v2756
    %3930 = vmatpush.bf16.msra.mxu0 %v2748
    %3931 = vmatpush.bf16.msra.mxu0 %v2740
    %3932 = vmatpush.bf16.msra.mxu0 %v2732
    %3933 = vmatpush.bf16.msra.mxu0 %v2724
    %3934 = vmatpush.bf16.msra.mxu0 %v2716
    %3935 = vmatpush.bf16.msra.mxu0 %v2708
    %3936 = vmatpush.bf16.msra.mxu0 %v2700
    %3937 = vmatmul.bf16.gmra.mxu0 %v198
    %v3938 = vpop.f32.mrf.mxu0
    %v3939 = vadd.f32 %v3925, %v3938
    %v3940 = vpop.f32.mrf.mxu0
    %v3941 = vadd.f32 %v3927, %v3940
    %3942 = vdwg.mxu0
    %3943 = vmatpush.bf16.msra.mxu0 %v2309
    %3944 = vmatpush.bf16.msra.mxu0 %v2301
    %3945 = vmatpush.bf16.msra.mxu0 %v2293
    %3946 = vmatpush.bf16.msra.mxu0 %v2285
    %3947 = vmatpush.bf16.msra.mxu0 %v2277
    %3948 = vmatpush.bf16.msra.mxu0 %v2269
    %3949 = vmatpush.bf16.msra.mxu0 %v2261
    %3950 = vmatpush.bf16.msra.mxu0 %v2253
    %3951 = vmatmul.bf16.gmra.mxu0 %v191
    %v3952 = vpop.f32.mrf.mxu0
    %v3953 = vadd.f32 0.0, %v3952
    %v3954 = vpop.f32.mrf.mxu0
    %v3955 = vadd.f32 0.0, %v3954
    %3956 = vdwg.mxu0
    %3957 = vmatpush.bf16.msra.mxu0 %v2373
    %3958 = vmatpush.bf16.msra.mxu0 %v2365
    %3959 = vmatpush.bf16.msra.mxu0 %v2357
    %3960 = vmatpush.bf16.msra.mxu0 %v2349
    %3961 = vmatpush.bf16.msra.mxu0 %v2341
    %3962 = vmatpush.bf16.msra.mxu0 %v2333
    %3963 = vmatpush.bf16.msra.mxu0 %v2325
    %3964 = vmatpush.bf16.msra.mxu0 %v2317
    %3965 = vmatmul.bf16.gmra.mxu0 %v192
    %v3966 = vpop.f32.mrf.mxu0
    %v3967 = vadd.f32 %v3953, %v3966
    %v3968 = vpop.f32.mrf.mxu0
    %v3969 = vadd.f32 %v3955, %v3968
    %3970 = vdwg.mxu0
    %3971 = vmatpush.bf16.msra.mxu0 %v2437
    %3972 = vmatpush.bf16.msra.mxu0 %v2429
    %3973 = vmatpush.bf16.msra.mxu0 %v2421
    %3974 = vmatpush.bf16.msra.mxu0 %v2413
    %3975 = vmatpush.bf16.msra.mxu0 %v2405
    %3976 = vmatpush.bf16.msra.mxu0 %v2397
    %3977 = vmatpush.bf16.msra.mxu0 %v2389
    %3978 = vmatpush.bf16.msra.mxu0 %v2381
    %3979 = vmatmul.bf16.gmra.mxu0 %v193
    %v3980 = vpop.f32.mrf.mxu0
    %v3981 = vadd.f32 %v3967, %v3980
    %v3982 = vpop.f32.mrf.mxu0
    %v3983 = vadd.f32 %v3969, %v3982
    %3984 = vdwg.mxu0
    %3985 = vmatpush.bf16.msra.mxu0 %v2501
    %3986 = vmatpush.bf16.msra.mxu0 %v2493
    %3987 = vmatpush.bf16.msra.mxu0 %v2485
    %3988 = vmatpush.bf16.msra.mxu0 %v2477
    %3989 = vmatpush.bf16.msra.mxu0 %v2469
    %3990 = vmatpush.bf16.msra.mxu0 %v2461
    %3991 = vmatpush.bf16.msra.mxu0 %v2453
    %3992 = vmatpush.bf16.msra.mxu0 %v2445
    %3993 = vmatmul.bf16.gmra.mxu0 %v194
    %v3994 = vpop.f32.mrf.mxu0
    %v3995 = vadd.f32 %v3981, %v3994
    %v3996 = vpop.f32.mrf.mxu0
    %v3997 = vadd.f32 %v3983, %v3996
    %3998 = vdwg.mxu0
    %3999 = vmatpush.bf16.msra.mxu0 %v2565
    %4000 = vmatpush.bf16.msra.mxu0 %v2557
    %4001 = vmatpush.bf16.msra.mxu0 %v2549
    %4002 = vmatpush.bf16.msra.mxu0 %v2541
    %4003 = vmatpush.bf16.msra.mxu0 %v2533
    %4004 = vmatpush.bf16.msra.mxu0 %v2525
    %4005 = vmatpush.bf16.msra.mxu0 %v2517
    %4006 = vmatpush.bf16.msra.mxu0 %v2509
    %4007 = vmatmul.bf16.gmra.mxu0 %v195
    %v4008 = vpop.f32.mrf.mxu0
    %v4009 = vadd.f32 %v3995, %v4008
    %v4010 = vpop.f32.mrf.mxu0
    %v4011 = vadd.f32 %v3997, %v4010
    %4012 = vdwg.mxu0
    %4013 = vmatpush.bf16.msra.mxu0 %v2629
    %4014 = vmatpush.bf16.msra.mxu0 %v2621
    %4015 = vmatpush.bf16.msra.mxu0 %v2613
    %4016 = vmatpush.bf16.msra.mxu0 %v2605
    %4017 = vmatpush.bf16.msra.mxu0 %v2597
    %4018 = vmatpush.bf16.msra.mxu0 %v2589
    %4019 = vmatpush.bf16.msra.mxu0 %v2581
    %4020 = vmatpush.bf16.msra.mxu0 %v2573
    %4021 = vmatmul.bf16.gmra.mxu0 %v196
    %v4022 = vpop.f32.mrf.mxu0
    %v4023 = vadd.f32 %v4009, %v4022
    %v4024 = vpop.f32.mrf.mxu0
    %v4025 = vadd.f32 %v4011, %v4024
    %4026 = vdwg.mxu0
    %4027 = vmatpush.bf16.msra.mxu0 %v2693
    %4028 = vmatpush.bf16.msra.mxu0 %v2685
    %4029 = vmatpush.bf16.msra.mxu0 %v2677
    %4030 = vmatpush.bf16.msra.mxu0 %v2669
    %4031 = vmatpush.bf16.msra.mxu0 %v2661
    %4032 = vmatpush.bf16.msra.mxu0 %v2653
    %4033 = vmatpush.bf16.msra.mxu0 %v2645
    %4034 = vmatpush.bf16.msra.mxu0 %v2637
    %4035 = vmatmul.bf16.gmra.mxu0 %v197
    %v4036 = vpop.f32.mrf.mxu0
    %v4037 = vadd.f32 %v4023, %v4036
    %v4038 = vpop.f32.mrf.mxu0
    %v4039 = vadd.f32 %v4025, %v4038
    %4040 = vdwg.mxu0
    %4041 = vmatpush.bf16.msra.mxu0 %v2757
    %4042 = vmatpush.bf16.msra.mxu0 %v2749
    %4043 = vmatpush.bf16.msra.mxu0 %v2741
    %4044 = vmatpush.bf16.msra.mxu0 %v2733
    %4045 = vmatpush.bf16.msra.mxu0 %v2725
    %4046 = vmatpush.bf16.msra.mxu0 %v2717
    %4047 = vmatpush.bf16.msra.mxu0 %v2709
    %4048 = vmatpush.bf16.msra.mxu0 %v2701
    %4049 = vmatmul.bf16.gmra.mxu0 %v198
    %v4050 = vpop.f32.mrf.mxu0
    %v4051 = vadd.f32 %v4037, %v4050
    %v4052 = vpop.f32.mrf.mxu0
    %v4053 = vadd.f32 %v4039, %v4052
    %4054 = vdwg.mxu0
    %4055 = vmatpush.bf16.msra.mxu0 %v2310
    %4056 = vmatpush.bf16.msra.mxu0 %v2302
    %4057 = vmatpush.bf16.msra.mxu0 %v2294
    %4058 = vmatpush.bf16.msra.mxu0 %v2286
    %4059 = vmatpush.bf16.msra.mxu0 %v2278
    %4060 = vmatpush.bf16.msra.mxu0 %v2270
    %4061 = vmatpush.bf16.msra.mxu0 %v2262
    %4062 = vmatpush.bf16.msra.mxu0 %v2254
    %4063 = vmatmul.bf16.gmra.mxu0 %v191
    %v4064 = vpop.f32.mrf.mxu0
    %v4065 = vadd.f32 0.0, %v4064
    %v4066 = vpop.f32.mrf.mxu0
    %v4067 = vadd.f32 0.0, %v4066
    %4068 = vdwg.mxu0
    %4069 = vmatpush.bf16.msra.mxu0 %v2374
    %4070 = vmatpush.bf16.msra.mxu0 %v2366
    %4071 = vmatpush.bf16.msra.mxu0 %v2358
    %4072 = vmatpush.bf16.msra.mxu0 %v2350
    %4073 = vmatpush.bf16.msra.mxu0 %v2342
    %4074 = vmatpush.bf16.msra.mxu0 %v2334
    %4075 = vmatpush.bf16.msra.mxu0 %v2326
    %4076 = vmatpush.bf16.msra.mxu0 %v2318
    %4077 = vmatmul.bf16.gmra.mxu0 %v192
    %v4078 = vpop.f32.mrf.mxu0
    %v4079 = vadd.f32 %v4065, %v4078
    %v4080 = vpop.f32.mrf.mxu0
    %v4081 = vadd.f32 %v4067, %v4080
    %4082 = vdwg.mxu0
    %4083 = vmatpush.bf16.msra.mxu0 %v2438
    %4084 = vmatpush.bf16.msra.mxu0 %v2430
    %4085 = vmatpush.bf16.msra.mxu0 %v2422
    %4086 = vmatpush.bf16.msra.mxu0 %v2414
    %4087 = vmatpush.bf16.msra.mxu0 %v2406
    %4088 = vmatpush.bf16.msra.mxu0 %v2398
    %4089 = vmatpush.bf16.msra.mxu0 %v2390
    %4090 = vmatpush.bf16.msra.mxu0 %v2382
    %4091 = vmatmul.bf16.gmra.mxu0 %v193
    %v4092 = vpop.f32.mrf.mxu0
    %v4093 = vadd.f32 %v4079, %v4092
    %v4094 = vpop.f32.mrf.mxu0
    %v4095 = vadd.f32 %v4081, %v4094
    %4096 = vdwg.mxu0
    %4097 = vmatpush.bf16.msra.mxu0 %v2502
    %4098 = vmatpush.bf16.msra.mxu0 %v2494
    %4099 = vmatpush.bf16.msra.mxu0 %v2486
    %4100 = vmatpush.bf16.msra.mxu0 %v2478
    %4101 = vmatpush.bf16.msra.mxu0 %v2470
    %4102 = vmatpush.bf16.msra.mxu0 %v2462
    %4103 = vmatpush.bf16.msra.mxu0 %v2454
    %4104 = vmatpush.bf16.msra.mxu0 %v2446
    %4105 = vmatmul.bf16.gmra.mxu0 %v194
    %v4106 = vpop.f32.mrf.mxu0
    %v4107 = vadd.f32 %v4093, %v4106
    %v4108 = vpop.f32.mrf.mxu0
    %v4109 = vadd.f32 %v4095, %v4108
    %4110 = vdwg.mxu0
    %4111 = vmatpush.bf16.msra.mxu0 %v2566
    %4112 = vmatpush.bf16.msra.mxu0 %v2558
    %4113 = vmatpush.bf16.msra.mxu0 %v2550
    %4114 = vmatpush.bf16.msra.mxu0 %v2542
    %4115 = vmatpush.bf16.msra.mxu0 %v2534
    %4116 = vmatpush.bf16.msra.mxu0 %v2526
    %4117 = vmatpush.bf16.msra.mxu0 %v2518
    %4118 = vmatpush.bf16.msra.mxu0 %v2510
    %4119 = vmatmul.bf16.gmra.mxu0 %v195
    %v4120 = vpop.f32.mrf.mxu0
    %v4121 = vadd.f32 %v4107, %v4120
    %v4122 = vpop.f32.mrf.mxu0
    %v4123 = vadd.f32 %v4109, %v4122
    %4124 = vdwg.mxu0
    %4125 = vmatpush.bf16.msra.mxu0 %v2630
    %4126 = vmatpush.bf16.msra.mxu0 %v2622
    %4127 = vmatpush.bf16.msra.mxu0 %v2614
    %4128 = vmatpush.bf16.msra.mxu0 %v2606
    %4129 = vmatpush.bf16.msra.mxu0 %v2598
    %4130 = vmatpush.bf16.msra.mxu0 %v2590
    %4131 = vmatpush.bf16.msra.mxu0 %v2582
    %4132 = vmatpush.bf16.msra.mxu0 %v2574
    %4133 = vmatmul.bf16.gmra.mxu0 %v196
    %v4134 = vpop.f32.mrf.mxu0
    %v4135 = vadd.f32 %v4121, %v4134
    %v4136 = vpop.f32.mrf.mxu0
    %v4137 = vadd.f32 %v4123, %v4136
    %4138 = vdwg.mxu0
    %4139 = vmatpush.bf16.msra.mxu0 %v2694
    %4140 = vmatpush.bf16.msra.mxu0 %v2686
    %4141 = vmatpush.bf16.msra.mxu0 %v2678
    %4142 = vmatpush.bf16.msra.mxu0 %v2670
    %4143 = vmatpush.bf16.msra.mxu0 %v2662
    %4144 = vmatpush.bf16.msra.mxu0 %v2654
    %4145 = vmatpush.bf16.msra.mxu0 %v2646
    %4146 = vmatpush.bf16.msra.mxu0 %v2638
    %4147 = vmatmul.bf16.gmra.mxu0 %v197
    %v4148 = vpop.f32.mrf.mxu0
    %v4149 = vadd.f32 %v4135, %v4148
    %v4150 = vpop.f32.mrf.mxu0
    %v4151 = vadd.f32 %v4137, %v4150
    %4152 = vdwg.mxu0
    %4153 = vmatpush.bf16.msra.mxu0 %v2758
    %4154 = vmatpush.bf16.msra.mxu0 %v2750
    %4155 = vmatpush.bf16.msra.mxu0 %v2742
    %4156 = vmatpush.bf16.msra.mxu0 %v2734
    %4157 = vmatpush.bf16.msra.mxu0 %v2726
    %4158 = vmatpush.bf16.msra.mxu0 %v2718
    %4159 = vmatpush.bf16.msra.mxu0 %v2710
    %4160 = vmatpush.bf16.msra.mxu0 %v2702
    %4161 = vmatmul.bf16.gmra.mxu0 %v198
    %v4162 = vpop.f32.mrf.mxu0
    %v4163 = vadd.f32 %v4149, %v4162
    %v4164 = vpop.f32.mrf.mxu0
    %v4165 = vadd.f32 %v4151, %v4164
    %4166 = vdwg.mxu0
    %v4167 = vadd.f32 %v60, %v3379
    %v4168 = vadd.f32 %v61, %v3491
    %v4169 = vadd.f32 %v62, %v3603
    %v4170 = vadd.f32 %v63, %v3715
    %v4171 = vadd.f32 %v64, %v3827
    %v4172 = vadd.f32 %v65, %v3939
    %v4173 = vadd.f32 %v66, %v4051
    %v4174 = vadd.f32 %v67, %v4163
    %v4175 = vadd.f32 %v68, %v3381
    %v4176 = vadd.f32 %v69, %v3493
    %v4177 = vadd.f32 %v70, %v3605
    %v4178 = vadd.f32 %v71, %v3717
    %v4179 = vadd.f32 %v72, %v3829
    %v4180 = vadd.f32 %v73, %v3941
    %v4181 = vadd.f32 %v74, %v4053
    %v4182 = vadd.f32 %v75, %v4165
    %4183 = vst [vmem:[#allocation8] sm:$0xff] %v4167
    %4184 = vst [vmem:[#allocation8 + $0x8] sm:$0xff] %v4168
    %4185 = vst [vmem:[#allocation8 + $0x10] sm:$0xff] %v4169
    %4186 = vst [vmem:[#allocation8 + $0x18] sm:$0xff] %v4170
    %4187 = vst [vmem:[#allocation8 + $0x20] sm:$0xff] %v4171
    %4188 = vst [vmem:[#allocation8 + $0x28] sm:$0xff] %v4172
    %4189 = vst [vmem:[#allocation8 + $0x30] sm:$0xff] %v4173
    %4190 = vst [vmem:[#allocation8 + $0x38] sm:$0xff] %v4174
    %4191 = vst [vmem:[#allocation8 + $0x40] sm:$0xff] %v4175
    %4192 = vst [vmem:[#allocation8 + $0x48] sm:$0xff] %v4176
    %4193 = vst [vmem:[#allocation8 + $0x50] sm:$0xff] %v4177
    %4194 = vst [vmem:[#allocation8 + $0x58] sm:$0xff] %v4178
    %4195 = vst [vmem:[#allocation8 + $0x60] sm:$0xff] %v4179
    %4196 = vst [vmem:[#allocation8 + $0x68] sm:$0xff] %v4180
    %4197 = vst [vmem:[#allocation8 + $0x70] sm:$0xff] %v4181
    %4198 = vst [vmem:[#allocation8 + $0x78] sm:$0xff] %v4182
    // Predicated region
    $region26: #{tpu_custom_call.1} parent=1 // pred_check
      _
    $region27: #{tpu_custom_call.1} parent=1 // pred_check_branch
      %4200 = sbr.rel (0) target = $region29
    $region28: #{tpu_custom_call.1} parent=1 // pred_region
      %4202 = vsyncadd [#allocation4], 0
      %s4203 = sshll.u32 [#allocation8], 4
      %s4204 = int_to_ptr.vmem [resolvable:$true] %s4203
      %s4205 = sshll.u32 %s3, 4
      %s4206 = int_to_ptr.hbm [resolvable:$true] %s4205
      %4211 = dma.vmem_to_hbm [thread:$0]  %s4204, 2048, %s4206, [#allocation4], 1024, 1024, 64
    $region29: #{tpu_custom_call.1} parent=1 // pred_fallthru
      _
    // Predicated region
    $region30: #{tpu_custom_call.1} parent=1 // pred_check
      _
    $region31: #{tpu_custom_call.1} parent=1 // pred_check_branch
      %4213 = sbr.rel (0) target = $region33
    $region32: #{tpu_custom_call.1} parent=1 // pred_region
      %4215 = dma.done [#allocation4], 2048
    $region33: #{tpu_custom_call.1} parent=1 // pred_fallthru
      _
    %4216 = vsyncpa [#allocation3], 1
    %4217 = vsyncpa [#allocation6], 1
    %4218 = vsyncpa [#allocation4], 1

</llo_original>
